<compile_context>
chip_gen: v7x
topology: tpu7x:2x2x1
jax: 0.10.0
libtpu: 0.0.40
codegen_flags: <defaults>
</compile_context>

<pallas_src>
import jax
import jax.numpy as jnp
from jax.experimental import pallas as pl
from jax.experimental.pallas import tpu as pltpu

GN_EPS = 1e-5
_VMEM_LIMIT = 48 * 1024 * 1024


# ------------------------------------------------------------------
# Fused 3x3 conv (pad=1, stride=1, no bias) + GroupNorm + ReLU.
# Accepts a LIST of NHWC inputs whose channels are logically concatenated
# (so conv2 never materializes the concat in HBM). One grid step == one batch
# element. Halo is built in a VMEM scratch with zero borders; the interior is
# stored at W-offset 8 so the store stays sublane-aligned for f32 tiling.
# ------------------------------------------------------------------
def _make_conv_kernel(n_in, use_im2col):
    def kernel(*refs):
        xs = refs[:n_in]                                   # each (1, H, W, Cin) bf16
        w_ref, gamma_ref, beta_ref, gmap_ref, gmapT_ref = refs[n_in:n_in + 5]
        o_ref = refs[n_in + 5]                             # (1, H, W, Cout)
        xpad = refs[n_in + 6]                              # (H+2, W+16, Cin) f32 scratch

        H, W, Cout = o_ref.shape[1], o_ref.shape[2], o_ref.shape[3]
        Cin = xs[0].shape[3]
        G = gmap_ref.shape[1]
        cg = Cout // G
        Kin = 9 * Cin

        # Zero-fill the halo scratch; the borders provide the conv's "SAME" zero padding.
        xpad[...] = jnp.zeros(xpad.shape, jnp.float32)

        acc = jnp.zeros((H * W, Cout), jnp.float32)
        for i in range(n_in):
            # Interior store: rows [1, H+1), cols [8, 8+W)  (8 keeps it sublane-aligned).
            xpad[1:H + 1, 8:8 + W, :] = xs[i][0].astype(jnp.float32)
            if use_im2col:
                # One big K = 9*Cin matmul per input (only when Cin % 128 == 0 so the
                # lane-axis concat is tile-aligned).
                taps = [xpad[dh:dh + H, 7 + dw:7 + dw + W, :]
                        for dh in range(3) for dw in range(3)]
                patches = jnp.concatenate(taps, axis=-1).reshape(H * W, Kin)
                acc = acc + jnp.dot(patches.astype(jnp.bfloat16),
                                    w_ref[i * Kin:(i + 1) * Kin, :],
                                    preferred_element_type=jnp.float32)
            else:
                # Chained bf16 dots into a single f32 accumulator (MRB accumulation on v7x).
                for dh in range(3):
                    for dw in range(3):
                        tap = xpad[dh:dh + H, 7 + dw:7 + dw + W, :]     # (H, W, Cin)
                        kidx = (i * 9 + dh * 3 + dw) * Cin
                        acc = acc + jnp.dot(
                            tap.reshape(H * W, Cin).astype(jnp.bfloat16),
                            w_ref[kidx:kidx + Cin, :],
                            preferred_element_type=jnp.float32)

        # ---- GroupNorm (two-pass, f32) + ReLU ----
        n = jnp.float32(H * W * cg)
        ch_sum = jnp.sum(acc, axis=0, keepdims=True)                              # (1, Cout)
        mean_g = jnp.dot(ch_sum, gmap_ref[...], preferred_element_type=jnp.float32) / n
        mean_c = jnp.dot(mean_g, gmapT_ref[...], preferred_element_type=jnp.float32)
        d = acc - mean_c
        ch_sq = jnp.sum(d * d, axis=0, keepdims=True)
        var_g = jnp.dot(ch_sq, gmap_ref[...], preferred_element_type=jnp.float32) / n
        inv_c = jnp.dot(jax.lax.rsqrt(var_g + GN_EPS), gmapT_ref[...],
                        preferred_element_type=jnp.float32)
        y = d * inv_c * gamma_ref[...] + beta_ref[...]
        y = jnp.maximum(y, 0.0)
        o_ref[...] = y.reshape(1, H, W, Cout).astype(o_ref.dtype)

    return kernel


def conv3x3_gn_relu(inputs, w_hwio, gamma, beta, num_groups, out_dtype):
    """inputs: list of NHWC bf16 arrays (channels logically concatenated).
       w_hwio: (3, 3, sum(Cin), Cout). Conv(no bias) -> GN(num_groups) -> ReLU, fused."""
    n_in = len(inputs)
    B, H, W, Cin = inputs[0].shape
    Cout = w_hwio.shape[-1]
    G = num_groups
    cg = Cout // G

    # Flatten weights per input chunk, minor order (dh, dw, c) -> rows of (9*Cin, Cout).
    w_flat = jnp.concatenate(
        [w_hwio[:, :, i * Cin:(i + 1) * Cin, :].reshape(9 * Cin, Cout)
         for i in range(n_in)], axis=0).astype(jnp.bfloat16)

    gmap = (jnp.arange(Cout)[:, None] // cg == jnp.arange(G)[None, :]).astype(jnp.float32)
    gmapT = gmap.T
    gamma2 = gamma.reshape(1, Cout).astype(jnp.float32)
    beta2 = beta.reshape(1, Cout).astype(jnp.float32)

    kernel = _make_conv_kernel(n_in, use_im2col=(Cin % 128 == 0))

    in_specs = ([pl.BlockSpec((1, H, W, Cin), lambda b: (b, 0, 0, 0)) for _ in range(n_in)]
                + [pl.BlockSpec((n_in * 9 * Cin, Cout), lambda b: (0, 0)),
                   pl.BlockSpec((1, Cout), lambda b: (0, 0)),
                   pl.BlockSpec((1, Cout), lambda b: (0, 0)),
                   pl.BlockSpec((Cout, G), lambda b: (0, 0)),
                   pl.BlockSpec((G, Cout), lambda b: (0, 0))])

    return pl.pallas_call(
        kernel,
        out_shape=jax.ShapeDtypeStruct((B, H, W, Cout), out_dtype),
        grid=(B,),
        in_specs=in_specs,
        out_specs=pl.BlockSpec((1, H, W, Cout), lambda b: (b, 0, 0, 0)),
        scratch_shapes=[pltpu.VMEM((H + 2, W + 16, Cin), jnp.float32)],
        compiler_params=pltpu.CompilerParams(
            dimension_semantics=("parallel",),
            vmem_limit_bytes=_VMEM_LIMIT),
    )(*inputs, w_flat, gamma2, beta2, gmap, gmapT)


# ------------------------------------------------------------------
# Fused triple MaxPool2d(kernel=5, stride=1, padding=2): reads y once, emits
# y1, y2, y3. Separable 5x5 max; -inf halo kept in a VMEM scratch (interior
# stored at W-offset 8 for sublane alignment).
# ------------------------------------------------------------------
def _pool_chain_kernel(y_ref, o1_ref, o2_ref, o3_ref, pad_ref):
    H, W = o1_ref.shape[1], o1_ref.shape[2]
    pad_ref[...] = jnp.full(pad_ref.shape, -jnp.inf, jnp.float32)
    cur = y_ref[0].astype(jnp.float32)                     # (H, W, C)
    for o_ref in (o1_ref, o2_ref, o3_ref):
        pad_ref[2:H + 2, 8:8 + W, :] = cur
        # W pass: 5 shifted column windows of the padded scratch.
        tw = pad_ref[:, 6:6 + W, :]                        # (H+4, W, C)
        for dw in range(1, 5):
            tw = jnp.maximum(tw, pad_ref[:, 6 + dw:6 + dw + W, :])
        # H pass: 5 row windows (major-axis slices, alignment-free).
        res = tw[0:H]
        for dh in range(1, 5):
            res = jnp.maximum(res, tw[dh:dh + H])
        o_ref[...] = res[None].astype(o_ref.dtype)
        cur = res


def maxpool5_chain(y):
    B, H, W, C = y.shape
    spec = pl.BlockSpec((1, H, W, C), lambda b: (b, 0, 0, 0))
    return pl.pallas_call(
        _pool_chain_kernel,
        out_shape=tuple(jax.ShapeDtypeStruct((B, H, W, C), jnp.bfloat16) for _ in range(3)),
        grid=(B,),
        in_specs=[spec],
        out_specs=(spec, spec, spec),
        scratch_shapes=[pltpu.VMEM((H + 4, W + 16, C), jnp.float32)],
        compiler_params=pltpu.CompilerParams(
            dimension_semantics=("parallel",),
            vmem_limit_bytes=_VMEM_LIMIT),
    )(y)


# ------------------------------------------------------------------
# SPPF forward (NCHW in / NCHW out, like the PyTorch module)
# ------------------------------------------------------------------
def sppf_forward(x_nchw, params):
    # NCHW -> NHWC; inter-kernel activations kept in bf16 to halve HBM traffic.
    x = jnp.transpose(x_nchw, (0, 2, 3, 1)).astype(jnp.bfloat16)
    g = params["num_groups"]
    y = conv3x3_gn_relu([x], params["w1"], params["gamma1"], params["beta1"], g,
                        out_dtype=jnp.bfloat16)
    y1, y2, y3 = maxpool5_chain(y)
    # conv2 consumes [y, y1, y2, y3] directly -- no HBM concat, no HBM pad.
    out = conv3x3_gn_relu([y, y1, y2, y3], params["w2"], params["gamma2"],
                          params["beta2"], g, out_dtype=jnp.float32)
    return jnp.transpose(out, (0, 3, 1, 2))


# ------------------------------------------------------------------
# Pure-JAX reference (f32 math, bf16 quantization at the same inter-kernel
# boundaries as the Pallas pipeline) for the correctness check.
# ------------------------------------------------------------------
def _ref_conv_gn_relu(x, w, gamma, beta, G):
    y = jax.lax.conv_general_dilated(x.astype(jnp.float32), w, (1, 1), "SAME",
                                     dimension_numbers=("NHWC", "HWIO", "NHWC"))
    B, H, W, C = y.shape
    cg = C // G
    yr = y.reshape(B, H * W, G, cg)
    mean = yr.mean(axis=(1, 3), keepdims=True)
    var = ((yr - mean) ** 2).mean(axis=(1, 3), keepdims=True)
    yn = ((yr - mean) * jax.lax.rsqrt(var + GN_EPS)).reshape(B, H, W, C)
    return jnp.maximum(yn * gamma + beta, 0.0)


def _ref_maxpool5(x):
    return jax.lax.reduce_window(x, -jnp.inf, jax.lax.max,
                                 (1, 5, 5, 1), (1, 1, 1, 1), "SAME")


def _q(x):  # bf16 quantization point matching the kernels' inter-kernel storage
    return x.astype(jnp.bfloat16).astype(jnp.float32)


def sppf_reference(x_nchw, params):
    x = _q(jnp.transpose(x_nchw, (0, 2, 3, 1)))
    g = params["num_groups"]
    y = _q(_ref_conv_gn_relu(x, params["w1"], params["gamma1"], params["beta1"], g))
    y1 = _q(_ref_maxpool5(y))
    y2 = _q(_ref_maxpool5(y1))
    y3 = _q(_ref_maxpool5(y2))
    cat = jnp.concatenate([y, y1, y2, y3], axis=-1)
    out = _ref_conv_gn_relu(cat, params["w2"], params["gamma2"], params["beta2"], g)
    return jnp.transpose(out, (0, 3, 1, 2))


if __name__ == "__main__":
    # GN(num_groups=32) requires channel counts divisible by 32 (mid = in_channels // 2).
    B, in_channels, out_channels, H, W = 2, 64, 64, 16, 16
    mid = in_channels // 2
    num_groups = 32

    key = jax.random.PRNGKey(0)
    k = jax.random.split(key, 7)
    params = {
        "num_groups": num_groups,
        # conv weights in HWIO (conv bias disabled because a norm layer follows)
        "w1": 0.05 * jax.random.normal(k[0], (3, 3, in_channels, mid), jnp.float32),
        "gamma1": 1.0 + 0.1 * jax.random.normal(k[1], (mid,), jnp.float32),
        "beta1": 0.1 * jax.random.normal(k[2], (mid,), jnp.float32),
        "w2": 0.05 * jax.random.normal(k[3], (3, 3, 4 * mid, out_channels), jnp.float32),
        "gamma2": 1.0 + 0.1 * jax.random.normal(k[4], (out_channels,), jnp.float32),
        "beta2": 0.1 * jax.random.normal(k[5], (out_channels,), jnp.float32),
    }

    x = jax.random.normal(k[6], (B, in_channels, H, W), jnp.float32)   # NCHW like PyTorch

    out = jax.block_until_ready(sppf_forward(x, params))
    ref = jax.block_until_ready(sppf_reference(x, params))

    assert out.shape == (B, out_channels, H, W), out.shape
    assert bool(jnp.all(jnp.isfinite(out)))
    # bf16 inter-kernel storage + bf16 MXU operands => ~1e-2 level agreement vs f32 ref.
    assert jnp.allclose(out, ref, rtol=5e-2, atol=5e-2), float(jnp.max(jnp.abs(out - ref)))

    print("KERNEL_OK")
</pallas_src>

<mosaic_0001>
module attributes {stable_mosaic.version = 11 : i64} {
  func.func @kernel(%arg0: i32, %arg1: memref<1x16x16x64xbf16, #tpu.memory_space<vmem>>, %arg2: memref<576x32xbf16, #tpu.memory_space<vmem>>, %arg3: memref<1x32xf32, #tpu.memory_space<vmem>>, %arg4: memref<1x32xf32, #tpu.memory_space<vmem>>, %arg5: memref<32x32xf32, #tpu.memory_space<vmem>>, %arg6: memref<32x32xf32, #tpu.memory_space<vmem>>, %arg7: memref<1x16x16x32xbf16, #tpu.memory_space<vmem>>, %arg8: memref<18x32x64xf32, #tpu.memory_space<vmem>>) attributes {dimension_semantics = [#tpu.dimension_semantics<parallel>], iteration_bounds = array<i64: 2>, scalar_prefetch = 0 : i64, scratch_operands = 1 : i64, tpu.core_type = #tpu.core_type<tc>, window_params = [{transform_indices = @transform_0, window_bounds = array<i64: 1, 16, 16, 64>}, {pipeline_mode = #tpu.pipeline_mode<synchronous>, transform_indices = @transform_1, window_bounds = array<i64: 576, 32>}, {pipeline_mode = #tpu.pipeline_mode<synchronous>, transform_indices = @transform_2, window_bounds = array<i64: 1, 32>}, {pipeline_mode = #tpu.pipeline_mode<synchronous>, transform_indices = @transform_3, window_bounds = array<i64: 1, 32>}, {pipeline_mode = #tpu.pipeline_mode<synchronous>, transform_indices = @transform_4, window_bounds = array<i64: 32, 32>}, {pipeline_mode = #tpu.pipeline_mode<synchronous>, transform_indices = @transform_5, window_bounds = array<i64: 32, 32>}, {transform_indices = @transform_6, window_bounds = array<i64: 1, 16, 16, 32>}]} {
    %cst = arith.constant 0.000000e+00 : f32
    %0 = vector.broadcast %cst : f32 to vector<18x32x64xf32>
    %c0 = arith.constant 0 : index
    %c0_0 = arith.constant 0 : index
    %c0_1 = arith.constant 0 : index
    %1 = vector.load %arg8[%c0, %c0_0, %c0_1] : memref<18x32x64xf32, #tpu.memory_space<vmem>>, vector<18x32x64xf32>
    tpu.vector_store %arg8[%c0, %c0_0, %c0_1], %0 {strides = array<i32>} : memref<18x32x64xf32, #tpu.memory_space<vmem>>, vector<18x32x64xf32>,
    %cst_2 = arith.constant 0.000000e+00 : f32
    %2 = vector.broadcast %cst_2 : f32 to vector<256x32xf32>
    %c0_3 = arith.constant 0 : index
    %c0_4 = arith.constant 0 : index
    %c0_5 = arith.constant 0 : index
    %c0_6 = arith.constant 0 : index
    %3 = vector.load %arg1[%c0_3, %c0_4, %c0_5, %c0_6] : memref<1x16x16x64xbf16, #tpu.memory_space<vmem>>, vector<1x16x16x64xbf16>
    %4 = vector.shape_cast %3 : vector<1x16x16x64xbf16> to vector<16x16x64xbf16>
    %5 = arith.extf %4 : vector<16x16x64xbf16> to vector<16x16x64xf32>
    %c1 = arith.constant 1 : index
    %c8 = arith.constant 8 : index
    %c0_7 = arith.constant 0 : index
    %6 = vector.load %arg8[%c1, %c8, %c0_7] : memref<18x32x64xf32, #tpu.memory_space<vmem>>, vector<16x16x64xf32>
    tpu.vector_store %arg8[%c1, %c8, %c0_7], %5 {strides = array<i32>} : memref<18x32x64xf32, #tpu.memory_space<vmem>>, vector<16x16x64xf32>,
    %c0_8 = arith.constant 0 : index
    %c7 = arith.constant 7 : index
    %c0_9 = arith.constant 0 : index
    %7 = vector.load %arg8[%c0_8, %c7, %c0_9] : memref<18x32x64xf32, #tpu.memory_space<vmem>>, vector<16x16x64xf32>
    %8 = vector.shape_cast %7 : vector<16x16x64xf32> to vector<256x64xf32>
    %9 = arith.truncf %8 : vector<256x64xf32> to vector<256x64xbf16>
    %c0_10 = arith.constant 0 : index
    %c0_11 = arith.constant 0 : index
    %10 = vector.load %arg2[%c0_10, %c0_11] : memref<576x32xbf16, #tpu.memory_space<vmem>>, vector<64x32xbf16>
    %cst_12 = arith.constant dense<0.000000e+00> : vector<256x32xf32>
    %11 = tpu.matmul %9, %10, %cst_12 {dimension_numbers = #tpu.dot_dimension_numbers<[1], [0], [0], [1], [0, 0, 1, 1], [], []>} : vector<256x64xbf16>, vector<64x32xbf16>, vector<256x32xf32> -> vector<256x32xf32>
    %12 = arith.addf %2, %11 : vector<256x32xf32>
    %c0_13 = arith.constant 0 : index
    %c8_14 = arith.constant 8 : index
    %c0_15 = arith.constant 0 : index
    %13 = vector.load %arg8[%c0_13, %c8_14, %c0_15] : memref<18x32x64xf32, #tpu.memory_space<vmem>>, vector<16x16x64xf32>
    %14 = vector.shape_cast %13 : vector<16x16x64xf32> to vector<256x64xf32>
    %15 = arith.truncf %14 : vector<256x64xf32> to vector<256x64xbf16>
    %c64 = arith.constant 64 : index
    %c0_16 = arith.constant 0 : index
    %16 = vector.load %arg2[%c64, %c0_16] : memref<576x32xbf16, #tpu.memory_space<vmem>>, vector<64x32xbf16>
    %cst_17 = arith.constant dense<0.000000e+00> : vector<256x32xf32>
    %17 = tpu.matmul %15, %16, %cst_17 {dimension_numbers = #tpu.dot_dimension_numbers<[1], [0], [0], [1], [0, 0, 1, 1], [], []>} : vector<256x64xbf16>, vector<64x32xbf16>, vector<256x32xf32> -> vector<256x32xf32>
    %18 = arith.addf %12, %17 : vector<256x32xf32>
    %c0_18 = arith.constant 0 : index
    %c9 = arith.constant 9 : index
    %c0_19 = arith.constant 0 : index
    %19 = vector.load %arg8[%c0_18, %c9, %c0_19] : memref<18x32x64xf32, #tpu.memory_space<vmem>>, vector<16x16x64xf32>
    %20 = vector.shape_cast %19 : vector<16x16x64xf32> to vector<256x64xf32>
    %21 = arith.truncf %20 : vector<256x64xf32> to vector<256x64xbf16>
    %c128 = arith.constant 128 : index
    %c0_20 = arith.constant 0 : index
    %22 = vector.load %arg2[%c128, %c0_20] : memref<576x32xbf16, #tpu.memory_space<vmem>>, vector<64x32xbf16>
    %cst_21 = arith.constant dense<0.000000e+00> : vector<256x32xf32>
    %23 = tpu.matmul %21, %22, %cst_21 {dimension_numbers = #tpu.dot_dimension_numbers<[1], [0], [0], [1], [0, 0, 1, 1], [], []>} : vector<256x64xbf16>, vector<64x32xbf16>, vector<256x32xf32> -> vector<256x32xf32>
    %24 = arith.addf %18, %23 : vector<256x32xf32>
    %c1_22 = arith.constant 1 : index
    %c7_23 = arith.constant 7 : index
    %c0_24 = arith.constant 0 : index
    %25 = vector.load %arg8[%c1_22, %c7_23, %c0_24] : memref<18x32x64xf32, #tpu.memory_space<vmem>>, vector<16x16x64xf32>
    %26 = vector.shape_cast %25 : vector<16x16x64xf32> to vector<256x64xf32>
    %27 = arith.truncf %26 : vector<256x64xf32> to vector<256x64xbf16>
    %c192 = arith.constant 192 : index
    %c0_25 = arith.constant 0 : index
    %28 = vector.load %arg2[%c192, %c0_25] : memref<576x32xbf16, #tpu.memory_space<vmem>>, vector<64x32xbf16>
    %cst_26 = arith.constant dense<0.000000e+00> : vector<256x32xf32>
    %29 = tpu.matmul %27, %28, %cst_26 {dimension_numbers = #tpu.dot_dimension_numbers<[1], [0], [0], [1], [0, 0, 1, 1], [], []>} : vector<256x64xbf16>, vector<64x32xbf16>, vector<256x32xf32> -> vector<256x32xf32>
    %30 = arith.addf %24, %29 : vector<256x32xf32>
    %c1_27 = arith.constant 1 : index
    %c8_28 = arith.constant 8 : index
    %c0_29 = arith.constant 0 : index
    %31 = vector.load %arg8[%c1_27, %c8_28, %c0_29] : memref<18x32x64xf32, #tpu.memory_space<vmem>>, vector<16x16x64xf32>
    %32 = vector.shape_cast %31 : vector<16x16x64xf32> to vector<256x64xf32>
    %33 = arith.truncf %32 : vector<256x64xf32> to vector<256x64xbf16>
    %c256 = arith.constant 256 : index
    %c0_30 = arith.constant 0 : index
    %34 = vector.load %arg2[%c256, %c0_30] : memref<576x32xbf16, #tpu.memory_space<vmem>>, vector<64x32xbf16>
    %cst_31 = arith.constant dense<0.000000e+00> : vector<256x32xf32>
    %35 = tpu.matmul %33, %34, %cst_31 {dimension_numbers = #tpu.dot_dimension_numbers<[1], [0], [0], [1], [0, 0, 1, 1], [], []>} : vector<256x64xbf16>, vector<64x32xbf16>, vector<256x32xf32> -> vector<256x32xf32>
    %36 = arith.addf %30, %35 : vector<256x32xf32>
    %c1_32 = arith.constant 1 : index
    %c9_33 = arith.constant 9 : index
    %c0_34 = arith.constant 0 : index
    %37 = vector.load %arg8[%c1_32, %c9_33, %c0_34] : memref<18x32x64xf32, #tpu.memory_space<vmem>>, vector<16x16x64xf32>
    %38 = vector.shape_cast %37 : vector<16x16x64xf32> to vector<256x64xf32>
    %39 = arith.truncf %38 : vector<256x64xf32> to vector<256x64xbf16>
    %c320 = arith.constant 320 : index
    %c0_35 = arith.constant 0 : index
    %40 = vector.load %arg2[%c320, %c0_35] : memref<576x32xbf16, #tpu.memory_space<vmem>>, vector<64x32xbf16>
    %cst_36 = arith.constant dense<0.000000e+00> : vector<256x32xf32>
    %41 = tpu.matmul %39, %40, %cst_36 {dimension_numbers = #tpu.dot_dimension_numbers<[1], [0], [0], [1], [0, 0, 1, 1], [], []>} : vector<256x64xbf16>, vector<64x32xbf16>, vector<256x32xf32> -> vector<256x32xf32>
    %42 = arith.addf %36, %41 : vector<256x32xf32>
    %c2 = arith.constant 2 : index
    %c7_37 = arith.constant 7 : index
    %c0_38 = arith.constant 0 : index
    %43 = vector.load %arg8[%c2, %c7_37, %c0_38] : memref<18x32x64xf32, #tpu.memory_space<vmem>>, vector<16x16x64xf32>
    %44 = vector.shape_cast %43 : vector<16x16x64xf32> to vector<256x64xf32>
    %45 = arith.truncf %44 : vector<256x64xf32> to vector<256x64xbf16>
    %c384 = arith.constant 384 : index
    %c0_39 = arith.constant 0 : index
    %46 = vector.load %arg2[%c384, %c0_39] : memref<576x32xbf16, #tpu.memory_space<vmem>>, vector<64x32xbf16>
    %cst_40 = arith.constant dense<0.000000e+00> : vector<256x32xf32>
    %47 = tpu.matmul %45, %46, %cst_40 {dimension_numbers = #tpu.dot_dimension_numbers<[1], [0], [0], [1], [0, 0, 1, 1], [], []>} : vector<256x64xbf16>, vector<64x32xbf16>, vector<256x32xf32> -> vector<256x32xf32>
    %48 = arith.addf %42, %47 : vector<256x32xf32>
    %c2_41 = arith.constant 2 : index
    %c8_42 = arith.constant 8 : index
    %c0_43 = arith.constant 0 : index
    %49 = vector.load %arg8[%c2_41, %c8_42, %c0_43] : memref<18x32x64xf32, #tpu.memory_space<vmem>>, vector<16x16x64xf32>
    %50 = vector.shape_cast %49 : vector<16x16x64xf32> to vector<256x64xf32>
    %51 = arith.truncf %50 : vector<256x64xf32> to vector<256x64xbf16>
    %c448 = arith.constant 448 : index
    %c0_44 = arith.constant 0 : index
    %52 = vector.load %arg2[%c448, %c0_44] : memref<576x32xbf16, #tpu.memory_space<vmem>>, vector<64x32xbf16>
    %cst_45 = arith.constant dense<0.000000e+00> : vector<256x32xf32>
    %53 = tpu.matmul %51, %52, %cst_45 {dimension_numbers = #tpu.dot_dimension_numbers<[1], [0], [0], [1], [0, 0, 1, 1], [], []>} : vector<256x64xbf16>, vector<64x32xbf16>, vector<256x32xf32> -> vector<256x32xf32>
    %54 = arith.addf %48, %53 : vector<256x32xf32>
    %c2_46 = arith.constant 2 : index
    %c9_47 = arith.constant 9 : index
    %c0_48 = arith.constant 0 : index
    %55 = vector.load %arg8[%c2_46, %c9_47, %c0_48] : memref<18x32x64xf32, #tpu.memory_space<vmem>>, vector<16x16x64xf32>
    %56 = vector.shape_cast %55 : vector<16x16x64xf32> to vector<256x64xf32>
    %57 = arith.truncf %56 : vector<256x64xf32> to vector<256x64xbf16>
    %c512 = arith.constant 512 : index
    %c0_49 = arith.constant 0 : index
    %58 = vector.load %arg2[%c512, %c0_49] : memref<576x32xbf16, #tpu.memory_space<vmem>>, vector<64x32xbf16>
    %cst_50 = arith.constant dense<0.000000e+00> : vector<256x32xf32>
    %59 = tpu.matmul %57, %58, %cst_50 {dimension_numbers = #tpu.dot_dimension_numbers<[1], [0], [0], [1], [0, 0, 1, 1], [], []>} : vector<256x64xbf16>, vector<64x32xbf16>, vector<256x32xf32> -> vector<256x32xf32>
    %60 = arith.addf %54, %59 : vector<256x32xf32>
    %cst_51 = arith.constant dense<0.000000e+00> : vector<32xf32>
    %61 = vector.multi_reduction <add>, %60, %cst_51 [0] : vector<256x32xf32> to vector<32xf32>
    %62 = vector.shape_cast %61 : vector<32xf32> to vector<1x32xf32>
    %c0_52 = arith.constant 0 : index
    %c0_53 = arith.constant 0 : index
    %63 = vector.load %arg5[%c0_52, %c0_53] : memref<32x32xf32, #tpu.memory_space<vmem>>, vector<32x32xf32>
    %cst_54 = arith.constant dense<0.000000e+00> : vector<1x32xf32>
    %64 = tpu.matmul %62, %63, %cst_54 {dimension_numbers = #tpu.dot_dimension_numbers<[1], [0], [0], [1], [0, 0, 1, 1], [], []>} : vector<1x32xf32>, vector<32x32xf32>, vector<1x32xf32> -> vector<1x32xf32>
    %cst_55 = arith.constant 2.560000e+02 : f32
    %65 = vector.broadcast %cst_55 : f32 to vector<1x32xf32>
    %66 = arith.divf %64, %65 : vector<1x32xf32>
    %c0_56 = arith.constant 0 : index
    %c0_57 = arith.constant 0 : index
    %67 = vector.load %arg6[%c0_56, %c0_57] : memref<32x32xf32, #tpu.memory_space<vmem>>, vector<32x32xf32>
    %cst_58 = arith.constant dense<0.000000e+00> : vector<1x32xf32>
    %68 = tpu.matmul %66, %67, %cst_58 {dimension_numbers = #tpu.dot_dimension_numbers<[1], [0], [0], [1], [0, 0, 1, 1], [], []>} : vector<1x32xf32>, vector<32x32xf32>, vector<1x32xf32> -> vector<1x32xf32>
    %69 = vector.broadcast %68 : vector<1x32xf32> to vector<256x32xf32>
    %70 = arith.subf %60, %69 : vector<256x32xf32>
    %71 = arith.mulf %70, %70 : vector<256x32xf32>
    %cst_59 = arith.constant dense<0.000000e+00> : vector<32xf32>
    %72 = vector.multi_reduction <add>, %71, %cst_59 [0] : vector<256x32xf32> to vector<32xf32>
    %73 = vector.shape_cast %72 : vector<32xf32> to vector<1x32xf32>
    %c0_60 = arith.constant 0 : index
    %c0_61 = arith.constant 0 : index
    %74 = vector.load %arg5[%c0_60, %c0_61] : memref<32x32xf32, #tpu.memory_space<vmem>>, vector<32x32xf32>
    %cst_62 = arith.constant dense<0.000000e+00> : vector<1x32xf32>
    %75 = tpu.matmul %73, %74, %cst_62 {dimension_numbers = #tpu.dot_dimension_numbers<[1], [0], [0], [1], [0, 0, 1, 1], [], []>} : vector<1x32xf32>, vector<32x32xf32>, vector<1x32xf32> -> vector<1x32xf32>
    %cst_63 = arith.constant 2.560000e+02 : f32
    %76 = vector.broadcast %cst_63 : f32 to vector<1x32xf32>
    %77 = arith.divf %75, %76 : vector<1x32xf32>
    %cst_64 = arith.constant 9.99999974E-6 : f32
    %78 = vector.broadcast %cst_64 : f32 to vector<1x32xf32>
    %79 = arith.addf %77, %78 : vector<1x32xf32>
    %80 = math.rsqrt %79 : vector<1x32xf32>
    %c0_65 = arith.constant 0 : index
    %c0_66 = arith.constant 0 : index
    %81 = vector.load %arg6[%c0_65, %c0_66] : memref<32x32xf32, #tpu.memory_space<vmem>>, vector<32x32xf32>
    %cst_67 = arith.constant dense<0.000000e+00> : vector<1x32xf32>
    %82 = tpu.matmul %80, %81, %cst_67 {dimension_numbers = #tpu.dot_dimension_numbers<[1], [0], [0], [1], [0, 0, 1, 1], [], []>} : vector<1x32xf32>, vector<32x32xf32>, vector<1x32xf32> -> vector<1x32xf32>
    %83 = vector.broadcast %82 : vector<1x32xf32> to vector<256x32xf32>
    %84 = arith.mulf %70, %83 : vector<256x32xf32>
    %c0_68 = arith.constant 0 : index
    %c0_69 = arith.constant 0 : index
    %85 = vector.load %arg3[%c0_68, %c0_69] : memref<1x32xf32, #tpu.memory_space<vmem>>, vector<1x32xf32>
    %86 = vector.broadcast %85 : vector<1x32xf32> to vector<256x32xf32>
    %87 = arith.mulf %84, %86 : vector<256x32xf32>
    %c0_70 = arith.constant 0 : index
    %c0_71 = arith.constant 0 : index
    %88 = vector.load %arg4[%c0_70, %c0_71] : memref<1x32xf32, #tpu.memory_space<vmem>>, vector<1x32xf32>
    %89 = vector.broadcast %88 : vector<1x32xf32> to vector<256x32xf32>
    %90 = arith.addf %87, %89 : vector<256x32xf32>
    %cst_72 = arith.constant 0.000000e+00 : f32
    %91 = vector.broadcast %cst_72 : f32 to vector<256x32xf32>
    %92 = arith.maximumf %90, %91 : vector<256x32xf32>
    %93 = vector.shape_cast %92 : vector<256x32xf32> to vector<1x16x16x32xf32>
    %94 = arith.truncf %93 : vector<1x16x16x32xf32> to vector<1x16x16x32xbf16>
    %c0_73 = arith.constant 0 : index
    %c0_74 = arith.constant 0 : index
    %c0_75 = arith.constant 0 : index
    %c0_76 = arith.constant 0 : index
    %95 = vector.load %arg7[%c0_73, %c0_74, %c0_75, %c0_76] : memref<1x16x16x32xbf16, #tpu.memory_space<vmem>>, vector<1x16x16x32xbf16>
    tpu.vector_store %arg7[%c0_73, %c0_74, %c0_75, %c0_76], %94 {strides = array<i32>} : memref<1x16x16x32xbf16, #tpu.memory_space<vmem>>, vector<1x16x16x32xbf16>,
    return
  }
  func.func @transform_0(%arg0: i32) -> (i32, i32, i32, i32) {
    %c0_i32 = arith.constant 0 : i32
    %c0_i32_0 = arith.constant 0 : i32
    %c0_i32_1 = arith.constant 0 : i32
    %c0_i32_2 = arith.constant 0 : i32
    return %arg0, %c0_i32, %c0_i32_0, %c0_i32_1 : i32, i32, i32, i32
  }
  func.func @transform_1(%arg0: i32) -> (i32, i32) {
    %c0_i32 = arith.constant 0 : i32
    %c0_i32_0 = arith.constant 0 : i32
    %c0_i32_1 = arith.constant 0 : i32
    return %c0_i32, %c0_i32_0 : i32, i32
  }
  func.func @transform_2(%arg0: i32) -> (i32, i32) {
    %c0_i32 = arith.constant 0 : i32
    %c0_i32_0 = arith.constant 0 : i32
    %c0_i32_1 = arith.constant 0 : i32
    return %c0_i32, %c0_i32_0 : i32, i32
  }
  func.func @transform_3(%arg0: i32) -> (i32, i32) {
    %c0_i32 = arith.constant 0 : i32
    %c0_i32_0 = arith.constant 0 : i32
    %c0_i32_1 = arith.constant 0 : i32
    return %c0_i32, %c0_i32_0 : i32, i32
  }
  func.func @transform_4(%arg0: i32) -> (i32, i32) {
    %c0_i32 = arith.constant 0 : i32
    %c0_i32_0 = arith.constant 0 : i32
    %c0_i32_1 = arith.constant 0 : i32
    return %c0_i32, %c0_i32_0 : i32, i32
  }
  func.func @transform_5(%arg0: i32) -> (i32, i32) {
    %c0_i32 = arith.constant 0 : i32
    %c0_i32_0 = arith.constant 0 : i32
    %c0_i32_1 = arith.constant 0 : i32
    return %c0_i32, %c0_i32_0 : i32, i32
  }
  func.func @transform_6(%arg0: i32) -> (i32, i32, i32, i32) {
    %c0_i32 = arith.constant 0 : i32
    %c0_i32_0 = arith.constant 0 : i32
    %c0_i32_1 = arith.constant 0 : i32
    %c0_i32_2 = arith.constant 0 : i32
    return %arg0, %c0_i32, %c0_i32_0, %c0_i32_1 : i32, i32, i32, i32
  }
}

</mosaic_0001>

<llo_original>
// kernel: tpu_custom_call.1
$region0: #{tpu_custom_call.1}
  #allocation0 [shape = 'u32[]', space=smem, size = 0x4, offset = 0x4, fixed_abs, tag = 'smem constant byte address 0x4 - core index']
  #allocation1 [shape = 'u32[144,128]{1,0:T(1,128)}', space=vmem, size = 0x12000, scoped, tag = 'internal scratch']
  #allocation2 [shape = 'f32[18,32,64]{2,1,0:T(8,128)}', space=vmem, size = 0x48000, scoped, tag = 'scratch operand']
  %s0 = inlined_call_operand.vmem [shape: bf16[2,16,16,64], index: 0, kind: input, shape index: {}]
  %s1 = inlined_call_operand.vmem [shape: bf16[576,32], index: 1, kind: input, shape index: {}]
  %s2 = inlined_call_operand.vmem [shape: f32[1,32], index: 2, kind: input, shape index: {}]
  %s3 = inlined_call_operand.vmem [shape: f32[1,32], index: 3, kind: input, shape index: {}]
  %s4 = inlined_call_operand.vmem [shape: f32[32,32], index: 4, kind: input, shape index: {}]
  %s5 = inlined_call_operand.vmem [shape: f32[32,32], index: 5, kind: input, shape index: {}]
  %s6 = inlined_call_operand.hbm [shape: bf16[2,16,16,32], index: 6, kind: output, shape index: {}]
  %s7 = sld [smem:[#allocation0]]
  $region57: #{tpu_custom_call.1} parent=0
    _
  %s9 = ssub.s32 1, %s7
  %s10 = scalar_select 0, %s9, %s7
  $region1: #{tpu_custom_call.1} parent=0
    #allocation3 [shape = 'u8[131072]{0}', space=vmem, size = 0x20000, scoped, tag = 'output window, operand 0']
    #allocation4 [shape = 's32[2]{0}', space=sflag, size = 0x8, scoped, tag = 'scoped memory for tpu_custom_call.1']
    %11 = vsyncpa [#allocation4], 0
    %s12 = scalar_lea.sflag [#allocation4], 1
    %13 = vsyncpa %s12, 0
    loop: start=0, step=1, limit=4
    $region2: #{tpu_custom_call.1} parent=1 // loop_pre_header
      _
    $region3: #{tpu_custom_call.1} parent=1 // loop_header
      %s15 = sphi 0, %s19
      %p16 = scmp.ge.s32.totalorder %s15, 4
      %s25 = sphi 0, %s27
      %s28 = sphi 0, %s25
      %s29 = sphi 0, %s28
      %s45 = sphi 0, %s29
      %s49 = sphi 0, %s49
      %s51 = sphi 0, %s49
      %s52 = sphi 0, %s51
      %s66 = sphi 0, %s52
      %s70 = sphi 0, %s70
      %s72 = sphi 0, %s70
      %s73 = sphi 0, %s72
      %s87 = sphi 0, %s73
      %s91 = sphi 0, %s91
      %s93 = sphi 0, %s91
      %s94 = sphi 0, %s93
      %s108 = sphi 0, %s94
      %s112 = sphi 0, %s112
      %s114 = sphi 0, %s112
      %s115 = sphi 0, %s114
      %s129 = sphi 0, %s115
      %s133 = sphi 0, %s133
      %s135 = sphi 0, %s133
      %s136 = sphi 0, %s135
      %s150 = sphi 0, %s136
      %s156 = sphi 0, %s158
      %s159 = sphi 0, %s156
      %s160 = sphi 0, %s159
      %s176 = sphi 0, %s160
    $region4: #{tpu_custom_call.1} parent=1 // loop_header_branch
      %18 = sbr.rel (%p16) target = $region8
    $region5: #{tpu_custom_call.1} parent=1 // loop_body
      %s20 = ssub.s32 %s15, 1
      %s21 = ssub.s32 %s15, 2
      %s22 = sadd.s32 %s15, 1
      %s23 = ssub.s32 %s15, %s22
      %p24 = scmp.eq.s32.totalorder %s23, 0
      %s26 = sadd.s32 %s25, 1
      %s27 = scalar_select %p24, %s25, %s26
      %p30 = pneg %p24
      %p31 = scmp.eq.s32.totalorder %s15, 1
      %p32 = por %p30, %p31
      %p33 = scmp.ne.s32.totalorder %s25, %s28
      %p34 = scmp.eq.s32.totalorder %s15, 0
      %p35 = por %p33, %p34
      %p36 = scmp.ne.s32.totalorder %s25, %s28
      %p37 = scmp.eq.s32.totalorder %s20, 1
      %p38 = por %p36, %p37
      %p39 = scmp.ne.s32.totalorder %s28, %s29
      %p40 = scmp.eq.s32.totalorder %s20, 0
      %p41 = por %p39, %p40
      %p42 = scmp.ne.s32.totalorder %s28, %s29
      %p43 = scmp.eq.s32.totalorder %s21, 1
      %p44 = por %p42, %p43
      %p46 = scmp.ne.s32.totalorder %s29, %s45
      %p47 = scmp.eq.s32.totalorder %s21, 0
      %p48 = por %p46, %p47
      %s50 = sadd.s32 %s49, 1
      %p53 = scmp.eq.s32.totalorder %s15, 1
      %p54 = scmp.ne.s32.totalorder %s49, %s51
      %p55 = scmp.eq.s32.totalorder %s15, 0
      %p56 = por %p54, %p55
      %p57 = scmp.ne.s32.totalorder %s49, %s51
      %p58 = scmp.eq.s32.totalorder %s20, 1
      %p59 = por %p57, %p58
      %p60 = scmp.ne.s32.totalorder %s51, %s52
      %p61 = scmp.eq.s32.totalorder %s20, 0
      %p62 = por %p60, %p61
      %p63 = scmp.ne.s32.totalorder %s51, %s52
      %p64 = scmp.eq.s32.totalorder %s21, 1
      %p65 = por %p63, %p64
      %p67 = scmp.ne.s32.totalorder %s52, %s66
      %p68 = scmp.eq.s32.totalorder %s21, 0
      %p69 = por %p67, %p68
      %s71 = sadd.s32 %s70, 1
      %p74 = scmp.eq.s32.totalorder %s15, 1
      %p75 = scmp.ne.s32.totalorder %s70, %s72
      %p76 = scmp.eq.s32.totalorder %s15, 0
      %p77 = por %p75, %p76
      %p78 = scmp.ne.s32.totalorder %s70, %s72
      %p79 = scmp.eq.s32.totalorder %s20, 1
      %p80 = por %p78, %p79
      %p81 = scmp.ne.s32.totalorder %s72, %s73
      %p82 = scmp.eq.s32.totalorder %s20, 0
      %p83 = por %p81, %p82
      %p84 = scmp.ne.s32.totalorder %s72, %s73
      %p85 = scmp.eq.s32.totalorder %s21, 1
      %p86 = por %p84, %p85
      %p88 = scmp.ne.s32.totalorder %s73, %s87
      %p89 = scmp.eq.s32.totalorder %s21, 0
      %p90 = por %p88, %p89
      %s92 = sadd.s32 %s91, 1
      %p95 = scmp.eq.s32.totalorder %s15, 1
      %p96 = scmp.ne.s32.totalorder %s91, %s93
      %p97 = scmp.eq.s32.totalorder %s15, 0
      %p98 = por %p96, %p97
      %p99 = scmp.ne.s32.totalorder %s91, %s93
      %p100 = scmp.eq.s32.totalorder %s20, 1
      %p101 = por %p99, %p100
      %p102 = scmp.ne.s32.totalorder %s93, %s94
      %p103 = scmp.eq.s32.totalorder %s20, 0
      %p104 = por %p102, %p103
      %p105 = scmp.ne.s32.totalorder %s93, %s94
      %p106 = scmp.eq.s32.totalorder %s21, 1
      %p107 = por %p105, %p106
      %p109 = scmp.ne.s32.totalorder %s94, %s108
      %p110 = scmp.eq.s32.totalorder %s21, 0
      %p111 = por %p109, %p110
      %s113 = sadd.s32 %s112, 1
      %p116 = scmp.eq.s32.totalorder %s15, 1
      %p117 = scmp.ne.s32.totalorder %s112, %s114
      %p118 = scmp.eq.s32.totalorder %s15, 0
      %p119 = por %p117, %p118
      %p120 = scmp.ne.s32.totalorder %s112, %s114
      %p121 = scmp.eq.s32.totalorder %s20, 1
      %p122 = por %p120, %p121
      %p123 = scmp.ne.s32.totalorder %s114, %s115
      %p124 = scmp.eq.s32.totalorder %s20, 0
      %p125 = por %p123, %p124
      %p126 = scmp.ne.s32.totalorder %s114, %s115
      %p127 = scmp.eq.s32.totalorder %s21, 1
      %p128 = por %p126, %p127
      %p130 = scmp.ne.s32.totalorder %s115, %s129
      %p131 = scmp.eq.s32.totalorder %s21, 0
      %p132 = por %p130, %p131
      %s134 = sadd.s32 %s133, 1
      %p137 = scmp.eq.s32.totalorder %s15, 1
      %p138 = scmp.ne.s32.totalorder %s133, %s135
      %p139 = scmp.eq.s32.totalorder %s15, 0
      %p140 = por %p138, %p139
      %p141 = scmp.ne.s32.totalorder %s133, %s135
      %p142 = scmp.eq.s32.totalorder %s20, 1
      %p143 = por %p141, %p142
      %p144 = scmp.ne.s32.totalorder %s135, %s136
      %p145 = scmp.eq.s32.totalorder %s20, 0
      %p146 = por %p144, %p145
      %p147 = scmp.ne.s32.totalorder %s135, %s136
      %p148 = scmp.eq.s32.totalorder %s21, 1
      %p149 = por %p147, %p148
      %p151 = scmp.ne.s32.totalorder %s136, %s150
      %p152 = scmp.eq.s32.totalorder %s21, 0
      %p153 = por %p151, %p152
      %s154 = ssub.s32 %s15, %s22
      %p155 = scmp.eq.s32.totalorder %s154, 0
      %s157 = sadd.s32 %s156, 1
      %s158 = scalar_select %p155, %s156, %s157
      %p161 = pneg %p155
      %p162 = scmp.eq.s32.totalorder %s15, 1
      %p163 = por %p161, %p162
      %p164 = scmp.ne.s32.totalorder %s156, %s159
      %p165 = scmp.eq.s32.totalorder %s15, 0
      %p166 = por %p164, %p165
      %p167 = scmp.ne.s32.totalorder %s156, %s159
      %p168 = scmp.eq.s32.totalorder %s20, 1
      %p169 = por %p167, %p168
      %p170 = scmp.ne.s32.totalorder %s159, %s160
      %p171 = scmp.eq.s32.totalorder %s20, 0
      %p172 = por %p170, %p171
      %p173 = scmp.ne.s32.totalorder %s159, %s160
      %p174 = scmp.eq.s32.totalorder %s21, 1
      %p175 = por %p173, %p174
      %p177 = scmp.ne.s32.totalorder %s160, %s176
      %p178 = scmp.eq.s32.totalorder %s21, 0
      %p179 = por %p177, %p178
      %p180 = scmp.le.s32.totalorder 1, %s15
      %p181 = scmp.lt.s32.totalorder %s15, 3
      %p182 = pnand %p180, %p181
      %p183 = pneg %p182
      // Predicated region
      $region9: #{tpu_custom_call.1} parent=5 // pred_check
        _
      $region10: #{tpu_custom_call.1} parent=5 // pred_check_branch
        %185 = sbr.rel (%p182) target = $region12
      $region11: #{tpu_custom_call.1} parent=5 // pred_region
        %s186 = ssub.s32 %s15, 1
        // Predicated region
        $region13: #{tpu_custom_call.1} parent=11 // pred_check
          %p187 = pneg %p62
        $region14: #{tpu_custom_call.1} parent=11 // pred_check_branch
          %189 = sbr.rel (%p187) target = $region16
        $region15: #{tpu_custom_call.1} parent=11 // pred_region
          _
        $region16: #{tpu_custom_call.1} parent=11 // pred_fallthru
          _
        // Predicated region
        $region17: #{tpu_custom_call.1} parent=11 // pred_check
          %p190 = pneg %p83
        $region18: #{tpu_custom_call.1} parent=11 // pred_check_branch
          %192 = sbr.rel (%p190) target = $region20
        $region19: #{tpu_custom_call.1} parent=11 // pred_region
          _
        $region20: #{tpu_custom_call.1} parent=11 // pred_fallthru
          _
        // Predicated region
        $region21: #{tpu_custom_call.1} parent=11 // pred_check
          %p193 = pneg %p104
        $region22: #{tpu_custom_call.1} parent=11 // pred_check_branch
          %195 = sbr.rel (%p193) target = $region24
        $region23: #{tpu_custom_call.1} parent=11 // pred_region
          _
        $region24: #{tpu_custom_call.1} parent=11 // pred_fallthru
          _
        // Predicated region
        $region25: #{tpu_custom_call.1} parent=11 // pred_check
          %p196 = pneg %p125
        $region26: #{tpu_custom_call.1} parent=11 // pred_check_branch
          %198 = sbr.rel (%p196) target = $region28
        $region27: #{tpu_custom_call.1} parent=11 // pred_region
          _
        $region28: #{tpu_custom_call.1} parent=11 // pred_fallthru
          _
        // Predicated region
        $region29: #{tpu_custom_call.1} parent=11 // pred_check
          %p199 = pneg %p146
        $region30: #{tpu_custom_call.1} parent=11 // pred_check_branch
          %201 = sbr.rel (%p199) target = $region32
        $region31: #{tpu_custom_call.1} parent=11 // pred_region
          _
        $region32: #{tpu_custom_call.1} parent=11 // pred_fallthru
          _
      $region12: #{tpu_custom_call.1} parent=5 // pred_fallthru
        _
      %p202 = scmp.lt.s32.totalorder %s15, 2
      // Predicated region
      $region33: #{tpu_custom_call.1} parent=5 // pred_check
        %p203 = pneg %p202
      $region34: #{tpu_custom_call.1} parent=5 // pred_check_branch
        %205 = sbr.rel (%p203) target = $region36
      $region35: #{tpu_custom_call.1} parent=5 // pred_region
        // Predicated region
        $region37: #{tpu_custom_call.1} parent=35 // pred_check
          %p206 = pneg %p35
        $region38: #{tpu_custom_call.1} parent=35 // pred_check_branch
          %208 = sbr.rel (%p206) target = $region40
        $region39: #{tpu_custom_call.1} parent=35 // pred_region
          %p209 = scmp.lt.s32.totalorder %s15, 1
          %s210 = scalar_select %p209, %s15, 1
          %s211 = smul.addr %s210, 32
          %s212 = smul.addr %s211, 4
          %s213 = scalar_lea.vmem %s0, %s212
        $region40: #{tpu_custom_call.1} parent=35 // pred_fallthru
          _
      $region36: #{tpu_custom_call.1} parent=5 // pred_fallthru
        _
      %p214 = scmp.le.s32.totalorder 1, %s15
      %p215 = scmp.lt.s32.totalorder %s15, 3
      %p216 = pnand %p214, %p215
      %p217 = pneg %p216
      // Predicated region
      $region41: #{tpu_custom_call.1} parent=5 // pred_check
        _
      $region42: #{tpu_custom_call.1} parent=5 // pred_check_branch
        %219 = sbr.rel (%p216) target = $region44
      $region43: #{tpu_custom_call.1} parent=5 // pred_region
        %s220 = ssub.s32 %s15, 1
        %p221 = scmp.lt.s32.totalorder %s20, 1
        %s222 = scalar_select %p221, %s20, 1
        %s223 = smul.addr %s222, 32
        %s224 = smul.addr %s223, 4
        %s225 = scalar_lea.vmem %s0, %s224
        %p226 = pneg %p41
        %p227 = pneg %p38
        %p228 = pneg %p62
        %p229 = pneg %p59
        %p230 = pneg %p83
        %p231 = pneg %p80
        %p232 = pneg %p104
        %p233 = pneg %p101
        %p234 = pneg %p125
        %p235 = pneg %p122
        %p236 = pneg %p146
        %p237 = pneg %p143
        %p238 = pneg %p172
        %p239 = pneg %p169
        %s240 = sand.u32 %s159, 1
        %s241 = scalar_lea.sflag [#allocation4], %s240
        %s242 = sand.u32 %s159, 1
        %s243 = smul.addr %s242, 128
        %s244 = scalar_lea.vmem [#allocation3], %s243
        %p245 = scmp.lt.s32.totalorder %s20, 1
        %s246 = scalar_select %p245, %s20, 1
        %s247 = smul.addr %s246, 32
        %s248 = smul.addr %s247, 4
        %s249 = scalar_lea.vmem %s0, %s248
        %vm251 = vcmask 523264
        %252 = vst.msk [vmem:[#allocation2] sm:$0xff] %vm251, 0.0
        %253 = vst.msk [vmem:[#allocation2 + $0x8] sm:$0xff] %vm251, 0.0
        %254 = vst.msk [vmem:[#allocation2 + $0x10] sm:$0xff] %vm251, 0.0
        %255 = vst.msk [vmem:[#allocation2 + $0x18] sm:$0xff] %vm251, 0.0
        %256 = vst.msk [vmem:[#allocation2 + $0x20] sm:$0xff] %vm251, 0.0
        %257 = vst.msk [vmem:[#allocation2 + $0x28] sm:$0xff] %vm251, 0.0
        %258 = vst.msk [vmem:[#allocation2 + $0x30] sm:$0xff] %vm251, 0.0
        %259 = vst.msk [vmem:[#allocation2 + $0x38] sm:$0xff] %vm251, 0.0
        %260 = vst.msk [vmem:[#allocation2 + $0x40] sm:$0xff] %vm251, 0.0
        %261 = vst.msk [vmem:[#allocation2 + $0x48] sm:$0xff] %vm251, 0.0
        %262 = vst.msk [vmem:[#allocation2 + $0x50] sm:$0xff] %vm251, 0.0
        %263 = vst.msk [vmem:[#allocation2 + $0x58] sm:$0xff] %vm251, 0.0
        %264 = vst.msk [vmem:[#allocation2 + $0x60] sm:$0xff] %vm251, 0.0
        %265 = vst.msk [vmem:[#allocation2 + $0x68] sm:$0xff] %vm251, 0.0
        %266 = vst.msk [vmem:[#allocation2 + $0x70] sm:$0xff] %vm251, 0.0
        %267 = vst.msk [vmem:[#allocation2 + $0x78] sm:$0xff] %vm251, 0.0
        %268 = vst.msk [vmem:[#allocation2 + $0x80] sm:$0xff] %vm251, 0.0
        %269 = vst.msk [vmem:[#allocation2 + $0x88] sm:$0xff] %vm251, 0.0
        %270 = vst.msk [vmem:[#allocation2 + $0x90] sm:$0xff] %vm251, 0.0
        %271 = vst.msk [vmem:[#allocation2 + $0x98] sm:$0xff] %vm251, 0.0
        %272 = vst.msk [vmem:[#allocation2 + $0xa0] sm:$0xff] %vm251, 0.0
        %273 = vst.msk [vmem:[#allocation2 + $0xa8] sm:$0xff] %vm251, 0.0
        %274 = vst.msk [vmem:[#allocation2 + $0xb0] sm:$0xff] %vm251, 0.0
        %275 = vst.msk [vmem:[#allocation2 + $0xb8] sm:$0xff] %vm251, 0.0
        %276 = vst.msk [vmem:[#allocation2 + $0xc0] sm:$0xff] %vm251, 0.0
        %277 = vst.msk [vmem:[#allocation2 + $0xc8] sm:$0xff] %vm251, 0.0
        %278 = vst.msk [vmem:[#allocation2 + $0xd0] sm:$0xff] %vm251, 0.0
        %279 = vst.msk [vmem:[#allocation2 + $0xd8] sm:$0xff] %vm251, 0.0
        %280 = vst.msk [vmem:[#allocation2 + $0xe0] sm:$0xff] %vm251, 0.0
        %281 = vst.msk [vmem:[#allocation2 + $0xe8] sm:$0xff] %vm251, 0.0
        %282 = vst.msk [vmem:[#allocation2 + $0xf0] sm:$0xff] %vm251, 0.0
        %283 = vst.msk [vmem:[#allocation2 + $0xf8] sm:$0xff] %vm251, 0.0
        %284 = vst.msk [vmem:[#allocation2 + $0x100] sm:$0xff] %vm251, 0.0
        %285 = vst.msk [vmem:[#allocation2 + $0x108] sm:$0xff] %vm251, 0.0
        %286 = vst.msk [vmem:[#allocation2 + $0x110] sm:$0xff] %vm251, 0.0
        %287 = vst.msk [vmem:[#allocation2 + $0x118] sm:$0xff] %vm251, 0.0
        %288 = vst.msk [vmem:[#allocation2 + $0x120] sm:$0xff] %vm251, 0.0
        %289 = vst.msk [vmem:[#allocation2 + $0x128] sm:$0xff] %vm251, 0.0
        %290 = vst.msk [vmem:[#allocation2 + $0x130] sm:$0xff] %vm251, 0.0
        %291 = vst.msk [vmem:[#allocation2 + $0x138] sm:$0xff] %vm251, 0.0
        %292 = vst.msk [vmem:[#allocation2 + $0x140] sm:$0xff] %vm251, 0.0
        %293 = vst.msk [vmem:[#allocation2 + $0x148] sm:$0xff] %vm251, 0.0
        %294 = vst.msk [vmem:[#allocation2 + $0x150] sm:$0xff] %vm251, 0.0
        %295 = vst.msk [vmem:[#allocation2 + $0x158] sm:$0xff] %vm251, 0.0
        %296 = vst.msk [vmem:[#allocation2 + $0x160] sm:$0xff] %vm251, 0.0
        %297 = vst.msk [vmem:[#allocation2 + $0x168] sm:$0xff] %vm251, 0.0
        %298 = vst.msk [vmem:[#allocation2 + $0x170] sm:$0xff] %vm251, 0.0
        %299 = vst.msk [vmem:[#allocation2 + $0x178] sm:$0xff] %vm251, 0.0
        %300 = vst.msk [vmem:[#allocation2 + $0x180] sm:$0xff] %vm251, 0.0
        %301 = vst.msk [vmem:[#allocation2 + $0x188] sm:$0xff] %vm251, 0.0
        %302 = vst.msk [vmem:[#allocation2 + $0x190] sm:$0xff] %vm251, 0.0
        %303 = vst.msk [vmem:[#allocation2 + $0x198] sm:$0xff] %vm251, 0.0
        %304 = vst.msk [vmem:[#allocation2 + $0x1a0] sm:$0xff] %vm251, 0.0
        %305 = vst.msk [vmem:[#allocation2 + $0x1a8] sm:$0xff] %vm251, 0.0
        %306 = vst.msk [vmem:[#allocation2 + $0x1b0] sm:$0xff] %vm251, 0.0
        %307 = vst.msk [vmem:[#allocation2 + $0x1b8] sm:$0xff] %vm251, 0.0
        %308 = vst.msk [vmem:[#allocation2 + $0x1c0] sm:$0xff] %vm251, 0.0
        %309 = vst.msk [vmem:[#allocation2 + $0x1c8] sm:$0xff] %vm251, 0.0
        %310 = vst.msk [vmem:[#allocation2 + $0x1d0] sm:$0xff] %vm251, 0.0
        %311 = vst.msk [vmem:[#allocation2 + $0x1d8] sm:$0xff] %vm251, 0.0
        %312 = vst.msk [vmem:[#allocation2 + $0x1e0] sm:$0xff] %vm251, 0.0
        %313 = vst.msk [vmem:[#allocation2 + $0x1e8] sm:$0xff] %vm251, 0.0
        %314 = vst.msk [vmem:[#allocation2 + $0x1f0] sm:$0xff] %vm251, 0.0
        %315 = vst.msk [vmem:[#allocation2 + $0x1f8] sm:$0xff] %vm251, 0.0
        %316 = vst.msk [vmem:[#allocation2 + $0x200] sm:$0xff] %vm251, 0.0
        %317 = vst.msk [vmem:[#allocation2 + $0x208] sm:$0xff] %vm251, 0.0
        %318 = vst.msk [vmem:[#allocation2 + $0x210] sm:$0xff] %vm251, 0.0
        %319 = vst.msk [vmem:[#allocation2 + $0x218] sm:$0xff] %vm251, 0.0
        %320 = vst.msk [vmem:[#allocation2 + $0x220] sm:$0xff] %vm251, 0.0
        %321 = vst.msk [vmem:[#allocation2 + $0x228] sm:$0xff] %vm251, 0.0
        %322 = vst.msk [vmem:[#allocation2 + $0x230] sm:$0xff] %vm251, 0.0
        %323 = vst.msk [vmem:[#allocation2 + $0x238] sm:$0xff] %vm251, 0.0
        %v324 = vld [vmem:[%s249] sm:$0xf]
        %v325 = vld [vmem:[%s249 + $0x4] sm:$0xf]
        %v326 = vld [vmem:[%s249 + $0x8] sm:$0xf]
        %v327 = vld [vmem:[%s249 + $0xc] sm:$0xf]
        %v328 = vld [vmem:[%s249 + $0x10] sm:$0xf]
        %v329 = vld [vmem:[%s249 + $0x14] sm:$0xf]
        %v330 = vld [vmem:[%s249 + $0x18] sm:$0xf]
        %v331 = vld [vmem:[%s249 + $0x1c] sm:$0xf]
        %v332 = vld [vmem:[%s249 + $0x20] sm:$0xf]
        %v333 = vld [vmem:[%s249 + $0x24] sm:$0xf]
        %v334 = vld [vmem:[%s249 + $0x28] sm:$0xf]
        %v335 = vld [vmem:[%s249 + $0x2c] sm:$0xf]
        %v336 = vld [vmem:[%s249 + $0x30] sm:$0xf]
        %v337 = vld [vmem:[%s249 + $0x34] sm:$0xf]
        %v338 = vld [vmem:[%s249 + $0x38] sm:$0xf]
        %v339 = vld [vmem:[%s249 + $0x3c] sm:$0xf]
        %v340 = vld [vmem:[%s249 + $0x40] sm:$0xf]
        %v341 = vld [vmem:[%s249 + $0x44] sm:$0xf]
        %v342 = vld [vmem:[%s249 + $0x48] sm:$0xf]
        %v343 = vld [vmem:[%s249 + $0x4c] sm:$0xf]
        %v344 = vld [vmem:[%s249 + $0x50] sm:$0xf]
        %v345 = vld [vmem:[%s249 + $0x54] sm:$0xf]
        %v346 = vld [vmem:[%s249 + $0x58] sm:$0xf]
        %v347 = vld [vmem:[%s249 + $0x5c] sm:$0xf]
        %v348 = vld [vmem:[%s249 + $0x60] sm:$0xf]
        %v349 = vld [vmem:[%s249 + $0x64] sm:$0xf]
        %v350 = vld [vmem:[%s249 + $0x68] sm:$0xf]
        %v351 = vld [vmem:[%s249 + $0x6c] sm:$0xf]
        %v352 = vld [vmem:[%s249 + $0x70] sm:$0xf]
        %v353 = vld [vmem:[%s249 + $0x74] sm:$0xf]
        %v354 = vld [vmem:[%s249 + $0x78] sm:$0xf]
        %v355 = vld [vmem:[%s249 + $0x7c] sm:$0xf]
        %v356 = vunpack.c.l.bf16 %v324
        %v357 = vunpack.c.l.bf16 %v325
        %v358 = vunpack.c.l.bf16 %v326
        %v359 = vunpack.c.l.bf16 %v327
        %v360 = vunpack.c.l.bf16 %v328
        %v361 = vunpack.c.l.bf16 %v329
        %v362 = vunpack.c.l.bf16 %v330
        %v363 = vunpack.c.l.bf16 %v331
        %v364 = vunpack.c.l.bf16 %v332
        %v365 = vunpack.c.l.bf16 %v333
        %v366 = vunpack.c.l.bf16 %v334
        %v367 = vunpack.c.l.bf16 %v335
        %v368 = vunpack.c.l.bf16 %v336
        %v369 = vunpack.c.l.bf16 %v337
        %v370 = vunpack.c.l.bf16 %v338
        %v371 = vunpack.c.l.bf16 %v339
        %v372 = vunpack.c.l.bf16 %v340
        %v373 = vunpack.c.l.bf16 %v341
        %v374 = vunpack.c.l.bf16 %v342
        %v375 = vunpack.c.l.bf16 %v343
        %v376 = vunpack.c.l.bf16 %v344
        %v377 = vunpack.c.l.bf16 %v345
        %v378 = vunpack.c.l.bf16 %v346
        %v379 = vunpack.c.l.bf16 %v347
        %v380 = vunpack.c.l.bf16 %v348
        %v381 = vunpack.c.l.bf16 %v349
        %v382 = vunpack.c.l.bf16 %v350
        %v383 = vunpack.c.l.bf16 %v351
        %v384 = vunpack.c.l.bf16 %v352
        %v385 = vunpack.c.l.bf16 %v353
        %v386 = vunpack.c.l.bf16 %v354
        %v387 = vunpack.c.l.bf16 %v355
        %s388 = scalar_lea.vmem [#allocation2], 32
        %389 = vst.msk [vmem:[%s388 + $0x8] sm:$0xff] %vm251, %v356
        %390 = vst.msk [vmem:[%s388 + $0x10] sm:$0xff] %vm251, %v357
        %391 = vst.msk [vmem:[%s388 + $0x28] sm:$0xff] %vm251, %v358
        %392 = vst.msk [vmem:[%s388 + $0x30] sm:$0xff] %vm251, %v359
        %393 = vst.msk [vmem:[%s388 + $0x48] sm:$0xff] %vm251, %v360
        %394 = vst.msk [vmem:[%s388 + $0x50] sm:$0xff] %vm251, %v361
        %395 = vst.msk [vmem:[%s388 + $0x68] sm:$0xff] %vm251, %v362
        %396 = vst.msk [vmem:[%s388 + $0x70] sm:$0xff] %vm251, %v363
        %397 = vst.msk [vmem:[%s388 + $0x88] sm:$0xff] %vm251, %v364
        %398 = vst.msk [vmem:[%s388 + $0x90] sm:$0xff] %vm251, %v365
        %399 = vst.msk [vmem:[%s388 + $0xa8] sm:$0xff] %vm251, %v366
        %400 = vst.msk [vmem:[%s388 + $0xb0] sm:$0xff] %vm251, %v367
        %401 = vst.msk [vmem:[%s388 + $0xc8] sm:$0xff] %vm251, %v368
        %402 = vst.msk [vmem:[%s388 + $0xd0] sm:$0xff] %vm251, %v369
        %403 = vst.msk [vmem:[%s388 + $0xe8] sm:$0xff] %vm251, %v370
        %404 = vst.msk [vmem:[%s388 + $0xf0] sm:$0xff] %vm251, %v371
        %405 = vst.msk [vmem:[%s388 + $0x108] sm:$0xff] %vm251, %v372
        %406 = vst.msk [vmem:[%s388 + $0x110] sm:$0xff] %vm251, %v373
        %407 = vst.msk [vmem:[%s388 + $0x128] sm:$0xff] %vm251, %v374
        %408 = vst.msk [vmem:[%s388 + $0x130] sm:$0xff] %vm251, %v375
        %409 = vst.msk [vmem:[%s388 + $0x148] sm:$0xff] %vm251, %v376
        %410 = vst.msk [vmem:[%s388 + $0x150] sm:$0xff] %vm251, %v377
        %411 = vst.msk [vmem:[%s388 + $0x168] sm:$0xff] %vm251, %v378
        %412 = vst.msk [vmem:[%s388 + $0x170] sm:$0xff] %vm251, %v379
        %413 = vst.msk [vmem:[%s388 + $0x188] sm:$0xff] %vm251, %v380
        %414 = vst.msk [vmem:[%s388 + $0x190] sm:$0xff] %vm251, %v381
        %415 = vst.msk [vmem:[%s388 + $0x1a8] sm:$0xff] %vm251, %v382
        %416 = vst.msk [vmem:[%s388 + $0x1b0] sm:$0xff] %vm251, %v383
        %417 = vst.msk [vmem:[%s388 + $0x1c8] sm:$0xff] %vm251, %v384
        %418 = vst.msk [vmem:[%s388 + $0x1d0] sm:$0xff] %vm251, %v385
        %419 = vst.msk [vmem:[%s388 + $0x1e8] sm:$0xff] %vm251, %v386
        %420 = vst.msk [vmem:[%s388 + $0x1f0] sm:$0xff] %vm251, %v387
        %v421 = vld [vmem:[#allocation2 + $0x7] sm:$0xff]
        %v422 = vld [vmem:[#allocation2 + $0xf] sm:$0xff]
        %v423 = vld [vmem:[#allocation2 + $0x27] sm:$0xff]
        %v424 = vld [vmem:[#allocation2 + $0x2f] sm:$0xff]
        %v425 = vld [vmem:[#allocation2 + $0x47] sm:$0xff]
        %v426 = vld [vmem:[#allocation2 + $0x4f] sm:$0xff]
        %v427 = vld [vmem:[#allocation2 + $0x67] sm:$0xff]
        %v428 = vld [vmem:[#allocation2 + $0x6f] sm:$0xff]
        %v429 = vld [vmem:[#allocation2 + $0x87] sm:$0xff]
        %v430 = vld [vmem:[#allocation2 + $0x8f] sm:$0xff]
        %v431 = vld [vmem:[#allocation2 + $0xa7] sm:$0xff]
        %v432 = vld [vmem:[#allocation2 + $0xaf] sm:$0xff]
        %v433 = vld [vmem:[#allocation2 + $0xc7] sm:$0xff]
        %v434 = vld [vmem:[#allocation2 + $0xcf] sm:$0xff]
        %v435 = vld [vmem:[#allocation2 + $0xe7] sm:$0xff]
        %v436 = vld [vmem:[#allocation2 + $0xef] sm:$0xff]
        %v437 = vld [vmem:[#allocation2 + $0x107] sm:$0xff]
        %v438 = vld [vmem:[#allocation2 + $0x10f] sm:$0xff]
        %v439 = vld [vmem:[#allocation2 + $0x127] sm:$0xff]
        %v440 = vld [vmem:[#allocation2 + $0x12f] sm:$0xff]
        %v441 = vld [vmem:[#allocation2 + $0x147] sm:$0xff]
        %v442 = vld [vmem:[#allocation2 + $0x14f] sm:$0xff]
        %v443 = vld [vmem:[#allocation2 + $0x167] sm:$0xff]
        %v444 = vld [vmem:[#allocation2 + $0x16f] sm:$0xff]
        %v445 = vld [vmem:[#allocation2 + $0x187] sm:$0xff]
        %v446 = vld [vmem:[#allocation2 + $0x18f] sm:$0xff]
        %v447 = vld [vmem:[#allocation2 + $0x1a7] sm:$0xff]
        %v448 = vld [vmem:[#allocation2 + $0x1af] sm:$0xff]
        %v449 = vld [vmem:[#allocation2 + $0x1c7] sm:$0xff]
        %v450 = vld [vmem:[#allocation2 + $0x1cf] sm:$0xff]
        %v451 = vld [vmem:[#allocation2 + $0x1e7] sm:$0xff]
        %v452 = vld [vmem:[#allocation2 + $0x1ef] sm:$0xff]
        %v453 = vpack.c.bf16 %v422, %v421
        %v454 = vpack.c.bf16 %v424, %v423
        %v455 = vpack.c.bf16 %v426, %v425
        %v456 = vpack.c.bf16 %v428, %v427
        %v457 = vpack.c.bf16 %v430, %v429
        %v458 = vpack.c.bf16 %v432, %v431
        %v459 = vpack.c.bf16 %v434, %v433
        %v460 = vpack.c.bf16 %v436, %v435
        %v461 = vpack.c.bf16 %v438, %v437
        %v462 = vpack.c.bf16 %v440, %v439
        %v463 = vpack.c.bf16 %v442, %v441
        %v464 = vpack.c.bf16 %v444, %v443
        %v465 = vpack.c.bf16 %v446, %v445
        %v466 = vpack.c.bf16 %v448, %v447
        %v467 = vpack.c.bf16 %v450, %v449
        %v468 = vpack.c.bf16 %v452, %v451
        %v469 = vld [vmem:[%s1] sm:$0xf]
        %v470 = vld [vmem:[%s1 + $0x4] sm:$0xf]
        %v471 = vld [vmem:[%s1 + $0x8] sm:$0xf]
        %v472 = vld [vmem:[%s1 + $0xc] sm:$0xf]
        %v473 = vld [vmem:[%s1 + $0x10] sm:$0xf]
        %v474 = vld [vmem:[%s1 + $0x14] sm:$0xf]
        %v475 = vld [vmem:[%s1 + $0x18] sm:$0xf]
        %v476 = vld [vmem:[%s1 + $0x1c] sm:$0xf]
        %v477 = vld [vmem:[#allocation2 + $0x8] sm:$0xff]
        %v478 = vld [vmem:[#allocation2 + $0x10] sm:$0xff]
        %v479 = vld [vmem:[#allocation2 + $0x28] sm:$0xff]
        %v480 = vld [vmem:[#allocation2 + $0x30] sm:$0xff]
        %v481 = vld [vmem:[#allocation2 + $0x48] sm:$0xff]
        %v482 = vld [vmem:[#allocation2 + $0x50] sm:$0xff]
        %v483 = vld [vmem:[#allocation2 + $0x68] sm:$0xff]
        %v484 = vld [vmem:[#allocation2 + $0x70] sm:$0xff]
        %v485 = vld [vmem:[#allocation2 + $0x88] sm:$0xff]
        %v486 = vld [vmem:[#allocation2 + $0x90] sm:$0xff]
        %v487 = vld [vmem:[#allocation2 + $0xa8] sm:$0xff]
        %v488 = vld [vmem:[#allocation2 + $0xb0] sm:$0xff]
        %v489 = vld [vmem:[#allocation2 + $0xc8] sm:$0xff]
        %v490 = vld [vmem:[#allocation2 + $0xd0] sm:$0xff]
        %v491 = vld [vmem:[#allocation2 + $0xe8] sm:$0xff]
        %v492 = vld [vmem:[#allocation2 + $0xf0] sm:$0xff]
        %v493 = vld [vmem:[#allocation2 + $0x108] sm:$0xff]
        %v494 = vld [vmem:[#allocation2 + $0x110] sm:$0xff]
        %v495 = vld [vmem:[#allocation2 + $0x128] sm:$0xff]
        %v496 = vld [vmem:[#allocation2 + $0x130] sm:$0xff]
        %v497 = vld [vmem:[#allocation2 + $0x148] sm:$0xff]
        %v498 = vld [vmem:[#allocation2 + $0x150] sm:$0xff]
        %v499 = vld [vmem:[#allocation2 + $0x168] sm:$0xff]
        %v500 = vld [vmem:[#allocation2 + $0x170] sm:$0xff]
        %v501 = vld [vmem:[#allocation2 + $0x188] sm:$0xff]
        %v502 = vld [vmem:[#allocation2 + $0x190] sm:$0xff]
        %v503 = vld [vmem:[#allocation2 + $0x1a8] sm:$0xff]
        %v504 = vld [vmem:[#allocation2 + $0x1b0] sm:$0xff]
        %v505 = vld [vmem:[#allocation2 + $0x1c8] sm:$0xff]
        %v506 = vld [vmem:[#allocation2 + $0x1d0] sm:$0xff]
        %v507 = vld [vmem:[#allocation2 + $0x1e8] sm:$0xff]
        %v508 = vld [vmem:[#allocation2 + $0x1f0] sm:$0xff]
        %v509 = vpack.c.bf16 %v478, %v477
        %v510 = vpack.c.bf16 %v480, %v479
        %v511 = vpack.c.bf16 %v482, %v481
        %v512 = vpack.c.bf16 %v484, %v483
        %v513 = vpack.c.bf16 %v486, %v485
        %v514 = vpack.c.bf16 %v488, %v487
        %v515 = vpack.c.bf16 %v490, %v489
        %v516 = vpack.c.bf16 %v492, %v491
        %v517 = vpack.c.bf16 %v494, %v493
        %v518 = vpack.c.bf16 %v496, %v495
        %v519 = vpack.c.bf16 %v498, %v497
        %v520 = vpack.c.bf16 %v500, %v499
        %v521 = vpack.c.bf16 %v502, %v501
        %v522 = vpack.c.bf16 %v504, %v503
        %v523 = vpack.c.bf16 %v506, %v505
        %v524 = vpack.c.bf16 %v508, %v507
        %v525 = vld [vmem:[%s1 + $0x20] sm:$0xf]
        %v526 = vld [vmem:[%s1 + $0x24] sm:$0xf]
        %v527 = vld [vmem:[%s1 + $0x28] sm:$0xf]
        %v528 = vld [vmem:[%s1 + $0x2c] sm:$0xf]
        %v529 = vld [vmem:[%s1 + $0x30] sm:$0xf]
        %v530 = vld [vmem:[%s1 + $0x34] sm:$0xf]
        %v531 = vld [vmem:[%s1 + $0x38] sm:$0xf]
        %v532 = vld [vmem:[%s1 + $0x3c] sm:$0xf]
        %v541 = vunpack.c.l.b16 %v525
        %v542 = vunpack.c.l.b16 %v526
        %v543 = vunpack.c.l.b16 %v527
        %v544 = vunpack.c.l.b16 %v528
        %v545 = vunpack.c.l.b16 %v529
        %v546 = vunpack.c.l.b16 %v530
        %v547 = vunpack.c.l.b16 %v531
        %v548 = vunpack.c.l.b16 %v532
        %v549 = vpack.c.b16 %v542, %v541
        %v550 = vpack.c.b16 %v544, %v543
        %v551 = vpack.c.b16 %v546, %v545
        %v552 = vpack.c.b16 %v548, %v547
        %v558 = vsel %vm251, %v509, 0
        %v561 = vsel %vm251, %v510, 0
        %v564 = vsel %vm251, %v511, 0
        %v567 = vsel %vm251, %v512, 0
        %v570 = vsel %vm251, %v513, 0
        %v573 = vsel %vm251, %v514, 0
        %v576 = vsel %vm251, %v515, 0
        %v579 = vsel %vm251, %v516, 0
        %v582 = vsel %vm251, %v517, 0
        %v585 = vsel %vm251, %v518, 0
        %v588 = vsel %vm251, %v519, 0
        %v591 = vsel %vm251, %v520, 0
        %v594 = vsel %vm251, %v521, 0
        %v597 = vsel %vm251, %v522, 0
        %v600 = vsel %vm251, %v523, 0
        %v603 = vsel %vm251, %v524, 0
        %605 = vmatprep.subr.bf16.mxu0 0
        %606 = vmatpush1.bf16.msra.mxu0 %v549
        %607 = vmatprep.subr.bf16.mxu0 0
        %608 = vmatpush1.bf16.msra.mxu0 %v550
        %609 = vmatprep.subr.bf16.mxu0 0
        %610 = vmatpush1.bf16.msra.mxu0 %v551
        %611 = vmatprep.subr.bf16.mxu0 0
        %612 = vmatpush1.bf16.msra.mxu0 %v552
        %613 = vmatprep.subr.bf16.mxu0 0
        %614 = vmatpush1.bf16.msra.mxu0 0
        %615 = vmatprep.subr.bf16.mxu0 0
        %616 = vmatpush1.bf16.msra.mxu0 0
        %617 = vmatprep.subr.bf16.mxu0 0
        %618 = vmatpush1.bf16.msra.mxu0 0
        %619 = vmatprep.subr.bf16.mxu0 0
        %620 = vmatpush1.bf16.msra.mxu0 0
        %621 = vmatprep.subr.bf16.mxu0 0
        %622 = vmatpush1.bf16.msra.mxu0 0
        %623 = vmatprep.subr.bf16.mxu0 0
        %624 = vmatpush1.bf16.msra.mxu0 0
        %625 = vmatprep.subr.bf16.mxu0 0
        %626 = vmatpush1.bf16.msra.mxu0 0
        %627 = vmatprep.subr.bf16.mxu0 0
        %628 = vmatpush1.bf16.msra.mxu0 0
        %629 = vmatprep.subr.bf16.mxu0 0
        %630 = vmatpush1.bf16.msra.mxu0 0
        %631 = vmatprep.subr.bf16.mxu0 0
        %632 = vmatpush1.bf16.msra.mxu0 0
        %633 = vmatprep.subr.bf16.mxu0 0
        %634 = vmatpush1.bf16.msra.mxu0 0
        %635 = vmatprep.subr.bf16.mxu0 0
        %636 = vmatpush1.bf16.msra.mxu0 0
        %637 = vmatprep.mubr.bf16.mxu0 0
        %638 = vmatmul.mubr.bf16.gmra.mrb[0].mxu0 %v558
        %v639 = vpop.f32.mrb[0].mxu0
        %v640 = vadd.f32 0.0, %v639
        %v641 = vpop.f32.mrb[0].mxu0
        %v642 = vpop.f32.mrb[0].mxu0
        %v643 = vadd.f32 0.0, %v642
        %v644 = vpop.f32.mrb[0].mxu0
        %645 = vmatprep.mubr.bf16.mxu0 0
        %646 = vmatmul.mubr.bf16.gmra.mrb[0].mxu0 %v561
        %v647 = vpop.f32.mrb[0].mxu0
        %v648 = vadd.f32 0.0, %v647
        %v649 = vpop.f32.mrb[0].mxu0
        %v650 = vpop.f32.mrb[0].mxu0
        %v651 = vadd.f32 0.0, %v650
        %v652 = vpop.f32.mrb[0].mxu0
        %653 = vmatprep.mubr.bf16.mxu0 0
        %654 = vmatmul.mubr.bf16.gmra.mrb[0].mxu0 %v564
        %v655 = vpop.f32.mrb[0].mxu0
        %v656 = vadd.f32 0.0, %v655
        %v657 = vpop.f32.mrb[0].mxu0
        %v658 = vpop.f32.mrb[0].mxu0
        %v659 = vadd.f32 0.0, %v658
        %v660 = vpop.f32.mrb[0].mxu0
        %661 = vmatprep.mubr.bf16.mxu0 0
        %662 = vmatmul.mubr.bf16.gmra.mrb[0].mxu0 %v567
        %v663 = vpop.f32.mrb[0].mxu0
        %v664 = vadd.f32 0.0, %v663
        %v665 = vpop.f32.mrb[0].mxu0
        %v666 = vpop.f32.mrb[0].mxu0
        %v667 = vadd.f32 0.0, %v666
        %v668 = vpop.f32.mrb[0].mxu0
        %669 = vmatprep.mubr.bf16.mxu0 0
        %670 = vmatmul.mubr.bf16.gmra.mrb[0].mxu0 %v570
        %v671 = vpop.f32.mrb[0].mxu0
        %v672 = vadd.f32 0.0, %v671
        %v673 = vpop.f32.mrb[0].mxu0
        %v674 = vpop.f32.mrb[0].mxu0
        %v675 = vadd.f32 0.0, %v674
        %v676 = vpop.f32.mrb[0].mxu0
        %677 = vmatprep.mubr.bf16.mxu0 0
        %678 = vmatmul.mubr.bf16.gmra.mrb[0].mxu0 %v573
        %v679 = vpop.f32.mrb[0].mxu0
        %v680 = vadd.f32 0.0, %v679
        %v681 = vpop.f32.mrb[0].mxu0
        %v682 = vpop.f32.mrb[0].mxu0
        %v683 = vadd.f32 0.0, %v682
        %v684 = vpop.f32.mrb[0].mxu0
        %685 = vmatprep.mubr.bf16.mxu0 0
        %686 = vmatmul.mubr.bf16.gmra.mrb[0].mxu0 %v576
        %v687 = vpop.f32.mrb[0].mxu0
        %v688 = vadd.f32 0.0, %v687
        %v689 = vpop.f32.mrb[0].mxu0
        %v690 = vpop.f32.mrb[0].mxu0
        %v691 = vadd.f32 0.0, %v690
        %v692 = vpop.f32.mrb[0].mxu0
        %693 = vmatprep.mubr.bf16.mxu0 0
        %694 = vmatmul.mubr.bf16.gmra.mrb[0].mxu0 %v579
        %v695 = vpop.f32.mrb[0].mxu0
        %v696 = vadd.f32 0.0, %v695
        %v697 = vpop.f32.mrb[0].mxu0
        %v698 = vpop.f32.mrb[0].mxu0
        %v699 = vadd.f32 0.0, %v698
        %v700 = vpop.f32.mrb[0].mxu0
        %701 = vmatprep.mubr.bf16.mxu0 0
        %702 = vmatmul.mubr.bf16.gmra.mrb[0].mxu0 %v582
        %v703 = vpop.f32.mrb[0].mxu0
        %v704 = vadd.f32 0.0, %v703
        %v705 = vpop.f32.mrb[0].mxu0
        %v706 = vpop.f32.mrb[0].mxu0
        %v707 = vadd.f32 0.0, %v706
        %v708 = vpop.f32.mrb[0].mxu0
        %709 = vmatprep.mubr.bf16.mxu0 0
        %710 = vmatmul.mubr.bf16.gmra.mrb[0].mxu0 %v585
        %v711 = vpop.f32.mrb[0].mxu0
        %v712 = vadd.f32 0.0, %v711
        %v713 = vpop.f32.mrb[0].mxu0
        %v714 = vpop.f32.mrb[0].mxu0
        %v715 = vadd.f32 0.0, %v714
        %v716 = vpop.f32.mrb[0].mxu0
        %717 = vmatprep.mubr.bf16.mxu0 0
        %718 = vmatmul.mubr.bf16.gmra.mrb[0].mxu0 %v588
        %v719 = vpop.f32.mrb[0].mxu0
        %v720 = vadd.f32 0.0, %v719
        %v721 = vpop.f32.mrb[0].mxu0
        %v722 = vpop.f32.mrb[0].mxu0
        %v723 = vadd.f32 0.0, %v722
        %v724 = vpop.f32.mrb[0].mxu0
        %725 = vmatprep.mubr.bf16.mxu0 0
        %726 = vmatmul.mubr.bf16.gmra.mrb[0].mxu0 %v591
        %v727 = vpop.f32.mrb[0].mxu0
        %v728 = vadd.f32 0.0, %v727
        %v729 = vpop.f32.mrb[0].mxu0
        %v730 = vpop.f32.mrb[0].mxu0
        %v731 = vadd.f32 0.0, %v730
        %v732 = vpop.f32.mrb[0].mxu0
        %733 = vmatprep.mubr.bf16.mxu0 0
        %734 = vmatmul.mubr.bf16.gmra.mrb[0].mxu0 %v594
        %v735 = vpop.f32.mrb[0].mxu0
        %v736 = vadd.f32 0.0, %v735
        %v737 = vpop.f32.mrb[0].mxu0
        %v738 = vpop.f32.mrb[0].mxu0
        %v739 = vadd.f32 0.0, %v738
        %v740 = vpop.f32.mrb[0].mxu0
        %741 = vmatprep.mubr.bf16.mxu0 0
        %742 = vmatmul.mubr.bf16.gmra.mrb[0].mxu0 %v597
        %v743 = vpop.f32.mrb[0].mxu0
        %v744 = vadd.f32 0.0, %v743
        %v745 = vpop.f32.mrb[0].mxu0
        %v746 = vpop.f32.mrb[0].mxu0
        %v747 = vadd.f32 0.0, %v746
        %v748 = vpop.f32.mrb[0].mxu0
        %749 = vmatprep.mubr.bf16.mxu0 0
        %750 = vmatmul.mubr.bf16.gmra.mrb[0].mxu0 %v600
        %v751 = vpop.f32.mrb[0].mxu0
        %v752 = vadd.f32 0.0, %v751
        %v753 = vpop.f32.mrb[0].mxu0
        %v754 = vpop.f32.mrb[0].mxu0
        %v755 = vadd.f32 0.0, %v754
        %v756 = vpop.f32.mrb[0].mxu0
        %757 = vmatprep.mubr.bf16.mxu0 0
        %758 = vmatmul.mubr.bf16.gmra.mrb[0].mxu0 %v603
        %v759 = vpop.f32.mrb[0].mxu0
        %v760 = vadd.f32 0.0, %v759
        %v761 = vpop.f32.mrb[0].mxu0
        %v762 = vpop.f32.mrb[0].mxu0
        %v763 = vadd.f32 0.0, %v762
        %v764 = vpop.f32.mrb[0].mxu0
        %765 = vdwg.mxu0
        %v774 = vunpack.c.l.b16 %v469
        %v775 = vunpack.c.l.b16 %v470
        %v776 = vunpack.c.l.b16 %v471
        %v777 = vunpack.c.l.b16 %v472
        %v778 = vunpack.c.l.b16 %v473
        %v779 = vunpack.c.l.b16 %v474
        %v780 = vunpack.c.l.b16 %v475
        %v781 = vunpack.c.l.b16 %v476
        %v782 = vpack.c.b16 %v775, %v774
        %v783 = vpack.c.b16 %v777, %v776
        %v784 = vpack.c.b16 %v779, %v778
        %v785 = vpack.c.b16 %v781, %v780
        %v791 = vsel %vm251, %v453, 0
        %v794 = vsel %vm251, %v454, 0
        %v797 = vsel %vm251, %v455, 0
        %v800 = vsel %vm251, %v456, 0
        %v803 = vsel %vm251, %v457, 0
        %v806 = vsel %vm251, %v458, 0
        %v809 = vsel %vm251, %v459, 0
        %v812 = vsel %vm251, %v460, 0
        %v815 = vsel %vm251, %v461, 0
        %v818 = vsel %vm251, %v462, 0
        %v821 = vsel %vm251, %v463, 0
        %v824 = vsel %vm251, %v464, 0
        %v827 = vsel %vm251, %v465, 0
        %v830 = vsel %vm251, %v466, 0
        %v833 = vsel %vm251, %v467, 0
        %v836 = vsel %vm251, %v468, 0
        %838 = vmatprep.subr.bf16.mxu0 0
        %839 = vmatpush1.bf16.msra.mxu0 %v782
        %840 = vmatprep.subr.bf16.mxu0 0
        %841 = vmatpush1.bf16.msra.mxu0 %v783
        %842 = vmatprep.subr.bf16.mxu0 0
        %843 = vmatpush1.bf16.msra.mxu0 %v784
        %844 = vmatprep.subr.bf16.mxu0 0
        %845 = vmatpush1.bf16.msra.mxu0 %v785
        %846 = vmatprep.subr.bf16.mxu0 0
        %847 = vmatpush1.bf16.msra.mxu0 0
        %848 = vmatprep.subr.bf16.mxu0 0
        %849 = vmatpush1.bf16.msra.mxu0 0
        %850 = vmatprep.subr.bf16.mxu0 0
        %851 = vmatpush1.bf16.msra.mxu0 0
        %852 = vmatprep.subr.bf16.mxu0 0
        %853 = vmatpush1.bf16.msra.mxu0 0
        %854 = vmatprep.subr.bf16.mxu0 0
        %855 = vmatpush1.bf16.msra.mxu0 0
        %856 = vmatprep.subr.bf16.mxu0 0
        %857 = vmatpush1.bf16.msra.mxu0 0
        %858 = vmatprep.subr.bf16.mxu0 0
        %859 = vmatpush1.bf16.msra.mxu0 0
        %860 = vmatprep.subr.bf16.mxu0 0
        %861 = vmatpush1.bf16.msra.mxu0 0
        %862 = vmatprep.subr.bf16.mxu0 0
        %863 = vmatpush1.bf16.msra.mxu0 0
        %864 = vmatprep.subr.bf16.mxu0 0
        %865 = vmatpush1.bf16.msra.mxu0 0
        %866 = vmatprep.subr.bf16.mxu0 0
        %867 = vmatpush1.bf16.msra.mxu0 0
        %868 = vmatprep.subr.bf16.mxu0 0
        %869 = vmatpush1.bf16.msra.mxu0 0
        %870 = vmatprep.mubr.bf16.mxu0 0
        %871 = vmatmul.mubr.bf16.gmra.mrb[0].mxu0 %v791
        %v872 = vpop.f32.mrb[0].mxu0
        %v873 = vadd.f32 %v640, %v872
        %v874 = vpop.f32.mrb[0].mxu0
        %v875 = vpop.f32.mrb[0].mxu0
        %v876 = vadd.f32 %v643, %v875
        %v877 = vpop.f32.mrb[0].mxu0
        %878 = vmatprep.mubr.bf16.mxu0 0
        %879 = vmatmul.mubr.bf16.gmra.mrb[0].mxu0 %v794
        %v880 = vpop.f32.mrb[0].mxu0
        %v881 = vadd.f32 %v648, %v880
        %v882 = vpop.f32.mrb[0].mxu0
        %v883 = vpop.f32.mrb[0].mxu0
        %v884 = vadd.f32 %v651, %v883
        %v885 = vpop.f32.mrb[0].mxu0
        %886 = vmatprep.mubr.bf16.mxu0 0
        %887 = vmatmul.mubr.bf16.gmra.mrb[0].mxu0 %v797
        %v888 = vpop.f32.mrb[0].mxu0
        %v889 = vadd.f32 %v656, %v888
        %v890 = vpop.f32.mrb[0].mxu0
        %v891 = vpop.f32.mrb[0].mxu0
        %v892 = vadd.f32 %v659, %v891
        %v893 = vpop.f32.mrb[0].mxu0
        %894 = vmatprep.mubr.bf16.mxu0 0
        %895 = vmatmul.mubr.bf16.gmra.mrb[0].mxu0 %v800
        %v896 = vpop.f32.mrb[0].mxu0
        %v897 = vadd.f32 %v664, %v896
        %v898 = vpop.f32.mrb[0].mxu0
        %v899 = vpop.f32.mrb[0].mxu0
        %v900 = vadd.f32 %v667, %v899
        %v901 = vpop.f32.mrb[0].mxu0
        %902 = vmatprep.mubr.bf16.mxu0 0
        %903 = vmatmul.mubr.bf16.gmra.mrb[0].mxu0 %v803
        %v904 = vpop.f32.mrb[0].mxu0
        %v905 = vadd.f32 %v672, %v904
        %v906 = vpop.f32.mrb[0].mxu0
        %v907 = vpop.f32.mrb[0].mxu0
        %v908 = vadd.f32 %v675, %v907
        %v909 = vpop.f32.mrb[0].mxu0
        %910 = vmatprep.mubr.bf16.mxu0 0
        %911 = vmatmul.mubr.bf16.gmra.mrb[0].mxu0 %v806
        %v912 = vpop.f32.mrb[0].mxu0
        %v913 = vadd.f32 %v680, %v912
        %v914 = vpop.f32.mrb[0].mxu0
        %v915 = vpop.f32.mrb[0].mxu0
        %v916 = vadd.f32 %v683, %v915
        %v917 = vpop.f32.mrb[0].mxu0
        %918 = vmatprep.mubr.bf16.mxu0 0
        %919 = vmatmul.mubr.bf16.gmra.mrb[0].mxu0 %v809
        %v920 = vpop.f32.mrb[0].mxu0
        %v921 = vadd.f32 %v688, %v920
        %v922 = vpop.f32.mrb[0].mxu0
        %v923 = vpop.f32.mrb[0].mxu0
        %v924 = vadd.f32 %v691, %v923
        %v925 = vpop.f32.mrb[0].mxu0
        %926 = vmatprep.mubr.bf16.mxu0 0
        %927 = vmatmul.mubr.bf16.gmra.mrb[0].mxu0 %v812
        %v928 = vpop.f32.mrb[0].mxu0
        %v929 = vadd.f32 %v696, %v928
        %v930 = vpop.f32.mrb[0].mxu0
        %v931 = vpop.f32.mrb[0].mxu0
        %v932 = vadd.f32 %v699, %v931
        %v933 = vpop.f32.mrb[0].mxu0
        %934 = vmatprep.mubr.bf16.mxu0 0
        %935 = vmatmul.mubr.bf16.gmra.mrb[0].mxu0 %v815
        %v936 = vpop.f32.mrb[0].mxu0
        %v937 = vadd.f32 %v704, %v936
        %v938 = vpop.f32.mrb[0].mxu0
        %v939 = vpop.f32.mrb[0].mxu0
        %v940 = vadd.f32 %v707, %v939
        %v941 = vpop.f32.mrb[0].mxu0
        %942 = vmatprep.mubr.bf16.mxu0 0
        %943 = vmatmul.mubr.bf16.gmra.mrb[0].mxu0 %v818
        %v944 = vpop.f32.mrb[0].mxu0
        %v945 = vadd.f32 %v712, %v944
        %v946 = vpop.f32.mrb[0].mxu0
        %v947 = vpop.f32.mrb[0].mxu0
        %v948 = vadd.f32 %v715, %v947
        %v949 = vpop.f32.mrb[0].mxu0
        %950 = vmatprep.mubr.bf16.mxu0 0
        %951 = vmatmul.mubr.bf16.gmra.mrb[0].mxu0 %v821
        %v952 = vpop.f32.mrb[0].mxu0
        %v953 = vadd.f32 %v720, %v952
        %v954 = vpop.f32.mrb[0].mxu0
        %v955 = vpop.f32.mrb[0].mxu0
        %v956 = vadd.f32 %v723, %v955
        %v957 = vpop.f32.mrb[0].mxu0
        %958 = vmatprep.mubr.bf16.mxu0 0
        %959 = vmatmul.mubr.bf16.gmra.mrb[0].mxu0 %v824
        %v960 = vpop.f32.mrb[0].mxu0
        %v961 = vadd.f32 %v728, %v960
        %v962 = vpop.f32.mrb[0].mxu0
        %v963 = vpop.f32.mrb[0].mxu0
        %v964 = vadd.f32 %v731, %v963
        %v965 = vpop.f32.mrb[0].mxu0
        %966 = vmatprep.mubr.bf16.mxu0 0
        %967 = vmatmul.mubr.bf16.gmra.mrb[0].mxu0 %v827
        %v968 = vpop.f32.mrb[0].mxu0
        %v969 = vadd.f32 %v736, %v968
        %v970 = vpop.f32.mrb[0].mxu0
        %v971 = vpop.f32.mrb[0].mxu0
        %v972 = vadd.f32 %v739, %v971
        %v973 = vpop.f32.mrb[0].mxu0
        %974 = vmatprep.mubr.bf16.mxu0 0
        %975 = vmatmul.mubr.bf16.gmra.mrb[0].mxu0 %v830
        %v976 = vpop.f32.mrb[0].mxu0
        %v977 = vadd.f32 %v744, %v976
        %v978 = vpop.f32.mrb[0].mxu0
        %v979 = vpop.f32.mrb[0].mxu0
        %v980 = vadd.f32 %v747, %v979
        %v981 = vpop.f32.mrb[0].mxu0
        %982 = vmatprep.mubr.bf16.mxu0 0
        %983 = vmatmul.mubr.bf16.gmra.mrb[0].mxu0 %v833
        %v984 = vpop.f32.mrb[0].mxu0
        %v985 = vadd.f32 %v752, %v984
        %v986 = vpop.f32.mrb[0].mxu0
        %v987 = vpop.f32.mrb[0].mxu0
        %v988 = vadd.f32 %v755, %v987
        %v989 = vpop.f32.mrb[0].mxu0
        %990 = vmatprep.mubr.bf16.mxu0 0
        %991 = vmatmul.mubr.bf16.gmra.mrb[0].mxu0 %v836
        %v992 = vpop.f32.mrb[0].mxu0
        %v993 = vadd.f32 %v760, %v992
        %v994 = vpop.f32.mrb[0].mxu0
        %v995 = vpop.f32.mrb[0].mxu0
        %v996 = vadd.f32 %v763, %v995
        %v997 = vpop.f32.mrb[0].mxu0
        %998 = vdwg.mxu0
        %v999 = vld [vmem:[#allocation2 + $0x9] sm:$0xff]
        %v1000 = vld [vmem:[#allocation2 + $0x11] sm:$0xff]
        %v1001 = vld [vmem:[#allocation2 + $0x29] sm:$0xff]
        %v1002 = vld [vmem:[#allocation2 + $0x31] sm:$0xff]
        %v1003 = vld [vmem:[#allocation2 + $0x49] sm:$0xff]
        %v1004 = vld [vmem:[#allocation2 + $0x51] sm:$0xff]
        %v1005 = vld [vmem:[#allocation2 + $0x69] sm:$0xff]
        %v1006 = vld [vmem:[#allocation2 + $0x71] sm:$0xff]
        %v1007 = vld [vmem:[#allocation2 + $0x89] sm:$0xff]
        %v1008 = vld [vmem:[#allocation2 + $0x91] sm:$0xff]
        %v1009 = vld [vmem:[#allocation2 + $0xa9] sm:$0xff]
        %v1010 = vld [vmem:[#allocation2 + $0xb1] sm:$0xff]
        %v1011 = vld [vmem:[#allocation2 + $0xc9] sm:$0xff]
        %v1012 = vld [vmem:[#allocation2 + $0xd1] sm:$0xff]
        %v1013 = vld [vmem:[#allocation2 + $0xe9] sm:$0xff]
        %v1014 = vld [vmem:[#allocation2 + $0xf1] sm:$0xff]
        %v1015 = vld [vmem:[#allocation2 + $0x109] sm:$0xff]
        %v1016 = vld [vmem:[#allocation2 + $0x111] sm:$0xff]
        %v1017 = vld [vmem:[#allocation2 + $0x129] sm:$0xff]
        %v1018 = vld [vmem:[#allocation2 + $0x131] sm:$0xff]
        %v1019 = vld [vmem:[#allocation2 + $0x149] sm:$0xff]
        %v1020 = vld [vmem:[#allocation2 + $0x151] sm:$0xff]
        %v1021 = vld [vmem:[#allocation2 + $0x169] sm:$0xff]
        %v1022 = vld [vmem:[#allocation2 + $0x171] sm:$0xff]
        %v1023 = vld [vmem:[#allocation2 + $0x189] sm:$0xff]
        %v1024 = vld [vmem:[#allocation2 + $0x191] sm:$0xff]
        %v1025 = vld [vmem:[#allocation2 + $0x1a9] sm:$0xff]
        %v1026 = vld [vmem:[#allocation2 + $0x1b1] sm:$0xff]
        %v1027 = vld [vmem:[#allocation2 + $0x1c9] sm:$0xff]
        %v1028 = vld [vmem:[#allocation2 + $0x1d1] sm:$0xff]
        %v1029 = vld [vmem:[#allocation2 + $0x1e9] sm:$0xff]
        %v1030 = vld [vmem:[#allocation2 + $0x1f1] sm:$0xff]
        %v1031 = vpack.c.bf16 %v1000, %v999
        %v1032 = vpack.c.bf16 %v1002, %v1001
        %v1033 = vpack.c.bf16 %v1004, %v1003
        %v1034 = vpack.c.bf16 %v1006, %v1005
        %v1035 = vpack.c.bf16 %v1008, %v1007
        %v1036 = vpack.c.bf16 %v1010, %v1009
        %v1037 = vpack.c.bf16 %v1012, %v1011
        %v1038 = vpack.c.bf16 %v1014, %v1013
        %v1039 = vpack.c.bf16 %v1016, %v1015
        %v1040 = vpack.c.bf16 %v1018, %v1017
        %v1041 = vpack.c.bf16 %v1020, %v1019
        %v1042 = vpack.c.bf16 %v1022, %v1021
        %v1043 = vpack.c.bf16 %v1024, %v1023
        %v1044 = vpack.c.bf16 %v1026, %v1025
        %v1045 = vpack.c.bf16 %v1028, %v1027
        %v1046 = vpack.c.bf16 %v1030, %v1029
        %v1047 = vld [vmem:[%s1 + $0x40] sm:$0xf]
        %v1048 = vld [vmem:[%s1 + $0x44] sm:$0xf]
        %v1049 = vld [vmem:[%s1 + $0x48] sm:$0xf]
        %v1050 = vld [vmem:[%s1 + $0x4c] sm:$0xf]
        %v1051 = vld [vmem:[%s1 + $0x50] sm:$0xf]
        %v1052 = vld [vmem:[%s1 + $0x54] sm:$0xf]
        %v1053 = vld [vmem:[%s1 + $0x58] sm:$0xf]
        %v1054 = vld [vmem:[%s1 + $0x5c] sm:$0xf]
        %v1063 = vunpack.c.l.b16 %v1047
        %v1064 = vunpack.c.l.b16 %v1048
        %v1065 = vunpack.c.l.b16 %v1049
        %v1066 = vunpack.c.l.b16 %v1050
        %v1067 = vunpack.c.l.b16 %v1051
        %v1068 = vunpack.c.l.b16 %v1052
        %v1069 = vunpack.c.l.b16 %v1053
        %v1070 = vunpack.c.l.b16 %v1054
        %v1071 = vpack.c.b16 %v1064, %v1063
        %v1072 = vpack.c.b16 %v1066, %v1065
        %v1073 = vpack.c.b16 %v1068, %v1067
        %v1074 = vpack.c.b16 %v1070, %v1069
        %v1080 = vsel %vm251, %v1031, 0
        %v1083 = vsel %vm251, %v1032, 0
        %v1086 = vsel %vm251, %v1033, 0
        %v1089 = vsel %vm251, %v1034, 0
        %v1092 = vsel %vm251, %v1035, 0
        %v1095 = vsel %vm251, %v1036, 0
        %v1098 = vsel %vm251, %v1037, 0
        %v1101 = vsel %vm251, %v1038, 0
        %v1104 = vsel %vm251, %v1039, 0
        %v1107 = vsel %vm251, %v1040, 0
        %v1110 = vsel %vm251, %v1041, 0
        %v1113 = vsel %vm251, %v1042, 0
        %v1116 = vsel %vm251, %v1043, 0
        %v1119 = vsel %vm251, %v1044, 0
        %v1122 = vsel %vm251, %v1045, 0
        %v1125 = vsel %vm251, %v1046, 0
        %1127 = vmatprep.subr.bf16.mxu0 0
        %1128 = vmatpush1.bf16.msra.mxu0 %v1071
        %1129 = vmatprep.subr.bf16.mxu0 0
        %1130 = vmatpush1.bf16.msra.mxu0 %v1072
        %1131 = vmatprep.subr.bf16.mxu0 0
        %1132 = vmatpush1.bf16.msra.mxu0 %v1073
        %1133 = vmatprep.subr.bf16.mxu0 0
        %1134 = vmatpush1.bf16.msra.mxu0 %v1074
        %1135 = vmatprep.subr.bf16.mxu0 0
        %1136 = vmatpush1.bf16.msra.mxu0 0
        %1137 = vmatprep.subr.bf16.mxu0 0
        %1138 = vmatpush1.bf16.msra.mxu0 0
        %1139 = vmatprep.subr.bf16.mxu0 0
        %1140 = vmatpush1.bf16.msra.mxu0 0
        %1141 = vmatprep.subr.bf16.mxu0 0
        %1142 = vmatpush1.bf16.msra.mxu0 0
        %1143 = vmatprep.subr.bf16.mxu0 0
        %1144 = vmatpush1.bf16.msra.mxu0 0
        %1145 = vmatprep.subr.bf16.mxu0 0
        %1146 = vmatpush1.bf16.msra.mxu0 0
        %1147 = vmatprep.subr.bf16.mxu0 0
        %1148 = vmatpush1.bf16.msra.mxu0 0
        %1149 = vmatprep.subr.bf16.mxu0 0
        %1150 = vmatpush1.bf16.msra.mxu0 0
        %1151 = vmatprep.subr.bf16.mxu0 0
        %1152 = vmatpush1.bf16.msra.mxu0 0
        %1153 = vmatprep.subr.bf16.mxu0 0
        %1154 = vmatpush1.bf16.msra.mxu0 0
        %1155 = vmatprep.subr.bf16.mxu0 0
        %1156 = vmatpush1.bf16.msra.mxu0 0
        %1157 = vmatprep.subr.bf16.mxu0 0
        %1158 = vmatpush1.bf16.msra.mxu0 0
        %1159 = vmatprep.mubr.bf16.mxu0 0
        %1160 = vmatmul.mubr.bf16.gmra.mrb[0].mxu0 %v1080
        %v1161 = vpop.f32.mrb[0].mxu0
        %v1162 = vadd.f32 0.0, %v1161
        %v1163 = vpop.f32.mrb[0].mxu0
        %v1164 = vpop.f32.mrb[0].mxu0
        %v1165 = vadd.f32 0.0, %v1164
        %v1166 = vpop.f32.mrb[0].mxu0
        %1167 = vmatprep.mubr.bf16.mxu0 0
        %1168 = vmatmul.mubr.bf16.gmra.mrb[0].mxu0 %v1083
        %v1169 = vpop.f32.mrb[0].mxu0
        %v1170 = vadd.f32 0.0, %v1169
        %v1171 = vpop.f32.mrb[0].mxu0
        %v1172 = vpop.f32.mrb[0].mxu0
        %v1173 = vadd.f32 0.0, %v1172
        %v1174 = vpop.f32.mrb[0].mxu0
        %1175 = vmatprep.mubr.bf16.mxu0 0
        %1176 = vmatmul.mubr.bf16.gmra.mrb[0].mxu0 %v1086
        %v1177 = vpop.f32.mrb[0].mxu0
        %v1178 = vadd.f32 0.0, %v1177
        %v1179 = vpop.f32.mrb[0].mxu0
        %v1180 = vpop.f32.mrb[0].mxu0
        %v1181 = vadd.f32 0.0, %v1180
        %v1182 = vpop.f32.mrb[0].mxu0
        %1183 = vmatprep.mubr.bf16.mxu0 0
        %1184 = vmatmul.mubr.bf16.gmra.mrb[0].mxu0 %v1089
        %v1185 = vpop.f32.mrb[0].mxu0
        %v1186 = vadd.f32 0.0, %v1185
        %v1187 = vpop.f32.mrb[0].mxu0
        %v1188 = vpop.f32.mrb[0].mxu0
        %v1189 = vadd.f32 0.0, %v1188
        %v1190 = vpop.f32.mrb[0].mxu0
        %1191 = vmatprep.mubr.bf16.mxu0 0
        %1192 = vmatmul.mubr.bf16.gmra.mrb[0].mxu0 %v1092
        %v1193 = vpop.f32.mrb[0].mxu0
        %v1194 = vadd.f32 0.0, %v1193
        %v1195 = vpop.f32.mrb[0].mxu0
        %v1196 = vpop.f32.mrb[0].mxu0
        %v1197 = vadd.f32 0.0, %v1196
        %v1198 = vpop.f32.mrb[0].mxu0
        %1199 = vmatprep.mubr.bf16.mxu0 0
        %1200 = vmatmul.mubr.bf16.gmra.mrb[0].mxu0 %v1095
        %v1201 = vpop.f32.mrb[0].mxu0
        %v1202 = vadd.f32 0.0, %v1201
        %v1203 = vpop.f32.mrb[0].mxu0
        %v1204 = vpop.f32.mrb[0].mxu0
        %v1205 = vadd.f32 0.0, %v1204
        %v1206 = vpop.f32.mrb[0].mxu0
        %1207 = vmatprep.mubr.bf16.mxu0 0
        %1208 = vmatmul.mubr.bf16.gmra.mrb[0].mxu0 %v1098
        %v1209 = vpop.f32.mrb[0].mxu0
        %v1210 = vadd.f32 0.0, %v1209
        %v1211 = vpop.f32.mrb[0].mxu0
        %v1212 = vpop.f32.mrb[0].mxu0
        %v1213 = vadd.f32 0.0, %v1212
        %v1214 = vpop.f32.mrb[0].mxu0
        %1215 = vmatprep.mubr.bf16.mxu0 0
        %1216 = vmatmul.mubr.bf16.gmra.mrb[0].mxu0 %v1101
        %v1217 = vpop.f32.mrb[0].mxu0
        %v1218 = vadd.f32 0.0, %v1217
        %v1219 = vpop.f32.mrb[0].mxu0
        %v1220 = vpop.f32.mrb[0].mxu0
        %v1221 = vadd.f32 0.0, %v1220
        %v1222 = vpop.f32.mrb[0].mxu0
        %1223 = vmatprep.mubr.bf16.mxu0 0
        %1224 = vmatmul.mubr.bf16.gmra.mrb[0].mxu0 %v1104
        %v1225 = vpop.f32.mrb[0].mxu0
        %v1226 = vadd.f32 0.0, %v1225
        %v1227 = vpop.f32.mrb[0].mxu0
        %v1228 = vpop.f32.mrb[0].mxu0
        %v1229 = vadd.f32 0.0, %v1228
        %v1230 = vpop.f32.mrb[0].mxu0
        %1231 = vmatprep.mubr.bf16.mxu0 0
        %1232 = vmatmul.mubr.bf16.gmra.mrb[0].mxu0 %v1107
        %v1233 = vpop.f32.mrb[0].mxu0
        %v1234 = vadd.f32 0.0, %v1233
        %v1235 = vpop.f32.mrb[0].mxu0
        %v1236 = vpop.f32.mrb[0].mxu0
        %v1237 = vadd.f32 0.0, %v1236
        %v1238 = vpop.f32.mrb[0].mxu0
        %1239 = vmatprep.mubr.bf16.mxu0 0
        %1240 = vmatmul.mubr.bf16.gmra.mrb[0].mxu0 %v1110
        %v1241 = vpop.f32.mrb[0].mxu0
        %v1242 = vadd.f32 0.0, %v1241
        %v1243 = vpop.f32.mrb[0].mxu0
        %v1244 = vpop.f32.mrb[0].mxu0
        %v1245 = vadd.f32 0.0, %v1244
        %v1246 = vpop.f32.mrb[0].mxu0
        %1247 = vmatprep.mubr.bf16.mxu0 0
        %1248 = vmatmul.mubr.bf16.gmra.mrb[0].mxu0 %v1113
        %v1249 = vpop.f32.mrb[0].mxu0
        %v1250 = vadd.f32 0.0, %v1249
        %v1251 = vpop.f32.mrb[0].mxu0
        %v1252 = vpop.f32.mrb[0].mxu0
        %v1253 = vadd.f32 0.0, %v1252
        %v1254 = vpop.f32.mrb[0].mxu0
        %1255 = vmatprep.mubr.bf16.mxu0 0
        %1256 = vmatmul.mubr.bf16.gmra.mrb[0].mxu0 %v1116
        %v1257 = vpop.f32.mrb[0].mxu0
        %v1258 = vadd.f32 0.0, %v1257
        %v1259 = vpop.f32.mrb[0].mxu0
        %v1260 = vpop.f32.mrb[0].mxu0
        %v1261 = vadd.f32 0.0, %v1260
        %v1262 = vpop.f32.mrb[0].mxu0
        %1263 = vmatprep.mubr.bf16.mxu0 0
        %1264 = vmatmul.mubr.bf16.gmra.mrb[0].mxu0 %v1119
        %v1265 = vpop.f32.mrb[0].mxu0
        %v1266 = vadd.f32 0.0, %v1265
        %v1267 = vpop.f32.mrb[0].mxu0
        %v1268 = vpop.f32.mrb[0].mxu0
        %v1269 = vadd.f32 0.0, %v1268
        %v1270 = vpop.f32.mrb[0].mxu0
        %1271 = vmatprep.mubr.bf16.mxu0 0
        %1272 = vmatmul.mubr.bf16.gmra.mrb[0].mxu0 %v1122
        %v1273 = vpop.f32.mrb[0].mxu0
        %v1274 = vadd.f32 0.0, %v1273
        %v1275 = vpop.f32.mrb[0].mxu0
        %v1276 = vpop.f32.mrb[0].mxu0
        %v1277 = vadd.f32 0.0, %v1276
        %v1278 = vpop.f32.mrb[0].mxu0
        %1279 = vmatprep.mubr.bf16.mxu0 0
        %1280 = vmatmul.mubr.bf16.gmra.mrb[0].mxu0 %v1125
        %v1281 = vpop.f32.mrb[0].mxu0
        %v1282 = vadd.f32 0.0, %v1281
        %v1283 = vpop.f32.mrb[0].mxu0
        %v1284 = vpop.f32.mrb[0].mxu0
        %v1285 = vadd.f32 0.0, %v1284
        %v1286 = vpop.f32.mrb[0].mxu0
        %1287 = vdwg.mxu0
        %v1288 = vadd.f32 %v873, %v1162
        %v1289 = vadd.f32 %v876, %v1165
        %v1290 = vadd.f32 %v881, %v1170
        %v1291 = vadd.f32 %v884, %v1173
        %v1292 = vadd.f32 %v889, %v1178
        %v1293 = vadd.f32 %v892, %v1181
        %v1294 = vadd.f32 %v897, %v1186
        %v1295 = vadd.f32 %v900, %v1189
        %v1296 = vadd.f32 %v905, %v1194
        %v1297 = vadd.f32 %v908, %v1197
        %v1298 = vadd.f32 %v913, %v1202
        %v1299 = vadd.f32 %v916, %v1205
        %v1300 = vadd.f32 %v921, %v1210
        %v1301 = vadd.f32 %v924, %v1213
        %v1302 = vadd.f32 %v929, %v1218
        %v1303 = vadd.f32 %v932, %v1221
        %v1304 = vadd.f32 %v937, %v1226
        %v1305 = vadd.f32 %v940, %v1229
        %v1306 = vadd.f32 %v945, %v1234
        %v1307 = vadd.f32 %v948, %v1237
        %v1308 = vadd.f32 %v953, %v1242
        %v1309 = vadd.f32 %v956, %v1245
        %v1310 = vadd.f32 %v961, %v1250
        %v1311 = vadd.f32 %v964, %v1253
        %v1312 = vadd.f32 %v969, %v1258
        %v1313 = vadd.f32 %v972, %v1261
        %v1314 = vadd.f32 %v977, %v1266
        %v1315 = vadd.f32 %v980, %v1269
        %v1316 = vadd.f32 %v985, %v1274
        %v1317 = vadd.f32 %v988, %v1277
        %v1318 = vadd.f32 %v993, %v1282
        %v1319 = vadd.f32 %v996, %v1285
        %v1320 = vld [vmem:[%s388 + $0x7] sm:$0xff]
        %v1321 = vld [vmem:[%s388 + $0xf] sm:$0xff]
        %v1322 = vld [vmem:[%s388 + $0x27] sm:$0xff]
        %v1323 = vld [vmem:[%s388 + $0x2f] sm:$0xff]
        %v1324 = vld [vmem:[%s388 + $0x47] sm:$0xff]
        %v1325 = vld [vmem:[%s388 + $0x4f] sm:$0xff]
        %v1326 = vld [vmem:[%s388 + $0x67] sm:$0xff]
        %v1327 = vld [vmem:[%s388 + $0x6f] sm:$0xff]
        %v1328 = vld [vmem:[%s388 + $0x87] sm:$0xff]
        %v1329 = vld [vmem:[%s388 + $0x8f] sm:$0xff]
        %v1330 = vld [vmem:[%s388 + $0xa7] sm:$0xff]
        %v1331 = vld [vmem:[%s388 + $0xaf] sm:$0xff]
        %v1332 = vld [vmem:[%s388 + $0xc7] sm:$0xff]
        %v1333 = vld [vmem:[%s388 + $0xcf] sm:$0xff]
        %v1334 = vld [vmem:[%s388 + $0xe7] sm:$0xff]
        %v1335 = vld [vmem:[%s388 + $0xef] sm:$0xff]
        %v1336 = vld [vmem:[%s388 + $0x107] sm:$0xff]
        %v1337 = vld [vmem:[%s388 + $0x10f] sm:$0xff]
        %v1338 = vld [vmem:[%s388 + $0x127] sm:$0xff]
        %v1339 = vld [vmem:[%s388 + $0x12f] sm:$0xff]
        %v1340 = vld [vmem:[%s388 + $0x147] sm:$0xff]
        %v1341 = vld [vmem:[%s388 + $0x14f] sm:$0xff]
        %v1342 = vld [vmem:[%s388 + $0x167] sm:$0xff]
        %v1343 = vld [vmem:[%s388 + $0x16f] sm:$0xff]
        %v1344 = vld [vmem:[%s388 + $0x187] sm:$0xff]
        %v1345 = vld [vmem:[%s388 + $0x18f] sm:$0xff]
        %v1346 = vld [vmem:[%s388 + $0x1a7] sm:$0xff]
        %v1347 = vld [vmem:[%s388 + $0x1af] sm:$0xff]
        %v1348 = vld [vmem:[%s388 + $0x1c7] sm:$0xff]
        %v1349 = vld [vmem:[%s388 + $0x1cf] sm:$0xff]
        %v1350 = vld [vmem:[%s388 + $0x1e7] sm:$0xff]
        %v1351 = vld [vmem:[%s388 + $0x1ef] sm:$0xff]
        %v1352 = vpack.c.bf16 %v1321, %v1320
        %v1353 = vpack.c.bf16 %v1323, %v1322
        %v1354 = vpack.c.bf16 %v1325, %v1324
        %v1355 = vpack.c.bf16 %v1327, %v1326
        %v1356 = vpack.c.bf16 %v1329, %v1328
        %v1357 = vpack.c.bf16 %v1331, %v1330
        %v1358 = vpack.c.bf16 %v1333, %v1332
        %v1359 = vpack.c.bf16 %v1335, %v1334
        %v1360 = vpack.c.bf16 %v1337, %v1336
        %v1361 = vpack.c.bf16 %v1339, %v1338
        %v1362 = vpack.c.bf16 %v1341, %v1340
        %v1363 = vpack.c.bf16 %v1343, %v1342
        %v1364 = vpack.c.bf16 %v1345, %v1344
        %v1365 = vpack.c.bf16 %v1347, %v1346
        %v1366 = vpack.c.bf16 %v1349, %v1348
        %v1367 = vpack.c.bf16 %v1351, %v1350
        %v1368 = vld [vmem:[%s1 + $0x60] sm:$0xf]
        %v1369 = vld [vmem:[%s1 + $0x64] sm:$0xf]
        %v1370 = vld [vmem:[%s1 + $0x68] sm:$0xf]
        %v1371 = vld [vmem:[%s1 + $0x6c] sm:$0xf]
        %v1372 = vld [vmem:[%s1 + $0x70] sm:$0xf]
        %v1373 = vld [vmem:[%s1 + $0x74] sm:$0xf]
        %v1374 = vld [vmem:[%s1 + $0x78] sm:$0xf]
        %v1375 = vld [vmem:[%s1 + $0x7c] sm:$0xf]
        %v1384 = vunpack.c.l.b16 %v1368
        %v1385 = vunpack.c.l.b16 %v1369
        %v1386 = vunpack.c.l.b16 %v1370
        %v1387 = vunpack.c.l.b16 %v1371
        %v1388 = vunpack.c.l.b16 %v1372
        %v1389 = vunpack.c.l.b16 %v1373
        %v1390 = vunpack.c.l.b16 %v1374
        %v1391 = vunpack.c.l.b16 %v1375
        %v1392 = vpack.c.b16 %v1385, %v1384
        %v1393 = vpack.c.b16 %v1387, %v1386
        %v1394 = vpack.c.b16 %v1389, %v1388
        %v1395 = vpack.c.b16 %v1391, %v1390
        %v1401 = vsel %vm251, %v1352, 0
        %v1404 = vsel %vm251, %v1353, 0
        %v1407 = vsel %vm251, %v1354, 0
        %v1410 = vsel %vm251, %v1355, 0
        %v1413 = vsel %vm251, %v1356, 0
        %v1416 = vsel %vm251, %v1357, 0
        %v1419 = vsel %vm251, %v1358, 0
        %v1422 = vsel %vm251, %v1359, 0
        %v1425 = vsel %vm251, %v1360, 0
        %v1428 = vsel %vm251, %v1361, 0
        %v1431 = vsel %vm251, %v1362, 0
        %v1434 = vsel %vm251, %v1363, 0
        %v1437 = vsel %vm251, %v1364, 0
        %v1440 = vsel %vm251, %v1365, 0
        %v1443 = vsel %vm251, %v1366, 0
        %v1446 = vsel %vm251, %v1367, 0
        %1448 = vmatprep.subr.bf16.mxu0 0
        %1449 = vmatpush1.bf16.msra.mxu0 %v1392
        %1450 = vmatprep.subr.bf16.mxu0 0
        %1451 = vmatpush1.bf16.msra.mxu0 %v1393
        %1452 = vmatprep.subr.bf16.mxu0 0
        %1453 = vmatpush1.bf16.msra.mxu0 %v1394
        %1454 = vmatprep.subr.bf16.mxu0 0
        %1455 = vmatpush1.bf16.msra.mxu0 %v1395
        %1456 = vmatprep.subr.bf16.mxu0 0
        %1457 = vmatpush1.bf16.msra.mxu0 0
        %1458 = vmatprep.subr.bf16.mxu0 0
        %1459 = vmatpush1.bf16.msra.mxu0 0
        %1460 = vmatprep.subr.bf16.mxu0 0
        %1461 = vmatpush1.bf16.msra.mxu0 0
        %1462 = vmatprep.subr.bf16.mxu0 0
        %1463 = vmatpush1.bf16.msra.mxu0 0
        %1464 = vmatprep.subr.bf16.mxu0 0
        %1465 = vmatpush1.bf16.msra.mxu0 0
        %1466 = vmatprep.subr.bf16.mxu0 0
        %1467 = vmatpush1.bf16.msra.mxu0 0
        %1468 = vmatprep.subr.bf16.mxu0 0
        %1469 = vmatpush1.bf16.msra.mxu0 0
        %1470 = vmatprep.subr.bf16.mxu0 0
        %1471 = vmatpush1.bf16.msra.mxu0 0
        %1472 = vmatprep.subr.bf16.mxu0 0
        %1473 = vmatpush1.bf16.msra.mxu0 0
        %1474 = vmatprep.subr.bf16.mxu0 0
        %1475 = vmatpush1.bf16.msra.mxu0 0
        %1476 = vmatprep.subr.bf16.mxu0 0
        %1477 = vmatpush1.bf16.msra.mxu0 0
        %1478 = vmatprep.subr.bf16.mxu0 0
        %1479 = vmatpush1.bf16.msra.mxu0 0
        %1480 = vmatprep.mubr.bf16.mxu0 0
        %1481 = vmatmul.mubr.bf16.gmra.mrb[0].mxu0 %v1401
        %v1482 = vpop.f32.mrb[0].mxu0
        %v1483 = vadd.f32 0.0, %v1482
        %v1484 = vpop.f32.mrb[0].mxu0
        %v1485 = vpop.f32.mrb[0].mxu0
        %v1486 = vadd.f32 0.0, %v1485
        %v1487 = vpop.f32.mrb[0].mxu0
        %1488 = vmatprep.mubr.bf16.mxu0 0
        %1489 = vmatmul.mubr.bf16.gmra.mrb[0].mxu0 %v1404
        %v1490 = vpop.f32.mrb[0].mxu0
        %v1491 = vadd.f32 0.0, %v1490
        %v1492 = vpop.f32.mrb[0].mxu0
        %v1493 = vpop.f32.mrb[0].mxu0
        %v1494 = vadd.f32 0.0, %v1493
        %v1495 = vpop.f32.mrb[0].mxu0
        %1496 = vmatprep.mubr.bf16.mxu0 0
        %1497 = vmatmul.mubr.bf16.gmra.mrb[0].mxu0 %v1407
        %v1498 = vpop.f32.mrb[0].mxu0
        %v1499 = vadd.f32 0.0, %v1498
        %v1500 = vpop.f32.mrb[0].mxu0
        %v1501 = vpop.f32.mrb[0].mxu0
        %v1502 = vadd.f32 0.0, %v1501
        %v1503 = vpop.f32.mrb[0].mxu0
        %1504 = vmatprep.mubr.bf16.mxu0 0
        %1505 = vmatmul.mubr.bf16.gmra.mrb[0].mxu0 %v1410
        %v1506 = vpop.f32.mrb[0].mxu0
        %v1507 = vadd.f32 0.0, %v1506
        %v1508 = vpop.f32.mrb[0].mxu0
        %v1509 = vpop.f32.mrb[0].mxu0
        %v1510 = vadd.f32 0.0, %v1509
        %v1511 = vpop.f32.mrb[0].mxu0
        %1512 = vmatprep.mubr.bf16.mxu0 0
        %1513 = vmatmul.mubr.bf16.gmra.mrb[0].mxu0 %v1413
        %v1514 = vpop.f32.mrb[0].mxu0
        %v1515 = vadd.f32 0.0, %v1514
        %v1516 = vpop.f32.mrb[0].mxu0
        %v1517 = vpop.f32.mrb[0].mxu0
        %v1518 = vadd.f32 0.0, %v1517
        %v1519 = vpop.f32.mrb[0].mxu0
        %1520 = vmatprep.mubr.bf16.mxu0 0
        %1521 = vmatmul.mubr.bf16.gmra.mrb[0].mxu0 %v1416
        %v1522 = vpop.f32.mrb[0].mxu0
        %v1523 = vadd.f32 0.0, %v1522
        %v1524 = vpop.f32.mrb[0].mxu0
        %v1525 = vpop.f32.mrb[0].mxu0
        %v1526 = vadd.f32 0.0, %v1525
        %v1527 = vpop.f32.mrb[0].mxu0
        %1528 = vmatprep.mubr.bf16.mxu0 0
        %1529 = vmatmul.mubr.bf16.gmra.mrb[0].mxu0 %v1419
        %v1530 = vpop.f32.mrb[0].mxu0
        %v1531 = vadd.f32 0.0, %v1530
        %v1532 = vpop.f32.mrb[0].mxu0
        %v1533 = vpop.f32.mrb[0].mxu0
        %v1534 = vadd.f32 0.0, %v1533
        %v1535 = vpop.f32.mrb[0].mxu0
        %1536 = vmatprep.mubr.bf16.mxu0 0
        %1537 = vmatmul.mubr.bf16.gmra.mrb[0].mxu0 %v1422
        %v1538 = vpop.f32.mrb[0].mxu0
        %v1539 = vadd.f32 0.0, %v1538
        %v1540 = vpop.f32.mrb[0].mxu0
        %v1541 = vpop.f32.mrb[0].mxu0
        %v1542 = vadd.f32 0.0, %v1541
        %v1543 = vpop.f32.mrb[0].mxu0
        %1544 = vmatprep.mubr.bf16.mxu0 0
        %1545 = vmatmul.mubr.bf16.gmra.mrb[0].mxu0 %v1425
        %v1546 = vpop.f32.mrb[0].mxu0
        %v1547 = vadd.f32 0.0, %v1546
        %v1548 = vpop.f32.mrb[0].mxu0
        %v1549 = vpop.f32.mrb[0].mxu0
        %v1550 = vadd.f32 0.0, %v1549
        %v1551 = vpop.f32.mrb[0].mxu0
        %1552 = vmatprep.mubr.bf16.mxu0 0
        %1553 = vmatmul.mubr.bf16.gmra.mrb[0].mxu0 %v1428
        %v1554 = vpop.f32.mrb[0].mxu0
        %v1555 = vadd.f32 0.0, %v1554
        %v1556 = vpop.f32.mrb[0].mxu0
        %v1557 = vpop.f32.mrb[0].mxu0
        %v1558 = vadd.f32 0.0, %v1557
        %v1559 = vpop.f32.mrb[0].mxu0
        %1560 = vmatprep.mubr.bf16.mxu0 0
        %1561 = vmatmul.mubr.bf16.gmra.mrb[0].mxu0 %v1431
        %v1562 = vpop.f32.mrb[0].mxu0
        %v1563 = vadd.f32 0.0, %v1562
        %v1564 = vpop.f32.mrb[0].mxu0
        %v1565 = vpop.f32.mrb[0].mxu0
        %v1566 = vadd.f32 0.0, %v1565
        %v1567 = vpop.f32.mrb[0].mxu0
        %1568 = vmatprep.mubr.bf16.mxu0 0
        %1569 = vmatmul.mubr.bf16.gmra.mrb[0].mxu0 %v1434
        %v1570 = vpop.f32.mrb[0].mxu0
        %v1571 = vadd.f32 0.0, %v1570
        %v1572 = vpop.f32.mrb[0].mxu0
        %v1573 = vpop.f32.mrb[0].mxu0
        %v1574 = vadd.f32 0.0, %v1573
        %v1575 = vpop.f32.mrb[0].mxu0
        %1576 = vmatprep.mubr.bf16.mxu0 0
        %1577 = vmatmul.mubr.bf16.gmra.mrb[0].mxu0 %v1437
        %v1578 = vpop.f32.mrb[0].mxu0
        %v1579 = vadd.f32 0.0, %v1578
        %v1580 = vpop.f32.mrb[0].mxu0
        %v1581 = vpop.f32.mrb[0].mxu0
        %v1582 = vadd.f32 0.0, %v1581
        %v1583 = vpop.f32.mrb[0].mxu0
        %1584 = vmatprep.mubr.bf16.mxu0 0
        %1585 = vmatmul.mubr.bf16.gmra.mrb[0].mxu0 %v1440
        %v1586 = vpop.f32.mrb[0].mxu0
        %v1587 = vadd.f32 0.0, %v1586
        %v1588 = vpop.f32.mrb[0].mxu0
        %v1589 = vpop.f32.mrb[0].mxu0
        %v1590 = vadd.f32 0.0, %v1589
        %v1591 = vpop.f32.mrb[0].mxu0
        %1592 = vmatprep.mubr.bf16.mxu0 0
        %1593 = vmatmul.mubr.bf16.gmra.mrb[0].mxu0 %v1443
        %v1594 = vpop.f32.mrb[0].mxu0
        %v1595 = vadd.f32 0.0, %v1594
        %v1596 = vpop.f32.mrb[0].mxu0
        %v1597 = vpop.f32.mrb[0].mxu0
        %v1598 = vadd.f32 0.0, %v1597
        %v1599 = vpop.f32.mrb[0].mxu0
        %1600 = vmatprep.mubr.bf16.mxu0 0
        %1601 = vmatmul.mubr.bf16.gmra.mrb[0].mxu0 %v1446
        %v1602 = vpop.f32.mrb[0].mxu0
        %v1603 = vadd.f32 0.0, %v1602
        %v1604 = vpop.f32.mrb[0].mxu0
        %v1605 = vpop.f32.mrb[0].mxu0
        %v1606 = vadd.f32 0.0, %v1605
        %v1607 = vpop.f32.mrb[0].mxu0
        %1608 = vdwg.mxu0
        %v1609 = vadd.f32 %v1288, %v1483
        %v1610 = vadd.f32 %v1289, %v1486
        %v1611 = vadd.f32 %v1290, %v1491
        %v1612 = vadd.f32 %v1291, %v1494
        %v1613 = vadd.f32 %v1292, %v1499
        %v1614 = vadd.f32 %v1293, %v1502
        %v1615 = vadd.f32 %v1294, %v1507
        %v1616 = vadd.f32 %v1295, %v1510
        %v1617 = vadd.f32 %v1296, %v1515
        %v1618 = vadd.f32 %v1297, %v1518
        %v1619 = vadd.f32 %v1298, %v1523
        %v1620 = vadd.f32 %v1299, %v1526
        %v1621 = vadd.f32 %v1300, %v1531
        %v1622 = vadd.f32 %v1301, %v1534
        %v1623 = vadd.f32 %v1302, %v1539
        %v1624 = vadd.f32 %v1303, %v1542
        %v1625 = vadd.f32 %v1304, %v1547
        %v1626 = vadd.f32 %v1305, %v1550
        %v1627 = vadd.f32 %v1306, %v1555
        %v1628 = vadd.f32 %v1307, %v1558
        %v1629 = vadd.f32 %v1308, %v1563
        %v1630 = vadd.f32 %v1309, %v1566
        %v1631 = vadd.f32 %v1310, %v1571
        %v1632 = vadd.f32 %v1311, %v1574
        %v1633 = vadd.f32 %v1312, %v1579
        %v1634 = vadd.f32 %v1313, %v1582
        %v1635 = vadd.f32 %v1314, %v1587
        %v1636 = vadd.f32 %v1315, %v1590
        %v1637 = vadd.f32 %v1316, %v1595
        %v1638 = vadd.f32 %v1317, %v1598
        %v1639 = vadd.f32 %v1318, %v1603
        %v1640 = vadd.f32 %v1319, %v1606
        %v1641 = vld [vmem:[%s388 + $0x8] sm:$0xff]
        %v1642 = vld [vmem:[%s388 + $0x10] sm:$0xff]
        %v1643 = vld [vmem:[%s388 + $0x28] sm:$0xff]
        %v1644 = vld [vmem:[%s388 + $0x30] sm:$0xff]
        %v1645 = vld [vmem:[%s388 + $0x48] sm:$0xff]
        %v1646 = vld [vmem:[%s388 + $0x50] sm:$0xff]
        %v1647 = vld [vmem:[%s388 + $0x68] sm:$0xff]
        %v1648 = vld [vmem:[%s388 + $0x70] sm:$0xff]
        %v1649 = vld [vmem:[%s388 + $0x88] sm:$0xff]
        %v1650 = vld [vmem:[%s388 + $0x90] sm:$0xff]
        %v1651 = vld [vmem:[%s388 + $0xa8] sm:$0xff]
        %v1652 = vld [vmem:[%s388 + $0xb0] sm:$0xff]
        %v1653 = vld [vmem:[%s388 + $0xc8] sm:$0xff]
        %v1654 = vld [vmem:[%s388 + $0xd0] sm:$0xff]
        %v1655 = vld [vmem:[%s388 + $0xe8] sm:$0xff]
        %v1656 = vld [vmem:[%s388 + $0xf0] sm:$0xff]
        %v1657 = vld [vmem:[%s388 + $0x108] sm:$0xff]
        %v1658 = vld [vmem:[%s388 + $0x110] sm:$0xff]
        %v1659 = vld [vmem:[%s388 + $0x128] sm:$0xff]
        %v1660 = vld [vmem:[%s388 + $0x130] sm:$0xff]
        %v1661 = vld [vmem:[%s388 + $0x148] sm:$0xff]
        %v1662 = vld [vmem:[%s388 + $0x150] sm:$0xff]
        %v1663 = vld [vmem:[%s388 + $0x168] sm:$0xff]
        %v1664 = vld [vmem:[%s388 + $0x170] sm:$0xff]
        %v1665 = vld [vmem:[%s388 + $0x188] sm:$0xff]
        %v1666 = vld [vmem:[%s388 + $0x190] sm:$0xff]
        %v1667 = vld [vmem:[%s388 + $0x1a8] sm:$0xff]
        %v1668 = vld [vmem:[%s388 + $0x1b0] sm:$0xff]
        %v1669 = vld [vmem:[%s388 + $0x1c8] sm:$0xff]
        %v1670 = vld [vmem:[%s388 + $0x1d0] sm:$0xff]
        %v1671 = vld [vmem:[%s388 + $0x1e8] sm:$0xff]
        %v1672 = vld [vmem:[%s388 + $0x1f0] sm:$0xff]
        %v1673 = vpack.c.bf16 %v1642, %v1641
        %v1674 = vpack.c.bf16 %v1644, %v1643
        %v1675 = vpack.c.bf16 %v1646, %v1645
        %v1676 = vpack.c.bf16 %v1648, %v1647
        %v1677 = vpack.c.bf16 %v1650, %v1649
        %v1678 = vpack.c.bf16 %v1652, %v1651
        %v1679 = vpack.c.bf16 %v1654, %v1653
        %v1680 = vpack.c.bf16 %v1656, %v1655
        %v1681 = vpack.c.bf16 %v1658, %v1657
        %v1682 = vpack.c.bf16 %v1660, %v1659
        %v1683 = vpack.c.bf16 %v1662, %v1661
        %v1684 = vpack.c.bf16 %v1664, %v1663
        %v1685 = vpack.c.bf16 %v1666, %v1665
        %v1686 = vpack.c.bf16 %v1668, %v1667
        %v1687 = vpack.c.bf16 %v1670, %v1669
        %v1688 = vpack.c.bf16 %v1672, %v1671
        %v1689 = vld [vmem:[%s1 + $0x80] sm:$0xf]
        %v1690 = vld [vmem:[%s1 + $0x84] sm:$0xf]
        %v1691 = vld [vmem:[%s1 + $0x88] sm:$0xf]
        %v1692 = vld [vmem:[%s1 + $0x8c] sm:$0xf]
        %v1693 = vld [vmem:[%s1 + $0x90] sm:$0xf]
        %v1694 = vld [vmem:[%s1 + $0x94] sm:$0xf]
        %v1695 = vld [vmem:[%s1 + $0x98] sm:$0xf]
        %v1696 = vld [vmem:[%s1 + $0x9c] sm:$0xf]
        %v1705 = vunpack.c.l.b16 %v1689
        %v1706 = vunpack.c.l.b16 %v1690
        %v1707 = vunpack.c.l.b16 %v1691
        %v1708 = vunpack.c.l.b16 %v1692
        %v1709 = vunpack.c.l.b16 %v1693
        %v1710 = vunpack.c.l.b16 %v1694
        %v1711 = vunpack.c.l.b16 %v1695
        %v1712 = vunpack.c.l.b16 %v1696
        %v1713 = vpack.c.b16 %v1706, %v1705
        %v1714 = vpack.c.b16 %v1708, %v1707
        %v1715 = vpack.c.b16 %v1710, %v1709
        %v1716 = vpack.c.b16 %v1712, %v1711
        %v1722 = vsel %vm251, %v1673, 0
        %v1725 = vsel %vm251, %v1674, 0
        %v1728 = vsel %vm251, %v1675, 0
        %v1731 = vsel %vm251, %v1676, 0
        %v1734 = vsel %vm251, %v1677, 0
        %v1737 = vsel %vm251, %v1678, 0
        %v1740 = vsel %vm251, %v1679, 0
        %v1743 = vsel %vm251, %v1680, 0
        %v1746 = vsel %vm251, %v1681, 0
        %v1749 = vsel %vm251, %v1682, 0
        %v1752 = vsel %vm251, %v1683, 0
        %v1755 = vsel %vm251, %v1684, 0
        %v1758 = vsel %vm251, %v1685, 0
        %v1761 = vsel %vm251, %v1686, 0
        %v1764 = vsel %vm251, %v1687, 0
        %v1767 = vsel %vm251, %v1688, 0
        %1769 = vmatprep.subr.bf16.mxu0 0
        %1770 = vmatpush1.bf16.msra.mxu0 %v1713
        %1771 = vmatprep.subr.bf16.mxu0 0
        %1772 = vmatpush1.bf16.msra.mxu0 %v1714
        %1773 = vmatprep.subr.bf16.mxu0 0
        %1774 = vmatpush1.bf16.msra.mxu0 %v1715
        %1775 = vmatprep.subr.bf16.mxu0 0
        %1776 = vmatpush1.bf16.msra.mxu0 %v1716
        %1777 = vmatprep.subr.bf16.mxu0 0
        %1778 = vmatpush1.bf16.msra.mxu0 0
        %1779 = vmatprep.subr.bf16.mxu0 0
        %1780 = vmatpush1.bf16.msra.mxu0 0
        %1781 = vmatprep.subr.bf16.mxu0 0
        %1782 = vmatpush1.bf16.msra.mxu0 0
        %1783 = vmatprep.subr.bf16.mxu0 0
        %1784 = vmatpush1.bf16.msra.mxu0 0
        %1785 = vmatprep.subr.bf16.mxu0 0
        %1786 = vmatpush1.bf16.msra.mxu0 0
        %1787 = vmatprep.subr.bf16.mxu0 0
        %1788 = vmatpush1.bf16.msra.mxu0 0
        %1789 = vmatprep.subr.bf16.mxu0 0
        %1790 = vmatpush1.bf16.msra.mxu0 0
        %1791 = vmatprep.subr.bf16.mxu0 0
        %1792 = vmatpush1.bf16.msra.mxu0 0
        %1793 = vmatprep.subr.bf16.mxu0 0
        %1794 = vmatpush1.bf16.msra.mxu0 0
        %1795 = vmatprep.subr.bf16.mxu0 0
        %1796 = vmatpush1.bf16.msra.mxu0 0
        %1797 = vmatprep.subr.bf16.mxu0 0
        %1798 = vmatpush1.bf16.msra.mxu0 0
        %1799 = vmatprep.subr.bf16.mxu0 0
        %1800 = vmatpush1.bf16.msra.mxu0 0
        %1801 = vmatprep.mubr.bf16.mxu0 0
        %1802 = vmatmul.mubr.bf16.gmra.mrb[0].mxu0 %v1722
        %v1803 = vpop.f32.mrb[0].mxu0
        %v1804 = vadd.f32 0.0, %v1803
        %v1805 = vpop.f32.mrb[0].mxu0
        %v1806 = vpop.f32.mrb[0].mxu0
        %v1807 = vadd.f32 0.0, %v1806
        %v1808 = vpop.f32.mrb[0].mxu0
        %1809 = vmatprep.mubr.bf16.mxu0 0
        %1810 = vmatmul.mubr.bf16.gmra.mrb[0].mxu0 %v1725
        %v1811 = vpop.f32.mrb[0].mxu0
        %v1812 = vadd.f32 0.0, %v1811
        %v1813 = vpop.f32.mrb[0].mxu0
        %v1814 = vpop.f32.mrb[0].mxu0
        %v1815 = vadd.f32 0.0, %v1814
        %v1816 = vpop.f32.mrb[0].mxu0
        %1817 = vmatprep.mubr.bf16.mxu0 0
        %1818 = vmatmul.mubr.bf16.gmra.mrb[0].mxu0 %v1728
        %v1819 = vpop.f32.mrb[0].mxu0
        %v1820 = vadd.f32 0.0, %v1819
        %v1821 = vpop.f32.mrb[0].mxu0
        %v1822 = vpop.f32.mrb[0].mxu0
        %v1823 = vadd.f32 0.0, %v1822
        %v1824 = vpop.f32.mrb[0].mxu0
        %1825 = vmatprep.mubr.bf16.mxu0 0
        %1826 = vmatmul.mubr.bf16.gmra.mrb[0].mxu0 %v1731
        %v1827 = vpop.f32.mrb[0].mxu0
        %v1828 = vadd.f32 0.0, %v1827
        %v1829 = vpop.f32.mrb[0].mxu0
        %v1830 = vpop.f32.mrb[0].mxu0
        %v1831 = vadd.f32 0.0, %v1830
        %v1832 = vpop.f32.mrb[0].mxu0
        %1833 = vmatprep.mubr.bf16.mxu0 0
        %1834 = vmatmul.mubr.bf16.gmra.mrb[0].mxu0 %v1734
        %v1835 = vpop.f32.mrb[0].mxu0
        %v1836 = vadd.f32 0.0, %v1835
        %v1837 = vpop.f32.mrb[0].mxu0
        %v1838 = vpop.f32.mrb[0].mxu0
        %v1839 = vadd.f32 0.0, %v1838
        %v1840 = vpop.f32.mrb[0].mxu0
        %1841 = vmatprep.mubr.bf16.mxu0 0
        %1842 = vmatmul.mubr.bf16.gmra.mrb[0].mxu0 %v1737
        %v1843 = vpop.f32.mrb[0].mxu0
        %v1844 = vadd.f32 0.0, %v1843
        %v1845 = vpop.f32.mrb[0].mxu0
        %v1846 = vpop.f32.mrb[0].mxu0
        %v1847 = vadd.f32 0.0, %v1846
        %v1848 = vpop.f32.mrb[0].mxu0
        %1849 = vmatprep.mubr.bf16.mxu0 0
        %1850 = vmatmul.mubr.bf16.gmra.mrb[0].mxu0 %v1740
        %v1851 = vpop.f32.mrb[0].mxu0
        %v1852 = vadd.f32 0.0, %v1851
        %v1853 = vpop.f32.mrb[0].mxu0
        %v1854 = vpop.f32.mrb[0].mxu0
        %v1855 = vadd.f32 0.0, %v1854
        %v1856 = vpop.f32.mrb[0].mxu0
        %1857 = vmatprep.mubr.bf16.mxu0 0
        %1858 = vmatmul.mubr.bf16.gmra.mrb[0].mxu0 %v1743
        %v1859 = vpop.f32.mrb[0].mxu0
        %v1860 = vadd.f32 0.0, %v1859
        %v1861 = vpop.f32.mrb[0].mxu0
        %v1862 = vpop.f32.mrb[0].mxu0
        %v1863 = vadd.f32 0.0, %v1862
        %v1864 = vpop.f32.mrb[0].mxu0
        %1865 = vmatprep.mubr.bf16.mxu0 0
        %1866 = vmatmul.mubr.bf16.gmra.mrb[0].mxu0 %v1746
        %v1867 = vpop.f32.mrb[0].mxu0
        %v1868 = vadd.f32 0.0, %v1867
        %v1869 = vpop.f32.mrb[0].mxu0
        %v1870 = vpop.f32.mrb[0].mxu0
        %v1871 = vadd.f32 0.0, %v1870
        %v1872 = vpop.f32.mrb[0].mxu0
        %1873 = vmatprep.mubr.bf16.mxu0 0
        %1874 = vmatmul.mubr.bf16.gmra.mrb[0].mxu0 %v1749
        %v1875 = vpop.f32.mrb[0].mxu0
        %v1876 = vadd.f32 0.0, %v1875
        %v1877 = vpop.f32.mrb[0].mxu0
        %v1878 = vpop.f32.mrb[0].mxu0
        %v1879 = vadd.f32 0.0, %v1878
        %v1880 = vpop.f32.mrb[0].mxu0
        %1881 = vmatprep.mubr.bf16.mxu0 0
        %1882 = vmatmul.mubr.bf16.gmra.mrb[0].mxu0 %v1752
        %v1883 = vpop.f32.mrb[0].mxu0
        %v1884 = vadd.f32 0.0, %v1883
        %v1885 = vpop.f32.mrb[0].mxu0
        %v1886 = vpop.f32.mrb[0].mxu0
        %v1887 = vadd.f32 0.0, %v1886
        %v1888 = vpop.f32.mrb[0].mxu0
        %1889 = vmatprep.mubr.bf16.mxu0 0
        %1890 = vmatmul.mubr.bf16.gmra.mrb[0].mxu0 %v1755
        %v1891 = vpop.f32.mrb[0].mxu0
        %v1892 = vadd.f32 0.0, %v1891
        %v1893 = vpop.f32.mrb[0].mxu0
        %v1894 = vpop.f32.mrb[0].mxu0
        %v1895 = vadd.f32 0.0, %v1894
        %v1896 = vpop.f32.mrb[0].mxu0
        %1897 = vmatprep.mubr.bf16.mxu0 0
        %1898 = vmatmul.mubr.bf16.gmra.mrb[0].mxu0 %v1758
        %v1899 = vpop.f32.mrb[0].mxu0
        %v1900 = vadd.f32 0.0, %v1899
        %v1901 = vpop.f32.mrb[0].mxu0
        %v1902 = vpop.f32.mrb[0].mxu0
        %v1903 = vadd.f32 0.0, %v1902
        %v1904 = vpop.f32.mrb[0].mxu0
        %1905 = vmatprep.mubr.bf16.mxu0 0
        %1906 = vmatmul.mubr.bf16.gmra.mrb[0].mxu0 %v1761
        %v1907 = vpop.f32.mrb[0].mxu0
        %v1908 = vadd.f32 0.0, %v1907
        %v1909 = vpop.f32.mrb[0].mxu0
        %v1910 = vpop.f32.mrb[0].mxu0
        %v1911 = vadd.f32 0.0, %v1910
        %v1912 = vpop.f32.mrb[0].mxu0
        %1913 = vmatprep.mubr.bf16.mxu0 0
        %1914 = vmatmul.mubr.bf16.gmra.mrb[0].mxu0 %v1764
        %v1915 = vpop.f32.mrb[0].mxu0
        %v1916 = vadd.f32 0.0, %v1915
        %v1917 = vpop.f32.mrb[0].mxu0
        %v1918 = vpop.f32.mrb[0].mxu0
        %v1919 = vadd.f32 0.0, %v1918
        %v1920 = vpop.f32.mrb[0].mxu0
        %1921 = vmatprep.mubr.bf16.mxu0 0
        %1922 = vmatmul.mubr.bf16.gmra.mrb[0].mxu0 %v1767
        %v1923 = vpop.f32.mrb[0].mxu0
        %v1924 = vadd.f32 0.0, %v1923
        %v1925 = vpop.f32.mrb[0].mxu0
        %v1926 = vpop.f32.mrb[0].mxu0
        %v1927 = vadd.f32 0.0, %v1926
        %v1928 = vpop.f32.mrb[0].mxu0
        %1929 = vdwg.mxu0
        %v1930 = vadd.f32 %v1609, %v1804
        %v1931 = vadd.f32 %v1610, %v1807
        %v1932 = vadd.f32 %v1611, %v1812
        %v1933 = vadd.f32 %v1612, %v1815
        %v1934 = vadd.f32 %v1613, %v1820
        %v1935 = vadd.f32 %v1614, %v1823
        %v1936 = vadd.f32 %v1615, %v1828
        %v1937 = vadd.f32 %v1616, %v1831
        %v1938 = vadd.f32 %v1617, %v1836
        %v1939 = vadd.f32 %v1618, %v1839
        %v1940 = vadd.f32 %v1619, %v1844
        %v1941 = vadd.f32 %v1620, %v1847
        %v1942 = vadd.f32 %v1621, %v1852
        %v1943 = vadd.f32 %v1622, %v1855
        %v1944 = vadd.f32 %v1623, %v1860
        %v1945 = vadd.f32 %v1624, %v1863
        %v1946 = vadd.f32 %v1625, %v1868
        %v1947 = vadd.f32 %v1626, %v1871
        %v1948 = vadd.f32 %v1627, %v1876
        %v1949 = vadd.f32 %v1628, %v1879
        %v1950 = vadd.f32 %v1629, %v1884
        %v1951 = vadd.f32 %v1630, %v1887
        %v1952 = vadd.f32 %v1631, %v1892
        %v1953 = vadd.f32 %v1632, %v1895
        %v1954 = vadd.f32 %v1633, %v1900
        %v1955 = vadd.f32 %v1634, %v1903
        %v1956 = vadd.f32 %v1635, %v1908
        %v1957 = vadd.f32 %v1636, %v1911
        %v1958 = vadd.f32 %v1637, %v1916
        %v1959 = vadd.f32 %v1638, %v1919
        %v1960 = vadd.f32 %v1639, %v1924
        %v1961 = vadd.f32 %v1640, %v1927
        %v1962 = vld [vmem:[%s388 + $0x9] sm:$0xff]
        %v1963 = vld [vmem:[%s388 + $0x11] sm:$0xff]
        %v1964 = vld [vmem:[%s388 + $0x29] sm:$0xff]
        %v1965 = vld [vmem:[%s388 + $0x31] sm:$0xff]
        %v1966 = vld [vmem:[%s388 + $0x49] sm:$0xff]
        %v1967 = vld [vmem:[%s388 + $0x51] sm:$0xff]
        %v1968 = vld [vmem:[%s388 + $0x69] sm:$0xff]
        %v1969 = vld [vmem:[%s388 + $0x71] sm:$0xff]
        %v1970 = vld [vmem:[%s388 + $0x89] sm:$0xff]
        %v1971 = vld [vmem:[%s388 + $0x91] sm:$0xff]
        %v1972 = vld [vmem:[%s388 + $0xa9] sm:$0xff]
        %v1973 = vld [vmem:[%s388 + $0xb1] sm:$0xff]
        %v1974 = vld [vmem:[%s388 + $0xc9] sm:$0xff]
        %v1975 = vld [vmem:[%s388 + $0xd1] sm:$0xff]
        %v1976 = vld [vmem:[%s388 + $0xe9] sm:$0xff]
        %v1977 = vld [vmem:[%s388 + $0xf1] sm:$0xff]
        %v1978 = vld [vmem:[%s388 + $0x109] sm:$0xff]
        %v1979 = vld [vmem:[%s388 + $0x111] sm:$0xff]
        %v1980 = vld [vmem:[%s388 + $0x129] sm:$0xff]
        %v1981 = vld [vmem:[%s388 + $0x131] sm:$0xff]
        %v1982 = vld [vmem:[%s388 + $0x149] sm:$0xff]
        %v1983 = vld [vmem:[%s388 + $0x151] sm:$0xff]
        %v1984 = vld [vmem:[%s388 + $0x169] sm:$0xff]
        %v1985 = vld [vmem:[%s388 + $0x171] sm:$0xff]
        %v1986 = vld [vmem:[%s388 + $0x189] sm:$0xff]
        %v1987 = vld [vmem:[%s388 + $0x191] sm:$0xff]
        %v1988 = vld [vmem:[%s388 + $0x1a9] sm:$0xff]
        %v1989 = vld [vmem:[%s388 + $0x1b1] sm:$0xff]
        %v1990 = vld [vmem:[%s388 + $0x1c9] sm:$0xff]
        %v1991 = vld [vmem:[%s388 + $0x1d1] sm:$0xff]
        %v1992 = vld [vmem:[%s388 + $0x1e9] sm:$0xff]
        %v1993 = vld [vmem:[%s388 + $0x1f1] sm:$0xff]
        %v1994 = vpack.c.bf16 %v1963, %v1962
        %v1995 = vpack.c.bf16 %v1965, %v1964
        %v1996 = vpack.c.bf16 %v1967, %v1966
        %v1997 = vpack.c.bf16 %v1969, %v1968
        %v1998 = vpack.c.bf16 %v1971, %v1970
        %v1999 = vpack.c.bf16 %v1973, %v1972
        %v2000 = vpack.c.bf16 %v1975, %v1974
        %v2001 = vpack.c.bf16 %v1977, %v1976
        %v2002 = vpack.c.bf16 %v1979, %v1978
        %v2003 = vpack.c.bf16 %v1981, %v1980
        %v2004 = vpack.c.bf16 %v1983, %v1982
        %v2005 = vpack.c.bf16 %v1985, %v1984
        %v2006 = vpack.c.bf16 %v1987, %v1986
        %v2007 = vpack.c.bf16 %v1989, %v1988
        %v2008 = vpack.c.bf16 %v1991, %v1990
        %v2009 = vpack.c.bf16 %v1993, %v1992
        %v2010 = vld [vmem:[%s1 + $0xa0] sm:$0xf]
        %v2011 = vld [vmem:[%s1 + $0xa4] sm:$0xf]
        %v2012 = vld [vmem:[%s1 + $0xa8] sm:$0xf]
        %v2013 = vld [vmem:[%s1 + $0xac] sm:$0xf]
        %v2014 = vld [vmem:[%s1 + $0xb0] sm:$0xf]
        %v2015 = vld [vmem:[%s1 + $0xb4] sm:$0xf]
        %v2016 = vld [vmem:[%s1 + $0xb8] sm:$0xf]
        %v2017 = vld [vmem:[%s1 + $0xbc] sm:$0xf]
        %v2026 = vunpack.c.l.b16 %v2010
        %v2027 = vunpack.c.l.b16 %v2011
        %v2028 = vunpack.c.l.b16 %v2012
        %v2029 = vunpack.c.l.b16 %v2013
        %v2030 = vunpack.c.l.b16 %v2014
        %v2031 = vunpack.c.l.b16 %v2015
        %v2032 = vunpack.c.l.b16 %v2016
        %v2033 = vunpack.c.l.b16 %v2017
        %v2034 = vpack.c.b16 %v2027, %v2026
        %v2035 = vpack.c.b16 %v2029, %v2028
        %v2036 = vpack.c.b16 %v2031, %v2030
        %v2037 = vpack.c.b16 %v2033, %v2032
        %v2043 = vsel %vm251, %v1994, 0
        %v2046 = vsel %vm251, %v1995, 0
        %v2049 = vsel %vm251, %v1996, 0
        %v2052 = vsel %vm251, %v1997, 0
        %v2055 = vsel %vm251, %v1998, 0
        %v2058 = vsel %vm251, %v1999, 0
        %v2061 = vsel %vm251, %v2000, 0
        %v2064 = vsel %vm251, %v2001, 0
        %v2067 = vsel %vm251, %v2002, 0
        %v2070 = vsel %vm251, %v2003, 0
        %v2073 = vsel %vm251, %v2004, 0
        %v2076 = vsel %vm251, %v2005, 0
        %v2079 = vsel %vm251, %v2006, 0
        %v2082 = vsel %vm251, %v2007, 0
        %v2085 = vsel %vm251, %v2008, 0
        %v2088 = vsel %vm251, %v2009, 0
        %2090 = vmatprep.subr.bf16.mxu0 0
        %2091 = vmatpush1.bf16.msra.mxu0 %v2034
        %2092 = vmatprep.subr.bf16.mxu0 0
        %2093 = vmatpush1.bf16.msra.mxu0 %v2035
        %2094 = vmatprep.subr.bf16.mxu0 0
        %2095 = vmatpush1.bf16.msra.mxu0 %v2036
        %2096 = vmatprep.subr.bf16.mxu0 0
        %2097 = vmatpush1.bf16.msra.mxu0 %v2037
        %2098 = vmatprep.subr.bf16.mxu0 0
        %2099 = vmatpush1.bf16.msra.mxu0 0
        %2100 = vmatprep.subr.bf16.mxu0 0
        %2101 = vmatpush1.bf16.msra.mxu0 0
        %2102 = vmatprep.subr.bf16.mxu0 0
        %2103 = vmatpush1.bf16.msra.mxu0 0
        %2104 = vmatprep.subr.bf16.mxu0 0
        %2105 = vmatpush1.bf16.msra.mxu0 0
        %2106 = vmatprep.subr.bf16.mxu0 0
        %2107 = vmatpush1.bf16.msra.mxu0 0
        %2108 = vmatprep.subr.bf16.mxu0 0
        %2109 = vmatpush1.bf16.msra.mxu0 0
        %2110 = vmatprep.subr.bf16.mxu0 0
        %2111 = vmatpush1.bf16.msra.mxu0 0
        %2112 = vmatprep.subr.bf16.mxu0 0
        %2113 = vmatpush1.bf16.msra.mxu0 0
        %2114 = vmatprep.subr.bf16.mxu0 0
        %2115 = vmatpush1.bf16.msra.mxu0 0
        %2116 = vmatprep.subr.bf16.mxu0 0
        %2117 = vmatpush1.bf16.msra.mxu0 0
        %2118 = vmatprep.subr.bf16.mxu0 0
        %2119 = vmatpush1.bf16.msra.mxu0 0
        %2120 = vmatprep.subr.bf16.mxu0 0
        %2121 = vmatpush1.bf16.msra.mxu0 0
        %2122 = vmatprep.mubr.bf16.mxu0 0
        %2123 = vmatmul.mubr.bf16.gmra.mrb[0].mxu0 %v2043
        %v2124 = vpop.f32.mrb[0].mxu0
        %v2125 = vadd.f32 0.0, %v2124
        %v2126 = vpop.f32.mrb[0].mxu0
        %v2127 = vpop.f32.mrb[0].mxu0
        %v2128 = vadd.f32 0.0, %v2127
        %v2129 = vpop.f32.mrb[0].mxu0
        %2130 = vmatprep.mubr.bf16.mxu0 0
        %2131 = vmatmul.mubr.bf16.gmra.mrb[0].mxu0 %v2046
        %v2132 = vpop.f32.mrb[0].mxu0
        %v2133 = vadd.f32 0.0, %v2132
        %v2134 = vpop.f32.mrb[0].mxu0
        %v2135 = vpop.f32.mrb[0].mxu0
        %v2136 = vadd.f32 0.0, %v2135
        %v2137 = vpop.f32.mrb[0].mxu0
        %2138 = vmatprep.mubr.bf16.mxu0 0
        %2139 = vmatmul.mubr.bf16.gmra.mrb[0].mxu0 %v2049
        %v2140 = vpop.f32.mrb[0].mxu0
        %v2141 = vadd.f32 0.0, %v2140
        %v2142 = vpop.f32.mrb[0].mxu0
        %v2143 = vpop.f32.mrb[0].mxu0
        %v2144 = vadd.f32 0.0, %v2143
        %v2145 = vpop.f32.mrb[0].mxu0
        %2146 = vmatprep.mubr.bf16.mxu0 0
        %2147 = vmatmul.mubr.bf16.gmra.mrb[0].mxu0 %v2052
        %v2148 = vpop.f32.mrb[0].mxu0
        %v2149 = vadd.f32 0.0, %v2148
        %v2150 = vpop.f32.mrb[0].mxu0
        %v2151 = vpop.f32.mrb[0].mxu0
        %v2152 = vadd.f32 0.0, %v2151
        %v2153 = vpop.f32.mrb[0].mxu0
        %2154 = vmatprep.mubr.bf16.mxu0 0
        %2155 = vmatmul.mubr.bf16.gmra.mrb[0].mxu0 %v2055
        %v2156 = vpop.f32.mrb[0].mxu0
        %v2157 = vadd.f32 0.0, %v2156
        %v2158 = vpop.f32.mrb[0].mxu0
        %v2159 = vpop.f32.mrb[0].mxu0
        %v2160 = vadd.f32 0.0, %v2159
        %v2161 = vpop.f32.mrb[0].mxu0
        %2162 = vmatprep.mubr.bf16.mxu0 0
        %2163 = vmatmul.mubr.bf16.gmra.mrb[0].mxu0 %v2058
        %v2164 = vpop.f32.mrb[0].mxu0
        %v2165 = vadd.f32 0.0, %v2164
        %v2166 = vpop.f32.mrb[0].mxu0
        %v2167 = vpop.f32.mrb[0].mxu0
        %v2168 = vadd.f32 0.0, %v2167
        %v2169 = vpop.f32.mrb[0].mxu0
        %2170 = vmatprep.mubr.bf16.mxu0 0
        %2171 = vmatmul.mubr.bf16.gmra.mrb[0].mxu0 %v2061
        %v2172 = vpop.f32.mrb[0].mxu0
        %v2173 = vadd.f32 0.0, %v2172
        %v2174 = vpop.f32.mrb[0].mxu0
        %v2175 = vpop.f32.mrb[0].mxu0
        %v2176 = vadd.f32 0.0, %v2175
        %v2177 = vpop.f32.mrb[0].mxu0
        %2178 = vmatprep.mubr.bf16.mxu0 0
        %2179 = vmatmul.mubr.bf16.gmra.mrb[0].mxu0 %v2064
        %v2180 = vpop.f32.mrb[0].mxu0
        %v2181 = vadd.f32 0.0, %v2180
        %v2182 = vpop.f32.mrb[0].mxu0
        %v2183 = vpop.f32.mrb[0].mxu0
        %v2184 = vadd.f32 0.0, %v2183
        %v2185 = vpop.f32.mrb[0].mxu0
        %2186 = vmatprep.mubr.bf16.mxu0 0
        %2187 = vmatmul.mubr.bf16.gmra.mrb[0].mxu0 %v2067
        %v2188 = vpop.f32.mrb[0].mxu0
        %v2189 = vadd.f32 0.0, %v2188
        %v2190 = vpop.f32.mrb[0].mxu0
        %v2191 = vpop.f32.mrb[0].mxu0
        %v2192 = vadd.f32 0.0, %v2191
        %v2193 = vpop.f32.mrb[0].mxu0
        %2194 = vmatprep.mubr.bf16.mxu0 0
        %2195 = vmatmul.mubr.bf16.gmra.mrb[0].mxu0 %v2070
        %v2196 = vpop.f32.mrb[0].mxu0
        %v2197 = vadd.f32 0.0, %v2196
        %v2198 = vpop.f32.mrb[0].mxu0
        %v2199 = vpop.f32.mrb[0].mxu0
        %v2200 = vadd.f32 0.0, %v2199
        %v2201 = vpop.f32.mrb[0].mxu0
        %2202 = vmatprep.mubr.bf16.mxu0 0
        %2203 = vmatmul.mubr.bf16.gmra.mrb[0].mxu0 %v2073
        %v2204 = vpop.f32.mrb[0].mxu0
        %v2205 = vadd.f32 0.0, %v2204
        %v2206 = vpop.f32.mrb[0].mxu0
        %v2207 = vpop.f32.mrb[0].mxu0
        %v2208 = vadd.f32 0.0, %v2207
        %v2209 = vpop.f32.mrb[0].mxu0
        %2210 = vmatprep.mubr.bf16.mxu0 0
        %2211 = vmatmul.mubr.bf16.gmra.mrb[0].mxu0 %v2076
        %v2212 = vpop.f32.mrb[0].mxu0
        %v2213 = vadd.f32 0.0, %v2212
        %v2214 = vpop.f32.mrb[0].mxu0
        %v2215 = vpop.f32.mrb[0].mxu0
        %v2216 = vadd.f32 0.0, %v2215
        %v2217 = vpop.f32.mrb[0].mxu0
        %2218 = vmatprep.mubr.bf16.mxu0 0
        %2219 = vmatmul.mubr.bf16.gmra.mrb[0].mxu0 %v2079
        %v2220 = vpop.f32.mrb[0].mxu0
        %v2221 = vadd.f32 0.0, %v2220
        %v2222 = vpop.f32.mrb[0].mxu0
        %v2223 = vpop.f32.mrb[0].mxu0
        %v2224 = vadd.f32 0.0, %v2223
        %v2225 = vpop.f32.mrb[0].mxu0
        %2226 = vmatprep.mubr.bf16.mxu0 0
        %2227 = vmatmul.mubr.bf16.gmra.mrb[0].mxu0 %v2082
        %v2228 = vpop.f32.mrb[0].mxu0
        %v2229 = vadd.f32 0.0, %v2228
        %v2230 = vpop.f32.mrb[0].mxu0
        %v2231 = vpop.f32.mrb[0].mxu0
        %v2232 = vadd.f32 0.0, %v2231
        %v2233 = vpop.f32.mrb[0].mxu0
        %2234 = vmatprep.mubr.bf16.mxu0 0
        %2235 = vmatmul.mubr.bf16.gmra.mrb[0].mxu0 %v2085
        %v2236 = vpop.f32.mrb[0].mxu0
        %v2237 = vadd.f32 0.0, %v2236
        %v2238 = vpop.f32.mrb[0].mxu0
        %v2239 = vpop.f32.mrb[0].mxu0
        %v2240 = vadd.f32 0.0, %v2239
        %v2241 = vpop.f32.mrb[0].mxu0
        %2242 = vmatprep.mubr.bf16.mxu0 0
        %2243 = vmatmul.mubr.bf16.gmra.mrb[0].mxu0 %v2088
        %v2244 = vpop.f32.mrb[0].mxu0
        %v2245 = vadd.f32 0.0, %v2244
        %v2246 = vpop.f32.mrb[0].mxu0
        %v2247 = vpop.f32.mrb[0].mxu0
        %v2248 = vadd.f32 0.0, %v2247
        %v2249 = vpop.f32.mrb[0].mxu0
        %2250 = vdwg.mxu0
        %v2251 = vadd.f32 %v1930, %v2125
        %v2252 = vadd.f32 %v1931, %v2128
        %v2253 = vadd.f32 %v1932, %v2133
        %v2254 = vadd.f32 %v1933, %v2136
        %v2255 = vadd.f32 %v1934, %v2141
        %v2256 = vadd.f32 %v1935, %v2144
        %v2257 = vadd.f32 %v1936, %v2149
        %v2258 = vadd.f32 %v1937, %v2152
        %v2259 = vadd.f32 %v1938, %v2157
        %v2260 = vadd.f32 %v1939, %v2160
        %v2261 = vadd.f32 %v1940, %v2165
        %v2262 = vadd.f32 %v1941, %v2168
        %v2263 = vadd.f32 %v1942, %v2173
        %v2264 = vadd.f32 %v1943, %v2176
        %v2265 = vadd.f32 %v1944, %v2181
        %v2266 = vadd.f32 %v1945, %v2184
        %v2267 = vadd.f32 %v1946, %v2189
        %v2268 = vadd.f32 %v1947, %v2192
        %v2269 = vadd.f32 %v1948, %v2197
        %v2270 = vadd.f32 %v1949, %v2200
        %v2271 = vadd.f32 %v1950, %v2205
        %v2272 = vadd.f32 %v1951, %v2208
        %v2273 = vadd.f32 %v1952, %v2213
        %v2274 = vadd.f32 %v1953, %v2216
        %v2275 = vadd.f32 %v1954, %v2221
        %v2276 = vadd.f32 %v1955, %v2224
        %v2277 = vadd.f32 %v1956, %v2229
        %v2278 = vadd.f32 %v1957, %v2232
        %v2279 = vadd.f32 %v1958, %v2237
        %v2280 = vadd.f32 %v1959, %v2240
        %v2281 = vadd.f32 %v1960, %v2245
        %v2282 = vadd.f32 %v1961, %v2248
        %s2283 = scalar_lea.vmem [#allocation2], 64
        %v2284 = vld [vmem:[%s2283 + $0x7] sm:$0xff]
        %v2285 = vld [vmem:[%s2283 + $0xf] sm:$0xff]
        %v2286 = vld [vmem:[%s2283 + $0x27] sm:$0xff]
        %v2287 = vld [vmem:[%s2283 + $0x2f] sm:$0xff]
        %v2288 = vld [vmem:[%s2283 + $0x47] sm:$0xff]
        %v2289 = vld [vmem:[%s2283 + $0x4f] sm:$0xff]
        %v2290 = vld [vmem:[%s2283 + $0x67] sm:$0xff]
        %v2291 = vld [vmem:[%s2283 + $0x6f] sm:$0xff]
        %v2292 = vld [vmem:[%s2283 + $0x87] sm:$0xff]
        %v2293 = vld [vmem:[%s2283 + $0x8f] sm:$0xff]
        %v2294 = vld [vmem:[%s2283 + $0xa7] sm:$0xff]
        %v2295 = vld [vmem:[%s2283 + $0xaf] sm:$0xff]
        %v2296 = vld [vmem:[%s2283 + $0xc7] sm:$0xff]
        %v2297 = vld [vmem:[%s2283 + $0xcf] sm:$0xff]
        %v2298 = vld [vmem:[%s2283 + $0xe7] sm:$0xff]
        %v2299 = vld [vmem:[%s2283 + $0xef] sm:$0xff]
        %v2300 = vld [vmem:[%s2283 + $0x107] sm:$0xff]
        %v2301 = vld [vmem:[%s2283 + $0x10f] sm:$0xff]
        %v2302 = vld [vmem:[%s2283 + $0x127] sm:$0xff]
        %v2303 = vld [vmem:[%s2283 + $0x12f] sm:$0xff]
        %v2304 = vld [vmem:[%s2283 + $0x147] sm:$0xff]
        %v2305 = vld [vmem:[%s2283 + $0x14f] sm:$0xff]
        %v2306 = vld [vmem:[%s2283 + $0x167] sm:$0xff]
        %v2307 = vld [vmem:[%s2283 + $0x16f] sm:$0xff]
        %v2308 = vld [vmem:[%s2283 + $0x187] sm:$0xff]
        %v2309 = vld [vmem:[%s2283 + $0x18f] sm:$0xff]
        %v2310 = vld [vmem:[%s2283 + $0x1a7] sm:$0xff]
        %v2311 = vld [vmem:[%s2283 + $0x1af] sm:$0xff]
        %v2312 = vld [vmem:[%s2283 + $0x1c7] sm:$0xff]
        %v2313 = vld [vmem:[%s2283 + $0x1cf] sm:$0xff]
        %v2314 = vld [vmem:[%s2283 + $0x1e7] sm:$0xff]
        %v2315 = vld [vmem:[%s2283 + $0x1ef] sm:$0xff]
        %v2316 = vpack.c.bf16 %v2285, %v2284
        %v2317 = vpack.c.bf16 %v2287, %v2286
        %v2318 = vpack.c.bf16 %v2289, %v2288
        %v2319 = vpack.c.bf16 %v2291, %v2290
        %v2320 = vpack.c.bf16 %v2293, %v2292
        %v2321 = vpack.c.bf16 %v2295, %v2294
        %v2322 = vpack.c.bf16 %v2297, %v2296
        %v2323 = vpack.c.bf16 %v2299, %v2298
        %v2324 = vpack.c.bf16 %v2301, %v2300
        %v2325 = vpack.c.bf16 %v2303, %v2302
        %v2326 = vpack.c.bf16 %v2305, %v2304
        %v2327 = vpack.c.bf16 %v2307, %v2306
        %v2328 = vpack.c.bf16 %v2309, %v2308
        %v2329 = vpack.c.bf16 %v2311, %v2310
        %v2330 = vpack.c.bf16 %v2313, %v2312
        %v2331 = vpack.c.bf16 %v2315, %v2314
        %v2332 = vld [vmem:[%s1 + $0xc0] sm:$0xf]
        %v2333 = vld [vmem:[%s1 + $0xc4] sm:$0xf]
        %v2334 = vld [vmem:[%s1 + $0xc8] sm:$0xf]
        %v2335 = vld [vmem:[%s1 + $0xcc] sm:$0xf]
        %v2336 = vld [vmem:[%s1 + $0xd0] sm:$0xf]
        %v2337 = vld [vmem:[%s1 + $0xd4] sm:$0xf]
        %v2338 = vld [vmem:[%s1 + $0xd8] sm:$0xf]
        %v2339 = vld [vmem:[%s1 + $0xdc] sm:$0xf]
        %v2348 = vunpack.c.l.b16 %v2332
        %v2349 = vunpack.c.l.b16 %v2333
        %v2350 = vunpack.c.l.b16 %v2334
        %v2351 = vunpack.c.l.b16 %v2335
        %v2352 = vunpack.c.l.b16 %v2336
        %v2353 = vunpack.c.l.b16 %v2337
        %v2354 = vunpack.c.l.b16 %v2338
        %v2355 = vunpack.c.l.b16 %v2339
        %v2356 = vpack.c.b16 %v2349, %v2348
        %v2357 = vpack.c.b16 %v2351, %v2350
        %v2358 = vpack.c.b16 %v2353, %v2352
        %v2359 = vpack.c.b16 %v2355, %v2354
        %v2365 = vsel %vm251, %v2316, 0
        %v2368 = vsel %vm251, %v2317, 0
        %v2371 = vsel %vm251, %v2318, 0
        %v2374 = vsel %vm251, %v2319, 0
        %v2377 = vsel %vm251, %v2320, 0
        %v2380 = vsel %vm251, %v2321, 0
        %v2383 = vsel %vm251, %v2322, 0
        %v2386 = vsel %vm251, %v2323, 0
        %v2389 = vsel %vm251, %v2324, 0
        %v2392 = vsel %vm251, %v2325, 0
        %v2395 = vsel %vm251, %v2326, 0
        %v2398 = vsel %vm251, %v2327, 0
        %v2401 = vsel %vm251, %v2328, 0
        %v2404 = vsel %vm251, %v2329, 0
        %v2407 = vsel %vm251, %v2330, 0
        %v2410 = vsel %vm251, %v2331, 0
        %2412 = vmatprep.subr.bf16.mxu0 0
        %2413 = vmatpush1.bf16.msra.mxu0 %v2356
        %2414 = vmatprep.subr.bf16.mxu0 0
        %2415 = vmatpush1.bf16.msra.mxu0 %v2357
        %2416 = vmatprep.subr.bf16.mxu0 0
        %2417 = vmatpush1.bf16.msra.mxu0 %v2358
        %2418 = vmatprep.subr.bf16.mxu0 0
        %2419 = vmatpush1.bf16.msra.mxu0 %v2359
        %2420 = vmatprep.subr.bf16.mxu0 0
        %2421 = vmatpush1.bf16.msra.mxu0 0
        %2422 = vmatprep.subr.bf16.mxu0 0
        %2423 = vmatpush1.bf16.msra.mxu0 0
        %2424 = vmatprep.subr.bf16.mxu0 0
        %2425 = vmatpush1.bf16.msra.mxu0 0
        %2426 = vmatprep.subr.bf16.mxu0 0
        %2427 = vmatpush1.bf16.msra.mxu0 0
        %2428 = vmatprep.subr.bf16.mxu0 0
        %2429 = vmatpush1.bf16.msra.mxu0 0
        %2430 = vmatprep.subr.bf16.mxu0 0
        %2431 = vmatpush1.bf16.msra.mxu0 0
        %2432 = vmatprep.subr.bf16.mxu0 0
        %2433 = vmatpush1.bf16.msra.mxu0 0
        %2434 = vmatprep.subr.bf16.mxu0 0
        %2435 = vmatpush1.bf16.msra.mxu0 0
        %2436 = vmatprep.subr.bf16.mxu0 0
        %2437 = vmatpush1.bf16.msra.mxu0 0
        %2438 = vmatprep.subr.bf16.mxu0 0
        %2439 = vmatpush1.bf16.msra.mxu0 0
        %2440 = vmatprep.subr.bf16.mxu0 0
        %2441 = vmatpush1.bf16.msra.mxu0 0
        %2442 = vmatprep.subr.bf16.mxu0 0
        %2443 = vmatpush1.bf16.msra.mxu0 0
        %2444 = vmatprep.mubr.bf16.mxu0 0
        %2445 = vmatmul.mubr.bf16.gmra.mrb[0].mxu0 %v2365
        %v2446 = vpop.f32.mrb[0].mxu0
        %v2447 = vadd.f32 0.0, %v2446
        %v2448 = vpop.f32.mrb[0].mxu0
        %v2449 = vpop.f32.mrb[0].mxu0
        %v2450 = vadd.f32 0.0, %v2449
        %v2451 = vpop.f32.mrb[0].mxu0
        %2452 = vmatprep.mubr.bf16.mxu0 0
        %2453 = vmatmul.mubr.bf16.gmra.mrb[0].mxu0 %v2368
        %v2454 = vpop.f32.mrb[0].mxu0
        %v2455 = vadd.f32 0.0, %v2454
        %v2456 = vpop.f32.mrb[0].mxu0
        %v2457 = vpop.f32.mrb[0].mxu0
        %v2458 = vadd.f32 0.0, %v2457
        %v2459 = vpop.f32.mrb[0].mxu0
        %2460 = vmatprep.mubr.bf16.mxu0 0
        %2461 = vmatmul.mubr.bf16.gmra.mrb[0].mxu0 %v2371
        %v2462 = vpop.f32.mrb[0].mxu0
        %v2463 = vadd.f32 0.0, %v2462
        %v2464 = vpop.f32.mrb[0].mxu0
        %v2465 = vpop.f32.mrb[0].mxu0
        %v2466 = vadd.f32 0.0, %v2465
        %v2467 = vpop.f32.mrb[0].mxu0
        %2468 = vmatprep.mubr.bf16.mxu0 0
        %2469 = vmatmul.mubr.bf16.gmra.mrb[0].mxu0 %v2374
        %v2470 = vpop.f32.mrb[0].mxu0
        %v2471 = vadd.f32 0.0, %v2470
        %v2472 = vpop.f32.mrb[0].mxu0
        %v2473 = vpop.f32.mrb[0].mxu0
        %v2474 = vadd.f32 0.0, %v2473
        %v2475 = vpop.f32.mrb[0].mxu0
        %2476 = vmatprep.mubr.bf16.mxu0 0
        %2477 = vmatmul.mubr.bf16.gmra.mrb[0].mxu0 %v2377
        %v2478 = vpop.f32.mrb[0].mxu0
        %v2479 = vadd.f32 0.0, %v2478
        %v2480 = vpop.f32.mrb[0].mxu0
        %v2481 = vpop.f32.mrb[0].mxu0
        %v2482 = vadd.f32 0.0, %v2481
        %v2483 = vpop.f32.mrb[0].mxu0
        %2484 = vmatprep.mubr.bf16.mxu0 0
        %2485 = vmatmul.mubr.bf16.gmra.mrb[0].mxu0 %v2380
        %v2486 = vpop.f32.mrb[0].mxu0
        %v2487 = vadd.f32 0.0, %v2486
        %v2488 = vpop.f32.mrb[0].mxu0
        %v2489 = vpop.f32.mrb[0].mxu0
        %v2490 = vadd.f32 0.0, %v2489
        %v2491 = vpop.f32.mrb[0].mxu0
        %2492 = vmatprep.mubr.bf16.mxu0 0
        %2493 = vmatmul.mubr.bf16.gmra.mrb[0].mxu0 %v2383
        %v2494 = vpop.f32.mrb[0].mxu0
        %v2495 = vadd.f32 0.0, %v2494
        %v2496 = vpop.f32.mrb[0].mxu0
        %v2497 = vpop.f32.mrb[0].mxu0
        %v2498 = vadd.f32 0.0, %v2497
        %v2499 = vpop.f32.mrb[0].mxu0
        %2500 = vmatprep.mubr.bf16.mxu0 0
        %2501 = vmatmul.mubr.bf16.gmra.mrb[0].mxu0 %v2386
        %v2502 = vpop.f32.mrb[0].mxu0
        %v2503 = vadd.f32 0.0, %v2502
        %v2504 = vpop.f32.mrb[0].mxu0
        %v2505 = vpop.f32.mrb[0].mxu0
        %v2506 = vadd.f32 0.0, %v2505
        %v2507 = vpop.f32.mrb[0].mxu0
        %2508 = vmatprep.mubr.bf16.mxu0 0
        %2509 = vmatmul.mubr.bf16.gmra.mrb[0].mxu0 %v2389
        %v2510 = vpop.f32.mrb[0].mxu0
        %v2511 = vadd.f32 0.0, %v2510
        %v2512 = vpop.f32.mrb[0].mxu0
        %v2513 = vpop.f32.mrb[0].mxu0
        %v2514 = vadd.f32 0.0, %v2513
        %v2515 = vpop.f32.mrb[0].mxu0
        %2516 = vmatprep.mubr.bf16.mxu0 0
        %2517 = vmatmul.mubr.bf16.gmra.mrb[0].mxu0 %v2392
        %v2518 = vpop.f32.mrb[0].mxu0
        %v2519 = vadd.f32 0.0, %v2518
        %v2520 = vpop.f32.mrb[0].mxu0
        %v2521 = vpop.f32.mrb[0].mxu0
        %v2522 = vadd.f32 0.0, %v2521
        %v2523 = vpop.f32.mrb[0].mxu0
        %2524 = vmatprep.mubr.bf16.mxu0 0
        %2525 = vmatmul.mubr.bf16.gmra.mrb[0].mxu0 %v2395
        %v2526 = vpop.f32.mrb[0].mxu0
        %v2527 = vadd.f32 0.0, %v2526
        %v2528 = vpop.f32.mrb[0].mxu0
        %v2529 = vpop.f32.mrb[0].mxu0
        %v2530 = vadd.f32 0.0, %v2529
        %v2531 = vpop.f32.mrb[0].mxu0
        %2532 = vmatprep.mubr.bf16.mxu0 0
        %2533 = vmatmul.mubr.bf16.gmra.mrb[0].mxu0 %v2398
        %v2534 = vpop.f32.mrb[0].mxu0
        %v2535 = vadd.f32 0.0, %v2534
        %v2536 = vpop.f32.mrb[0].mxu0
        %v2537 = vpop.f32.mrb[0].mxu0
        %v2538 = vadd.f32 0.0, %v2537
        %v2539 = vpop.f32.mrb[0].mxu0
        %2540 = vmatprep.mubr.bf16.mxu0 0
        %2541 = vmatmul.mubr.bf16.gmra.mrb[0].mxu0 %v2401
        %v2542 = vpop.f32.mrb[0].mxu0
        %v2543 = vadd.f32 0.0, %v2542
        %v2544 = vpop.f32.mrb[0].mxu0
        %v2545 = vpop.f32.mrb[0].mxu0
        %v2546 = vadd.f32 0.0, %v2545
        %v2547 = vpop.f32.mrb[0].mxu0
        %2548 = vmatprep.mubr.bf16.mxu0 0
        %2549 = vmatmul.mubr.bf16.gmra.mrb[0].mxu0 %v2404
        %v2550 = vpop.f32.mrb[0].mxu0
        %v2551 = vadd.f32 0.0, %v2550
        %v2552 = vpop.f32.mrb[0].mxu0
        %v2553 = vpop.f32.mrb[0].mxu0
        %v2554 = vadd.f32 0.0, %v2553
        %v2555 = vpop.f32.mrb[0].mxu0
        %2556 = vmatprep.mubr.bf16.mxu0 0
        %2557 = vmatmul.mubr.bf16.gmra.mrb[0].mxu0 %v2407
        %v2558 = vpop.f32.mrb[0].mxu0
        %v2559 = vadd.f32 0.0, %v2558
        %v2560 = vpop.f32.mrb[0].mxu0
        %v2561 = vpop.f32.mrb[0].mxu0
        %v2562 = vadd.f32 0.0, %v2561
        %v2563 = vpop.f32.mrb[0].mxu0
        %2564 = vmatprep.mubr.bf16.mxu0 0
        %2565 = vmatmul.mubr.bf16.gmra.mrb[0].mxu0 %v2410
        %v2566 = vpop.f32.mrb[0].mxu0
        %v2567 = vadd.f32 0.0, %v2566
        %v2568 = vpop.f32.mrb[0].mxu0
        %v2569 = vpop.f32.mrb[0].mxu0
        %v2570 = vadd.f32 0.0, %v2569
        %v2571 = vpop.f32.mrb[0].mxu0
        %2572 = vdwg.mxu0
        %v2573 = vadd.f32 %v2251, %v2447
        %v2574 = vadd.f32 %v2252, %v2450
        %v2575 = vadd.f32 %v2253, %v2455
        %v2576 = vadd.f32 %v2254, %v2458
        %v2577 = vadd.f32 %v2255, %v2463
        %v2578 = vadd.f32 %v2256, %v2466
        %v2579 = vadd.f32 %v2257, %v2471
        %v2580 = vadd.f32 %v2258, %v2474
        %v2581 = vadd.f32 %v2259, %v2479
        %v2582 = vadd.f32 %v2260, %v2482
        %v2583 = vadd.f32 %v2261, %v2487
        %v2584 = vadd.f32 %v2262, %v2490
        %v2585 = vadd.f32 %v2263, %v2495
        %v2586 = vadd.f32 %v2264, %v2498
        %v2587 = vadd.f32 %v2265, %v2503
        %v2588 = vadd.f32 %v2266, %v2506
        %v2589 = vadd.f32 %v2267, %v2511
        %v2590 = vadd.f32 %v2268, %v2514
        %v2591 = vadd.f32 %v2269, %v2519
        %v2592 = vadd.f32 %v2270, %v2522
        %v2593 = vadd.f32 %v2271, %v2527
        %v2594 = vadd.f32 %v2272, %v2530
        %v2595 = vadd.f32 %v2273, %v2535
        %v2596 = vadd.f32 %v2274, %v2538
        %v2597 = vadd.f32 %v2275, %v2543
        %v2598 = vadd.f32 %v2276, %v2546
        %v2599 = vadd.f32 %v2277, %v2551
        %v2600 = vadd.f32 %v2278, %v2554
        %v2601 = vadd.f32 %v2279, %v2559
        %v2602 = vadd.f32 %v2280, %v2562
        %v2603 = vadd.f32 %v2281, %v2567
        %v2604 = vadd.f32 %v2282, %v2570
        %v2605 = vld [vmem:[%s2283 + $0x8] sm:$0xff]
        %v2606 = vld [vmem:[%s2283 + $0x10] sm:$0xff]
        %v2607 = vld [vmem:[%s2283 + $0x28] sm:$0xff]
        %v2608 = vld [vmem:[%s2283 + $0x30] sm:$0xff]
        %v2609 = vld [vmem:[%s2283 + $0x48] sm:$0xff]
        %v2610 = vld [vmem:[%s2283 + $0x50] sm:$0xff]
        %v2611 = vld [vmem:[%s2283 + $0x68] sm:$0xff]
        %v2612 = vld [vmem:[%s2283 + $0x70] sm:$0xff]
        %v2613 = vld [vmem:[%s2283 + $0x88] sm:$0xff]
        %v2614 = vld [vmem:[%s2283 + $0x90] sm:$0xff]
        %v2615 = vld [vmem:[%s2283 + $0xa8] sm:$0xff]
        %v2616 = vld [vmem:[%s2283 + $0xb0] sm:$0xff]
        %v2617 = vld [vmem:[%s2283 + $0xc8] sm:$0xff]
        %v2618 = vld [vmem:[%s2283 + $0xd0] sm:$0xff]
        %v2619 = vld [vmem:[%s2283 + $0xe8] sm:$0xff]
        %v2620 = vld [vmem:[%s2283 + $0xf0] sm:$0xff]
        %v2621 = vld [vmem:[%s2283 + $0x108] sm:$0xff]
        %v2622 = vld [vmem:[%s2283 + $0x110] sm:$0xff]
        %v2623 = vld [vmem:[%s2283 + $0x128] sm:$0xff]
        %v2624 = vld [vmem:[%s2283 + $0x130] sm:$0xff]
        %v2625 = vld [vmem:[%s2283 + $0x148] sm:$0xff]
        %v2626 = vld [vmem:[%s2283 + $0x150] sm:$0xff]
        %v2627 = vld [vmem:[%s2283 + $0x168] sm:$0xff]
        %v2628 = vld [vmem:[%s2283 + $0x170] sm:$0xff]
        %v2629 = vld [vmem:[%s2283 + $0x188] sm:$0xff]
        %v2630 = vld [vmem:[%s2283 + $0x190] sm:$0xff]
        %v2631 = vld [vmem:[%s2283 + $0x1a8] sm:$0xff]
        %v2632 = vld [vmem:[%s2283 + $0x1b0] sm:$0xff]
        %v2633 = vld [vmem:[%s2283 + $0x1c8] sm:$0xff]
        %v2634 = vld [vmem:[%s2283 + $0x1d0] sm:$0xff]
        %v2635 = vld [vmem:[%s2283 + $0x1e8] sm:$0xff]
        %v2636 = vld [vmem:[%s2283 + $0x1f0] sm:$0xff]
        %v2637 = vpack.c.bf16 %v2606, %v2605
        %v2638 = vpack.c.bf16 %v2608, %v2607
        %v2639 = vpack.c.bf16 %v2610, %v2609
        %v2640 = vpack.c.bf16 %v2612, %v2611
        %v2641 = vpack.c.bf16 %v2614, %v2613
        %v2642 = vpack.c.bf16 %v2616, %v2615
        %v2643 = vpack.c.bf16 %v2618, %v2617
        %v2644 = vpack.c.bf16 %v2620, %v2619
        %v2645 = vpack.c.bf16 %v2622, %v2621
        %v2646 = vpack.c.bf16 %v2624, %v2623
        %v2647 = vpack.c.bf16 %v2626, %v2625
        %v2648 = vpack.c.bf16 %v2628, %v2627
        %v2649 = vpack.c.bf16 %v2630, %v2629
        %v2650 = vpack.c.bf16 %v2632, %v2631
        %v2651 = vpack.c.bf16 %v2634, %v2633
        %v2652 = vpack.c.bf16 %v2636, %v2635
        %v2653 = vld [vmem:[%s1 + $0xe0] sm:$0xf]
        %v2654 = vld [vmem:[%s1 + $0xe4] sm:$0xf]
        %v2655 = vld [vmem:[%s1 + $0xe8] sm:$0xf]
        %v2656 = vld [vmem:[%s1 + $0xec] sm:$0xf]
        %v2657 = vld [vmem:[%s1 + $0xf0] sm:$0xf]
        %v2658 = vld [vmem:[%s1 + $0xf4] sm:$0xf]
        %v2659 = vld [vmem:[%s1 + $0xf8] sm:$0xf]
        %v2660 = vld [vmem:[%s1 + $0xfc] sm:$0xf]
        %v2669 = vunpack.c.l.b16 %v2653
        %v2670 = vunpack.c.l.b16 %v2654
        %v2671 = vunpack.c.l.b16 %v2655
        %v2672 = vunpack.c.l.b16 %v2656
        %v2673 = vunpack.c.l.b16 %v2657
        %v2674 = vunpack.c.l.b16 %v2658
        %v2675 = vunpack.c.l.b16 %v2659
        %v2676 = vunpack.c.l.b16 %v2660
        %v2677 = vpack.c.b16 %v2670, %v2669
        %v2678 = vpack.c.b16 %v2672, %v2671
        %v2679 = vpack.c.b16 %v2674, %v2673
        %v2680 = vpack.c.b16 %v2676, %v2675
        %v2686 = vsel %vm251, %v2637, 0
        %v2689 = vsel %vm251, %v2638, 0
        %v2692 = vsel %vm251, %v2639, 0
        %v2695 = vsel %vm251, %v2640, 0
        %v2698 = vsel %vm251, %v2641, 0
        %v2701 = vsel %vm251, %v2642, 0
        %v2704 = vsel %vm251, %v2643, 0
        %v2707 = vsel %vm251, %v2644, 0
        %v2710 = vsel %vm251, %v2645, 0
        %v2713 = vsel %vm251, %v2646, 0
        %v2716 = vsel %vm251, %v2647, 0
        %v2719 = vsel %vm251, %v2648, 0
        %v2722 = vsel %vm251, %v2649, 0
        %v2725 = vsel %vm251, %v2650, 0
        %v2728 = vsel %vm251, %v2651, 0
        %v2731 = vsel %vm251, %v2652, 0
        %2733 = vmatprep.subr.bf16.mxu0 0
        %2734 = vmatpush1.bf16.msra.mxu0 %v2677
        %2735 = vmatprep.subr.bf16.mxu0 0
        %2736 = vmatpush1.bf16.msra.mxu0 %v2678
        %2737 = vmatprep.subr.bf16.mxu0 0
        %2738 = vmatpush1.bf16.msra.mxu0 %v2679
        %2739 = vmatprep.subr.bf16.mxu0 0
        %2740 = vmatpush1.bf16.msra.mxu0 %v2680
        %2741 = vmatprep.subr.bf16.mxu0 0
        %2742 = vmatpush1.bf16.msra.mxu0 0
        %2743 = vmatprep.subr.bf16.mxu0 0
        %2744 = vmatpush1.bf16.msra.mxu0 0
        %2745 = vmatprep.subr.bf16.mxu0 0
        %2746 = vmatpush1.bf16.msra.mxu0 0
        %2747 = vmatprep.subr.bf16.mxu0 0
        %2748 = vmatpush1.bf16.msra.mxu0 0
        %2749 = vmatprep.subr.bf16.mxu0 0
        %2750 = vmatpush1.bf16.msra.mxu0 0
        %2751 = vmatprep.subr.bf16.mxu0 0
        %2752 = vmatpush1.bf16.msra.mxu0 0
        %2753 = vmatprep.subr.bf16.mxu0 0
        %2754 = vmatpush1.bf16.msra.mxu0 0
        %2755 = vmatprep.subr.bf16.mxu0 0
        %2756 = vmatpush1.bf16.msra.mxu0 0
        %2757 = vmatprep.subr.bf16.mxu0 0
        %2758 = vmatpush1.bf16.msra.mxu0 0
        %2759 = vmatprep.subr.bf16.mxu0 0
        %2760 = vmatpush1.bf16.msra.mxu0 0
        %2761 = vmatprep.subr.bf16.mxu0 0
        %2762 = vmatpush1.bf16.msra.mxu0 0
        %2763 = vmatprep.subr.bf16.mxu0 0
        %2764 = vmatpush1.bf16.msra.mxu0 0
        %2765 = vmatprep.mubr.bf16.mxu0 0
        %2766 = vmatmul.mubr.bf16.gmra.mrb[0].mxu0 %v2686
        %v2767 = vpop.f32.mrb[0].mxu0
        %v2768 = vadd.f32 0.0, %v2767
        %v2769 = vpop.f32.mrb[0].mxu0
        %v2770 = vpop.f32.mrb[0].mxu0
        %v2771 = vadd.f32 0.0, %v2770
        %v2772 = vpop.f32.mrb[0].mxu0
        %2773 = vmatprep.mubr.bf16.mxu0 0
        %2774 = vmatmul.mubr.bf16.gmra.mrb[0].mxu0 %v2689
        %v2775 = vpop.f32.mrb[0].mxu0
        %v2776 = vadd.f32 0.0, %v2775
        %v2777 = vpop.f32.mrb[0].mxu0
        %v2778 = vpop.f32.mrb[0].mxu0
        %v2779 = vadd.f32 0.0, %v2778
        %v2780 = vpop.f32.mrb[0].mxu0
        %2781 = vmatprep.mubr.bf16.mxu0 0
        %2782 = vmatmul.mubr.bf16.gmra.mrb[0].mxu0 %v2692
        %v2783 = vpop.f32.mrb[0].mxu0
        %v2784 = vadd.f32 0.0, %v2783
        %v2785 = vpop.f32.mrb[0].mxu0
        %v2786 = vpop.f32.mrb[0].mxu0
        %v2787 = vadd.f32 0.0, %v2786
        %v2788 = vpop.f32.mrb[0].mxu0
        %2789 = vmatprep.mubr.bf16.mxu0 0
        %2790 = vmatmul.mubr.bf16.gmra.mrb[0].mxu0 %v2695
        %v2791 = vpop.f32.mrb[0].mxu0
        %v2792 = vadd.f32 0.0, %v2791
        %v2793 = vpop.f32.mrb[0].mxu0
        %v2794 = vpop.f32.mrb[0].mxu0
        %v2795 = vadd.f32 0.0, %v2794
        %v2796 = vpop.f32.mrb[0].mxu0
        %2797 = vmatprep.mubr.bf16.mxu0 0
        %2798 = vmatmul.mubr.bf16.gmra.mrb[0].mxu0 %v2698
        %v2799 = vpop.f32.mrb[0].mxu0
        %v2800 = vadd.f32 0.0, %v2799
        %v2801 = vpop.f32.mrb[0].mxu0
        %v2802 = vpop.f32.mrb[0].mxu0
        %v2803 = vadd.f32 0.0, %v2802
        %v2804 = vpop.f32.mrb[0].mxu0
        %2805 = vmatprep.mubr.bf16.mxu0 0
        %2806 = vmatmul.mubr.bf16.gmra.mrb[0].mxu0 %v2701
        %v2807 = vpop.f32.mrb[0].mxu0
        %v2808 = vadd.f32 0.0, %v2807
        %v2809 = vpop.f32.mrb[0].mxu0
        %v2810 = vpop.f32.mrb[0].mxu0
        %v2811 = vadd.f32 0.0, %v2810
        %v2812 = vpop.f32.mrb[0].mxu0
        %2813 = vmatprep.mubr.bf16.mxu0 0
        %2814 = vmatmul.mubr.bf16.gmra.mrb[0].mxu0 %v2704
        %v2815 = vpop.f32.mrb[0].mxu0
        %v2816 = vadd.f32 0.0, %v2815
        %v2817 = vpop.f32.mrb[0].mxu0
        %v2818 = vpop.f32.mrb[0].mxu0
        %v2819 = vadd.f32 0.0, %v2818
        %v2820 = vpop.f32.mrb[0].mxu0
        %2821 = vmatprep.mubr.bf16.mxu0 0
        %2822 = vmatmul.mubr.bf16.gmra.mrb[0].mxu0 %v2707
        %v2823 = vpop.f32.mrb[0].mxu0
        %v2824 = vadd.f32 0.0, %v2823
        %v2825 = vpop.f32.mrb[0].mxu0
        %v2826 = vpop.f32.mrb[0].mxu0
        %v2827 = vadd.f32 0.0, %v2826
        %v2828 = vpop.f32.mrb[0].mxu0
        %2829 = vmatprep.mubr.bf16.mxu0 0
        %2830 = vmatmul.mubr.bf16.gmra.mrb[0].mxu0 %v2710
        %v2831 = vpop.f32.mrb[0].mxu0
        %v2832 = vadd.f32 0.0, %v2831
        %v2833 = vpop.f32.mrb[0].mxu0
        %v2834 = vpop.f32.mrb[0].mxu0
        %v2835 = vadd.f32 0.0, %v2834
        %v2836 = vpop.f32.mrb[0].mxu0
        %2837 = vmatprep.mubr.bf16.mxu0 0
        %2838 = vmatmul.mubr.bf16.gmra.mrb[0].mxu0 %v2713
        %v2839 = vpop.f32.mrb[0].mxu0
        %v2840 = vadd.f32 0.0, %v2839
        %v2841 = vpop.f32.mrb[0].mxu0
        %v2842 = vpop.f32.mrb[0].mxu0
        %v2843 = vadd.f32 0.0, %v2842
        %v2844 = vpop.f32.mrb[0].mxu0
        %2845 = vmatprep.mubr.bf16.mxu0 0
        %2846 = vmatmul.mubr.bf16.gmra.mrb[0].mxu0 %v2716
        %v2847 = vpop.f32.mrb[0].mxu0
        %v2848 = vadd.f32 0.0, %v2847
        %v2849 = vpop.f32.mrb[0].mxu0
        %v2850 = vpop.f32.mrb[0].mxu0
        %v2851 = vadd.f32 0.0, %v2850
        %v2852 = vpop.f32.mrb[0].mxu0
        %2853 = vmatprep.mubr.bf16.mxu0 0
        %2854 = vmatmul.mubr.bf16.gmra.mrb[0].mxu0 %v2719
        %v2855 = vpop.f32.mrb[0].mxu0
        %v2856 = vadd.f32 0.0, %v2855
        %v2857 = vpop.f32.mrb[0].mxu0
        %v2858 = vpop.f32.mrb[0].mxu0
        %v2859 = vadd.f32 0.0, %v2858
        %v2860 = vpop.f32.mrb[0].mxu0
        %2861 = vmatprep.mubr.bf16.mxu0 0
        %2862 = vmatmul.mubr.bf16.gmra.mrb[0].mxu0 %v2722
        %v2863 = vpop.f32.mrb[0].mxu0
        %v2864 = vadd.f32 0.0, %v2863
        %v2865 = vpop.f32.mrb[0].mxu0
        %v2866 = vpop.f32.mrb[0].mxu0
        %v2867 = vadd.f32 0.0, %v2866
        %v2868 = vpop.f32.mrb[0].mxu0
        %2869 = vmatprep.mubr.bf16.mxu0 0
        %2870 = vmatmul.mubr.bf16.gmra.mrb[0].mxu0 %v2725
        %v2871 = vpop.f32.mrb[0].mxu0
        %v2872 = vadd.f32 0.0, %v2871
        %v2873 = vpop.f32.mrb[0].mxu0
        %v2874 = vpop.f32.mrb[0].mxu0
        %v2875 = vadd.f32 0.0, %v2874
        %v2876 = vpop.f32.mrb[0].mxu0
        %2877 = vmatprep.mubr.bf16.mxu0 0
        %2878 = vmatmul.mubr.bf16.gmra.mrb[0].mxu0 %v2728
        %v2879 = vpop.f32.mrb[0].mxu0
        %v2880 = vadd.f32 0.0, %v2879
        %v2881 = vpop.f32.mrb[0].mxu0
        %v2882 = vpop.f32.mrb[0].mxu0
        %v2883 = vadd.f32 0.0, %v2882
        %v2884 = vpop.f32.mrb[0].mxu0
        %2885 = vmatprep.mubr.bf16.mxu0 0
        %2886 = vmatmul.mubr.bf16.gmra.mrb[0].mxu0 %v2731
        %v2887 = vpop.f32.mrb[0].mxu0
        %v2888 = vadd.f32 0.0, %v2887
        %v2889 = vpop.f32.mrb[0].mxu0
        %v2890 = vpop.f32.mrb[0].mxu0
        %v2891 = vadd.f32 0.0, %v2890
        %v2892 = vpop.f32.mrb[0].mxu0
        %2893 = vdwg.mxu0
        %v2894 = vadd.f32 %v2573, %v2768
        %v2895 = vadd.f32 %v2574, %v2771
        %v2896 = vadd.f32 %v2575, %v2776
        %v2897 = vadd.f32 %v2576, %v2779
        %v2898 = vadd.f32 %v2577, %v2784
        %v2899 = vadd.f32 %v2578, %v2787
        %v2900 = vadd.f32 %v2579, %v2792
        %v2901 = vadd.f32 %v2580, %v2795
        %v2902 = vadd.f32 %v2581, %v2800
        %v2903 = vadd.f32 %v2582, %v2803
        %v2904 = vadd.f32 %v2583, %v2808
        %v2905 = vadd.f32 %v2584, %v2811
        %v2906 = vadd.f32 %v2585, %v2816
        %v2907 = vadd.f32 %v2586, %v2819
        %v2908 = vadd.f32 %v2587, %v2824
        %v2909 = vadd.f32 %v2588, %v2827
        %v2910 = vadd.f32 %v2589, %v2832
        %v2911 = vadd.f32 %v2590, %v2835
        %v2912 = vadd.f32 %v2591, %v2840
        %v2913 = vadd.f32 %v2592, %v2843
        %v2914 = vadd.f32 %v2593, %v2848
        %v2915 = vadd.f32 %v2594, %v2851
        %v2916 = vadd.f32 %v2595, %v2856
        %v2917 = vadd.f32 %v2596, %v2859
        %v2918 = vadd.f32 %v2597, %v2864
        %v2919 = vadd.f32 %v2598, %v2867
        %v2920 = vadd.f32 %v2599, %v2872
        %v2921 = vadd.f32 %v2600, %v2875
        %v2922 = vadd.f32 %v2601, %v2880
        %v2923 = vadd.f32 %v2602, %v2883
        %v2924 = vadd.f32 %v2603, %v2888
        %v2925 = vadd.f32 %v2604, %v2891
        %v2926 = vld [vmem:[%s2283 + $0x9] sm:$0xff]
        %v2927 = vld [vmem:[%s2283 + $0x11] sm:$0xff]
        %v2928 = vld [vmem:[%s2283 + $0x29] sm:$0xff]
        %v2929 = vld [vmem:[%s2283 + $0x31] sm:$0xff]
        %v2930 = vld [vmem:[%s2283 + $0x49] sm:$0xff]
        %v2931 = vld [vmem:[%s2283 + $0x51] sm:$0xff]
        %v2932 = vld [vmem:[%s2283 + $0x69] sm:$0xff]
        %v2933 = vld [vmem:[%s2283 + $0x71] sm:$0xff]
        %v2934 = vld [vmem:[%s2283 + $0x89] sm:$0xff]
        %v2935 = vld [vmem:[%s2283 + $0x91] sm:$0xff]
        %v2936 = vld [vmem:[%s2283 + $0xa9] sm:$0xff]
        %v2937 = vld [vmem:[%s2283 + $0xb1] sm:$0xff]
        %v2938 = vld [vmem:[%s2283 + $0xc9] sm:$0xff]
        %v2939 = vld [vmem:[%s2283 + $0xd1] sm:$0xff]
        %v2940 = vld [vmem:[%s2283 + $0xe9] sm:$0xff]
        %v2941 = vld [vmem:[%s2283 + $0xf1] sm:$0xff]
        %v2942 = vld [vmem:[%s2283 + $0x109] sm:$0xff]
        %v2943 = vld [vmem:[%s2283 + $0x111] sm:$0xff]
        %v2944 = vld [vmem:[%s2283 + $0x129] sm:$0xff]
        %v2945 = vld [vmem:[%s2283 + $0x131] sm:$0xff]
        %v2946 = vld [vmem:[%s2283 + $0x149] sm:$0xff]
        %v2947 = vld [vmem:[%s2283 + $0x151] sm:$0xff]
        %v2948 = vld [vmem:[%s2283 + $0x169] sm:$0xff]
        %v2949 = vld [vmem:[%s2283 + $0x171] sm:$0xff]
        %v2950 = vld [vmem:[%s2283 + $0x189] sm:$0xff]
        %v2951 = vld [vmem:[%s2283 + $0x191] sm:$0xff]
        %v2952 = vld [vmem:[%s2283 + $0x1a9] sm:$0xff]
        %v2953 = vld [vmem:[%s2283 + $0x1b1] sm:$0xff]
        %v2954 = vld [vmem:[%s2283 + $0x1c9] sm:$0xff]
        %v2955 = vld [vmem:[%s2283 + $0x1d1] sm:$0xff]
        %v2956 = vld [vmem:[%s2283 + $0x1e9] sm:$0xff]
        %v2957 = vld [vmem:[%s2283 + $0x1f1] sm:$0xff]
        %v2958 = vpack.c.bf16 %v2927, %v2926
        %v2959 = vpack.c.bf16 %v2929, %v2928
        %v2960 = vpack.c.bf16 %v2931, %v2930
        %v2961 = vpack.c.bf16 %v2933, %v2932
        %v2962 = vpack.c.bf16 %v2935, %v2934
        %v2963 = vpack.c.bf16 %v2937, %v2936
        %v2964 = vpack.c.bf16 %v2939, %v2938
        %v2965 = vpack.c.bf16 %v2941, %v2940
        %v2966 = vpack.c.bf16 %v2943, %v2942
        %v2967 = vpack.c.bf16 %v2945, %v2944
        %v2968 = vpack.c.bf16 %v2947, %v2946
        %v2969 = vpack.c.bf16 %v2949, %v2948
        %v2970 = vpack.c.bf16 %v2951, %v2950
        %v2971 = vpack.c.bf16 %v2953, %v2952
        %v2972 = vpack.c.bf16 %v2955, %v2954
        %v2973 = vpack.c.bf16 %v2957, %v2956
        %v2974 = vld [vmem:[%s1 + $0x100] sm:$0xf]
        %v2975 = vld [vmem:[%s1 + $0x104] sm:$0xf]
        %v2976 = vld [vmem:[%s1 + $0x108] sm:$0xf]
        %v2977 = vld [vmem:[%s1 + $0x10c] sm:$0xf]
        %v2978 = vld [vmem:[%s1 + $0x110] sm:$0xf]
        %v2979 = vld [vmem:[%s1 + $0x114] sm:$0xf]
        %v2980 = vld [vmem:[%s1 + $0x118] sm:$0xf]
        %v2981 = vld [vmem:[%s1 + $0x11c] sm:$0xf]
        %v2990 = vunpack.c.l.b16 %v2974
        %v2991 = vunpack.c.l.b16 %v2975
        %v2992 = vunpack.c.l.b16 %v2976
        %v2993 = vunpack.c.l.b16 %v2977
        %v2994 = vunpack.c.l.b16 %v2978
        %v2995 = vunpack.c.l.b16 %v2979
        %v2996 = vunpack.c.l.b16 %v2980
        %v2997 = vunpack.c.l.b16 %v2981
        %v2998 = vpack.c.b16 %v2991, %v2990
        %v2999 = vpack.c.b16 %v2993, %v2992
        %v3000 = vpack.c.b16 %v2995, %v2994
        %v3001 = vpack.c.b16 %v2997, %v2996
        %v3007 = vsel %vm251, %v2958, 0
        %v3010 = vsel %vm251, %v2959, 0
        %v3013 = vsel %vm251, %v2960, 0
        %v3016 = vsel %vm251, %v2961, 0
        %v3019 = vsel %vm251, %v2962, 0
        %v3022 = vsel %vm251, %v2963, 0
        %v3025 = vsel %vm251, %v2964, 0
        %v3028 = vsel %vm251, %v2965, 0
        %v3031 = vsel %vm251, %v2966, 0
        %v3034 = vsel %vm251, %v2967, 0
        %v3037 = vsel %vm251, %v2968, 0
        %v3040 = vsel %vm251, %v2969, 0
        %v3043 = vsel %vm251, %v2970, 0
        %v3046 = vsel %vm251, %v2971, 0
        %v3049 = vsel %vm251, %v2972, 0
        %v3052 = vsel %vm251, %v2973, 0
        %3054 = vmatprep.subr.bf16.mxu0 0
        %3055 = vmatpush1.bf16.msra.mxu0 %v2998
        %3056 = vmatprep.subr.bf16.mxu0 0
        %3057 = vmatpush1.bf16.msra.mxu0 %v2999
        %3058 = vmatprep.subr.bf16.mxu0 0
        %3059 = vmatpush1.bf16.msra.mxu0 %v3000
        %3060 = vmatprep.subr.bf16.mxu0 0
        %3061 = vmatpush1.bf16.msra.mxu0 %v3001
        %3062 = vmatprep.subr.bf16.mxu0 0
        %3063 = vmatpush1.bf16.msra.mxu0 0
        %3064 = vmatprep.subr.bf16.mxu0 0
        %3065 = vmatpush1.bf16.msra.mxu0 0
        %3066 = vmatprep.subr.bf16.mxu0 0
        %3067 = vmatpush1.bf16.msra.mxu0 0
        %3068 = vmatprep.subr.bf16.mxu0 0
        %3069 = vmatpush1.bf16.msra.mxu0 0
        %3070 = vmatprep.subr.bf16.mxu0 0
        %3071 = vmatpush1.bf16.msra.mxu0 0
        %3072 = vmatprep.subr.bf16.mxu0 0
        %3073 = vmatpush1.bf16.msra.mxu0 0
        %3074 = vmatprep.subr.bf16.mxu0 0
        %3075 = vmatpush1.bf16.msra.mxu0 0
        %3076 = vmatprep.subr.bf16.mxu0 0
        %3077 = vmatpush1.bf16.msra.mxu0 0
        %3078 = vmatprep.subr.bf16.mxu0 0
        %3079 = vmatpush1.bf16.msra.mxu0 0
        %3080 = vmatprep.subr.bf16.mxu0 0
        %3081 = vmatpush1.bf16.msra.mxu0 0
        %3082 = vmatprep.subr.bf16.mxu0 0
        %3083 = vmatpush1.bf16.msra.mxu0 0
        %3084 = vmatprep.subr.bf16.mxu0 0
        %3085 = vmatpush1.bf16.msra.mxu0 0
        %3086 = vmatprep.mubr.bf16.mxu0 0
        %3087 = vmatmul.mubr.bf16.gmra.mrb[0].mxu0 %v3007
        %v3088 = vpop.f32.mrb[0].mxu0
        %v3089 = vadd.f32 0.0, %v3088
        %v3090 = vpop.f32.mrb[0].mxu0
        %v3091 = vpop.f32.mrb[0].mxu0
        %v3092 = vadd.f32 0.0, %v3091
        %v3093 = vpop.f32.mrb[0].mxu0
        %3094 = vmatprep.mubr.bf16.mxu0 0
        %3095 = vmatmul.mubr.bf16.gmra.mrb[0].mxu0 %v3010
        %v3096 = vpop.f32.mrb[0].mxu0
        %v3097 = vadd.f32 0.0, %v3096
        %v3098 = vpop.f32.mrb[0].mxu0
        %v3099 = vpop.f32.mrb[0].mxu0
        %v3100 = vadd.f32 0.0, %v3099
        %v3101 = vpop.f32.mrb[0].mxu0
        %3102 = vmatprep.mubr.bf16.mxu0 0
        %3103 = vmatmul.mubr.bf16.gmra.mrb[0].mxu0 %v3013
        %v3104 = vpop.f32.mrb[0].mxu0
        %v3105 = vadd.f32 0.0, %v3104
        %v3106 = vpop.f32.mrb[0].mxu0
        %v3107 = vpop.f32.mrb[0].mxu0
        %v3108 = vadd.f32 0.0, %v3107
        %v3109 = vpop.f32.mrb[0].mxu0
        %3110 = vmatprep.mubr.bf16.mxu0 0
        %3111 = vmatmul.mubr.bf16.gmra.mrb[0].mxu0 %v3016
        %v3112 = vpop.f32.mrb[0].mxu0
        %v3113 = vadd.f32 0.0, %v3112
        %v3114 = vpop.f32.mrb[0].mxu0
        %v3115 = vpop.f32.mrb[0].mxu0
        %v3116 = vadd.f32 0.0, %v3115
        %v3117 = vpop.f32.mrb[0].mxu0
        %3118 = vmatprep.mubr.bf16.mxu0 0
        %3119 = vmatmul.mubr.bf16.gmra.mrb[0].mxu0 %v3019
        %v3120 = vpop.f32.mrb[0].mxu0
        %v3121 = vadd.f32 0.0, %v3120
        %v3122 = vpop.f32.mrb[0].mxu0
        %v3123 = vpop.f32.mrb[0].mxu0
        %v3124 = vadd.f32 0.0, %v3123
        %v3125 = vpop.f32.mrb[0].mxu0
        %3126 = vmatprep.mubr.bf16.mxu0 0
        %3127 = vmatmul.mubr.bf16.gmra.mrb[0].mxu0 %v3022
        %v3128 = vpop.f32.mrb[0].mxu0
        %v3129 = vadd.f32 0.0, %v3128
        %v3130 = vpop.f32.mrb[0].mxu0
        %v3131 = vpop.f32.mrb[0].mxu0
        %v3132 = vadd.f32 0.0, %v3131
        %v3133 = vpop.f32.mrb[0].mxu0
        %3134 = vmatprep.mubr.bf16.mxu0 0
        %3135 = vmatmul.mubr.bf16.gmra.mrb[0].mxu0 %v3025
        %v3136 = vpop.f32.mrb[0].mxu0
        %v3137 = vadd.f32 0.0, %v3136
        %v3138 = vpop.f32.mrb[0].mxu0
        %v3139 = vpop.f32.mrb[0].mxu0
        %v3140 = vadd.f32 0.0, %v3139
        %v3141 = vpop.f32.mrb[0].mxu0
        %3142 = vmatprep.mubr.bf16.mxu0 0
        %3143 = vmatmul.mubr.bf16.gmra.mrb[0].mxu0 %v3028
        %v3144 = vpop.f32.mrb[0].mxu0
        %v3145 = vadd.f32 0.0, %v3144
        %v3146 = vpop.f32.mrb[0].mxu0
        %v3147 = vpop.f32.mrb[0].mxu0
        %v3148 = vadd.f32 0.0, %v3147
        %v3149 = vpop.f32.mrb[0].mxu0
        %3150 = vmatprep.mubr.bf16.mxu0 0
        %3151 = vmatmul.mubr.bf16.gmra.mrb[0].mxu0 %v3031
        %v3152 = vpop.f32.mrb[0].mxu0
        %v3153 = vadd.f32 0.0, %v3152
        %v3154 = vpop.f32.mrb[0].mxu0
        %v3155 = vpop.f32.mrb[0].mxu0
        %v3156 = vadd.f32 0.0, %v3155
        %v3157 = vpop.f32.mrb[0].mxu0
        %3158 = vmatprep.mubr.bf16.mxu0 0
        %3159 = vmatmul.mubr.bf16.gmra.mrb[0].mxu0 %v3034
        %v3160 = vpop.f32.mrb[0].mxu0
        %v3161 = vadd.f32 0.0, %v3160
        %v3162 = vpop.f32.mrb[0].mxu0
        %v3163 = vpop.f32.mrb[0].mxu0
        %v3164 = vadd.f32 0.0, %v3163
        %v3165 = vpop.f32.mrb[0].mxu0
        %3166 = vmatprep.mubr.bf16.mxu0 0
        %3167 = vmatmul.mubr.bf16.gmra.mrb[0].mxu0 %v3037
        %v3168 = vpop.f32.mrb[0].mxu0
        %v3169 = vadd.f32 0.0, %v3168
        %v3170 = vpop.f32.mrb[0].mxu0
        %v3171 = vpop.f32.mrb[0].mxu0
        %v3172 = vadd.f32 0.0, %v3171
        %v3173 = vpop.f32.mrb[0].mxu0
        %3174 = vmatprep.mubr.bf16.mxu0 0
        %3175 = vmatmul.mubr.bf16.gmra.mrb[0].mxu0 %v3040
        %v3176 = vpop.f32.mrb[0].mxu0
        %v3177 = vadd.f32 0.0, %v3176
        %v3178 = vpop.f32.mrb[0].mxu0
        %v3179 = vpop.f32.mrb[0].mxu0
        %v3180 = vadd.f32 0.0, %v3179
        %v3181 = vpop.f32.mrb[0].mxu0
        %3182 = vmatprep.mubr.bf16.mxu0 0
        %3183 = vmatmul.mubr.bf16.gmra.mrb[0].mxu0 %v3043
        %v3184 = vpop.f32.mrb[0].mxu0
        %v3185 = vadd.f32 0.0, %v3184
        %v3186 = vpop.f32.mrb[0].mxu0
        %v3187 = vpop.f32.mrb[0].mxu0
        %v3188 = vadd.f32 0.0, %v3187
        %v3189 = vpop.f32.mrb[0].mxu0
        %3190 = vmatprep.mubr.bf16.mxu0 0
        %3191 = vmatmul.mubr.bf16.gmra.mrb[0].mxu0 %v3046
        %v3192 = vpop.f32.mrb[0].mxu0
        %v3193 = vadd.f32 0.0, %v3192
        %v3194 = vpop.f32.mrb[0].mxu0
        %v3195 = vpop.f32.mrb[0].mxu0
        %v3196 = vadd.f32 0.0, %v3195
        %v3197 = vpop.f32.mrb[0].mxu0
        %3198 = vmatprep.mubr.bf16.mxu0 0
        %3199 = vmatmul.mubr.bf16.gmra.mrb[0].mxu0 %v3049
        %v3200 = vpop.f32.mrb[0].mxu0
        %v3201 = vadd.f32 0.0, %v3200
        %v3202 = vpop.f32.mrb[0].mxu0
        %v3203 = vpop.f32.mrb[0].mxu0
        %v3204 = vadd.f32 0.0, %v3203
        %v3205 = vpop.f32.mrb[0].mxu0
        %3206 = vmatprep.mubr.bf16.mxu0 0
        %3207 = vmatmul.mubr.bf16.gmra.mrb[0].mxu0 %v3052
        %v3208 = vpop.f32.mrb[0].mxu0
        %v3209 = vadd.f32 0.0, %v3208
        %v3210 = vpop.f32.mrb[0].mxu0
        %v3211 = vpop.f32.mrb[0].mxu0
        %v3212 = vadd.f32 0.0, %v3211
        %v3213 = vpop.f32.mrb[0].mxu0
        %3214 = vdwg.mxu0
        %v3215 = vadd.f32 %v2894, %v3089
        %v3216 = vadd.f32 %v2895, %v3092
        %v3217 = vadd.f32 %v2896, %v3097
        %v3218 = vadd.f32 %v2897, %v3100
        %v3219 = vadd.f32 %v2898, %v3105
        %v3220 = vadd.f32 %v2899, %v3108
        %v3221 = vadd.f32 %v2900, %v3113
        %v3222 = vadd.f32 %v2901, %v3116
        %v3223 = vadd.f32 %v2902, %v3121
        %v3224 = vadd.f32 %v2903, %v3124
        %v3225 = vadd.f32 %v2904, %v3129
        %v3226 = vadd.f32 %v2905, %v3132
        %v3227 = vadd.f32 %v2906, %v3137
        %v3228 = vadd.f32 %v2907, %v3140
        %v3229 = vadd.f32 %v2908, %v3145
        %v3230 = vadd.f32 %v2909, %v3148
        %v3231 = vadd.f32 %v2910, %v3153
        %v3232 = vadd.f32 %v2911, %v3156
        %v3233 = vadd.f32 %v2912, %v3161
        %v3234 = vadd.f32 %v2913, %v3164
        %v3235 = vadd.f32 %v2914, %v3169
        %v3236 = vadd.f32 %v2915, %v3172
        %v3237 = vadd.f32 %v2916, %v3177
        %v3238 = vadd.f32 %v2917, %v3180
        %v3239 = vadd.f32 %v2918, %v3185
        %v3240 = vadd.f32 %v2919, %v3188
        %v3241 = vadd.f32 %v2920, %v3193
        %v3242 = vadd.f32 %v2921, %v3196
        %v3243 = vadd.f32 %v2922, %v3201
        %v3244 = vadd.f32 %v2923, %v3204
        %v3245 = vadd.f32 %v2924, %v3209
        %v3246 = vadd.f32 %v2925, %v3212
        %vm3247 = vcmask 261120
        %v3248 = vsel %vm3247, %v3215, 0.0
        %v3249 = vsel %vm3247, %v3216, 0.0
        %v3250 = vadd.f32 %v3248, %v3249
        %v3251 = vsel %vm3247, %v3217, 0.0
        %v3252 = vadd.f32 %v3250, %v3251
        %v3253 = vsel %vm3247, %v3218, 0.0
        %v3254 = vadd.f32 %v3252, %v3253
        %v3255 = vsel %vm3247, %v3219, 0.0
        %v3256 = vadd.f32 %v3254, %v3255
        %v3257 = vsel %vm3247, %v3220, 0.0
        %v3258 = vadd.f32 %v3256, %v3257
        %v3259 = vsel %vm3247, %v3221, 0.0
        %v3260 = vadd.f32 %v3258, %v3259
        %v3261 = vsel %vm3247, %v3222, 0.0
        %v3262 = vadd.f32 %v3260, %v3261
        %v3263 = vsel %vm3247, %v3223, 0.0
        %v3264 = vadd.f32 %v3262, %v3263
        %v3265 = vsel %vm3247, %v3224, 0.0
        %v3266 = vadd.f32 %v3264, %v3265
        %v3267 = vsel %vm3247, %v3225, 0.0
        %v3268 = vadd.f32 %v3266, %v3267
        %v3269 = vsel %vm3247, %v3226, 0.0
        %v3270 = vadd.f32 %v3268, %v3269
        %v3271 = vsel %vm3247, %v3227, 0.0
        %v3272 = vadd.f32 %v3270, %v3271
        %v3273 = vsel %vm3247, %v3228, 0.0
        %v3274 = vadd.f32 %v3272, %v3273
        %v3275 = vsel %vm3247, %v3229, 0.0
        %v3276 = vadd.f32 %v3274, %v3275
        %v3277 = vsel %vm3247, %v3230, 0.0
        %v3278 = vadd.f32 %v3276, %v3277
        %v3279 = vsel %vm3247, %v3231, 0.0
        %v3280 = vadd.f32 %v3278, %v3279
        %v3281 = vsel %vm3247, %v3232, 0.0
        %v3282 = vadd.f32 %v3280, %v3281
        %v3283 = vsel %vm3247, %v3233, 0.0
        %v3284 = vadd.f32 %v3282, %v3283
        %v3285 = vsel %vm3247, %v3234, 0.0
        %v3286 = vadd.f32 %v3284, %v3285
        %v3287 = vsel %vm3247, %v3235, 0.0
        %v3288 = vadd.f32 %v3286, %v3287
        %v3289 = vsel %vm3247, %v3236, 0.0
        %v3290 = vadd.f32 %v3288, %v3289
        %v3291 = vsel %vm3247, %v3237, 0.0
        %v3292 = vadd.f32 %v3290, %v3291
        %v3293 = vsel %vm3247, %v3238, 0.0
        %v3294 = vadd.f32 %v3292, %v3293
        %v3295 = vsel %vm3247, %v3239, 0.0
        %v3296 = vadd.f32 %v3294, %v3295
        %v3297 = vsel %vm3247, %v3240, 0.0
        %v3298 = vadd.f32 %v3296, %v3297
        %v3299 = vsel %vm3247, %v3241, 0.0
        %v3300 = vadd.f32 %v3298, %v3299
        %v3301 = vsel %vm3247, %v3242, 0.0
        %v3302 = vadd.f32 %v3300, %v3301
        %v3303 = vsel %vm3247, %v3243, 0.0
        %v3304 = vadd.f32 %v3302, %v3303
        %v3305 = vsel %vm3247, %v3244, 0.0
        %v3306 = vadd.f32 %v3304, %v3305
        %v3307 = vsel %vm3247, %v3245, 0.0
        %v3308 = vadd.f32 %v3306, %v3307
        %v3309 = vsel %vm3247, %v3246, 0.0
        %v3310 = vadd.f32 %v3308, %v3309
        %v3311 = vrot.slane %v3310, 4
        %v3312 = vadd.f32 %v3310, %v3311
        %v3313 = vrot.slane %v3312, 2
        %v3314 = vadd.f32 %v3312, %v3313
        %v3315 = vrot.slane %v3314, 1
        %v3316 = vadd.f32 %v3314, %v3315
        %v3317 = vld [vmem:[%s4] sm:$0xff]
        %v3318 = vld [vmem:[%s4 + $0x8] sm:$0xff]
        %v3319 = vld [vmem:[%s4 + $0x10] sm:$0xff]
        %v3320 = vld [vmem:[%s4 + $0x18] sm:$0xff]
        %v3322 = vsel %vm3247, %v3316, 0
        %3324 = vmatprep.subr.mxu0 0.0
        %3325 = vmatpush1.msra.mxu0 %v3317
        %3326 = vmatprep.subr.mxu0 0.0
        %3327 = vmatpush1.msra.mxu0 %v3318
        %3328 = vmatprep.subr.mxu0 0.0
        %3329 = vmatpush1.msra.mxu0 %v3319
        %3330 = vmatprep.subr.mxu0 0.0
        %3331 = vmatpush1.msra.mxu0 %v3320
        %3332 = vmatprep.subr.mxu0 0.0
        %3333 = vmatpush1.msra.mxu0 0.0
        %3334 = vmatprep.subr.mxu0 0.0
        %3335 = vmatpush1.msra.mxu0 0.0
        %3336 = vmatprep.subr.mxu0 0.0
        %3337 = vmatpush1.msra.mxu0 0.0
        %3338 = vmatprep.subr.mxu0 0.0
        %3339 = vmatpush1.msra.mxu0 0.0
        %3340 = vmatprep.subr.mxu0 0.0
        %3341 = vmatpush1.msra.mxu0 0.0
        %3342 = vmatprep.subr.mxu0 0.0
        %3343 = vmatpush1.msra.mxu0 0.0
        %3344 = vmatprep.subr.mxu0 0.0
        %3345 = vmatpush1.msra.mxu0 0.0
        %3346 = vmatprep.subr.mxu0 0.0
        %3347 = vmatpush1.msra.mxu0 0.0
        %3348 = vmatprep.subr.mxu0 0.0
        %3349 = vmatpush1.msra.mxu0 0.0
        %3350 = vmatprep.subr.mxu0 0.0
        %3351 = vmatpush1.msra.mxu0 0.0
        %3352 = vmatprep.subr.mxu0 0.0
        %3353 = vmatpush1.msra.mxu0 0.0
        %3354 = vmatprep.subr.mxu0 0.0
        %3355 = vmatpush1.msra.mxu0 0.0
        %3356 = vmatprep.subr.mxu0 0.0
        %3357 = vmatpush1.msra.mxu0 0.0
        %3358 = vmatprep.subr.mxu0 0.0
        %3359 = vmatpush1.msra.mxu0 0.0
        %3360 = vmatprep.subr.mxu0 0.0
        %3361 = vmatpush1.msra.mxu0 0.0
        %3362 = vmatprep.subr.mxu0 0.0
        %3363 = vmatpush1.msra.mxu0 0.0
        %3364 = vmatprep.subr.mxu0 0.0
        %3365 = vmatpush1.msra.mxu0 0.0
        %3366 = vmatprep.subr.mxu0 0.0
        %3367 = vmatpush1.msra.mxu0 0.0
        %3368 = vmatprep.subr.mxu0 0.0
        %3369 = vmatpush1.msra.mxu0 0.0
        %3370 = vmatprep.subr.mxu0 0.0
        %3371 = vmatpush1.msra.mxu0 0.0
        %3372 = vmatprep.subr.mxu0 0.0
        %3373 = vmatpush1.msra.mxu0 0.0
        %3374 = vmatprep.subr.mxu0 0.0
        %3375 = vmatpush1.msra.mxu0 0.0
        %3376 = vmatprep.subr.mxu0 0.0
        %3377 = vmatpush1.msra.mxu0 0.0
        %3378 = vmatprep.subr.mxu0 0.0
        %3379 = vmatpush1.msra.mxu0 0.0
        %3380 = vmatprep.subr.mxu0 0.0
        %3381 = vmatpush1.msra.mxu0 0.0
        %3382 = vmatprep.subr.mxu0 0.0
        %3383 = vmatpush1.msra.mxu0 0.0
        %3384 = vmatprep.subr.mxu0 0.0
        %3385 = vmatpush1.msra.mxu0 0.0
        %3386 = vmatprep.subr.mxu0 0.0
        %3387 = vmatpush1.msra.mxu0 0.0
        %3388 = vmatprep.mubr.f32.mxu0 0.0
        %3389 = vmatmul.mubr.f32.gmra.mrb[0].mxu0 %v3322
        %v3390 = vpop.f32.mrb[0].mxu0
        %v3391 = vadd.f32 0.0, %v3390
        %v3392 = vpop.f32.mrb[0].mxu0
        %3393 = vdwg.mxu0
        %v3394 = vrcp.pop 256.0
        %v3395 = vmul.f32 %v3391, %v3394
        %v3396 = vld [vmem:[%s5] sm:$0xff]
        %v3397 = vld [vmem:[%s5 + $0x8] sm:$0xff]
        %v3398 = vld [vmem:[%s5 + $0x10] sm:$0xff]
        %v3399 = vld [vmem:[%s5 + $0x18] sm:$0xff]
        %v3401 = vsel %vm3247, %v3395, 0
        %3403 = vmatprep.subr.mxu0 0.0
        %3404 = vmatpush1.msra.mxu0 %v3396
        %3405 = vmatprep.subr.mxu0 0.0
        %3406 = vmatpush1.msra.mxu0 %v3397
        %3407 = vmatprep.subr.mxu0 0.0
        %3408 = vmatpush1.msra.mxu0 %v3398
        %3409 = vmatprep.subr.mxu0 0.0
        %3410 = vmatpush1.msra.mxu0 %v3399
        %3411 = vmatprep.subr.mxu0 0.0
        %3412 = vmatpush1.msra.mxu0 0.0
        %3413 = vmatprep.subr.mxu0 0.0
        %3414 = vmatpush1.msra.mxu0 0.0
        %3415 = vmatprep.subr.mxu0 0.0
        %3416 = vmatpush1.msra.mxu0 0.0
        %3417 = vmatprep.subr.mxu0 0.0
        %3418 = vmatpush1.msra.mxu0 0.0
        %3419 = vmatprep.subr.mxu0 0.0
        %3420 = vmatpush1.msra.mxu0 0.0
        %3421 = vmatprep.subr.mxu0 0.0
        %3422 = vmatpush1.msra.mxu0 0.0
        %3423 = vmatprep.subr.mxu0 0.0
        %3424 = vmatpush1.msra.mxu0 0.0
        %3425 = vmatprep.subr.mxu0 0.0
        %3426 = vmatpush1.msra.mxu0 0.0
        %3427 = vmatprep.subr.mxu0 0.0
        %3428 = vmatpush1.msra.mxu0 0.0
        %3429 = vmatprep.subr.mxu0 0.0
        %3430 = vmatpush1.msra.mxu0 0.0
        %3431 = vmatprep.subr.mxu0 0.0
        %3432 = vmatpush1.msra.mxu0 0.0
        %3433 = vmatprep.subr.mxu0 0.0
        %3434 = vmatpush1.msra.mxu0 0.0
        %3435 = vmatprep.subr.mxu0 0.0
        %3436 = vmatpush1.msra.mxu0 0.0
        %3437 = vmatprep.subr.mxu0 0.0
        %3438 = vmatpush1.msra.mxu0 0.0
        %3439 = vmatprep.subr.mxu0 0.0
        %3440 = vmatpush1.msra.mxu0 0.0
        %3441 = vmatprep.subr.mxu0 0.0
        %3442 = vmatpush1.msra.mxu0 0.0
        %3443 = vmatprep.subr.mxu0 0.0
        %3444 = vmatpush1.msra.mxu0 0.0
        %3445 = vmatprep.subr.mxu0 0.0
        %3446 = vmatpush1.msra.mxu0 0.0
        %3447 = vmatprep.subr.mxu0 0.0
        %3448 = vmatpush1.msra.mxu0 0.0
        %3449 = vmatprep.subr.mxu0 0.0
        %3450 = vmatpush1.msra.mxu0 0.0
        %3451 = vmatprep.subr.mxu0 0.0
        %3452 = vmatpush1.msra.mxu0 0.0
        %3453 = vmatprep.subr.mxu0 0.0
        %3454 = vmatpush1.msra.mxu0 0.0
        %3455 = vmatprep.subr.mxu0 0.0
        %3456 = vmatpush1.msra.mxu0 0.0
        %3457 = vmatprep.subr.mxu0 0.0
        %3458 = vmatpush1.msra.mxu0 0.0
        %3459 = vmatprep.subr.mxu0 0.0
        %3460 = vmatpush1.msra.mxu0 0.0
        %3461 = vmatprep.subr.mxu0 0.0
        %3462 = vmatpush1.msra.mxu0 0.0
        %3463 = vmatprep.subr.mxu0 0.0
        %3464 = vmatpush1.msra.mxu0 0.0
        %3465 = vmatprep.subr.mxu0 0.0
        %3466 = vmatpush1.msra.mxu0 0.0
        %3467 = vmatprep.mubr.f32.mxu0 0.0
        %3468 = vmatmul.mubr.f32.gmra.mrb[0].mxu0 %v3401
        %v3469 = vpop.f32.mrb[0].mxu0
        %v3470 = vadd.f32 0.0, %v3469
        %v3471 = vpop.f32.mrb[0].mxu0
        %3472 = vdwg.mxu0
        %v3473 = vlaneseq
        %v3474 = vshrl.u32 %v3473, 7
        %v3475 = vsub.s32 0, %v3474
        %v3476 = vrot.slane %v3470, %v3475
        %v3477 = vsub.f32 %v3215, %v3476
        %v3478 = vsub.f32 %v3216, %v3476
        %v3479 = vsub.f32 %v3217, %v3476
        %v3480 = vsub.f32 %v3218, %v3476
        %v3481 = vsub.f32 %v3219, %v3476
        %v3482 = vsub.f32 %v3220, %v3476
        %v3483 = vsub.f32 %v3221, %v3476
        %v3484 = vsub.f32 %v3222, %v3476
        %v3485 = vsub.f32 %v3223, %v3476
        %v3486 = vsub.f32 %v3224, %v3476
        %v3487 = vsub.f32 %v3225, %v3476
        %v3488 = vsub.f32 %v3226, %v3476
        %v3489 = vsub.f32 %v3227, %v3476
        %v3490 = vsub.f32 %v3228, %v3476
        %v3491 = vsub.f32 %v3229, %v3476
        %v3492 = vsub.f32 %v3230, %v3476
        %v3493 = vsub.f32 %v3231, %v3476
        %v3494 = vsub.f32 %v3232, %v3476
        %v3495 = vsub.f32 %v3233, %v3476
        %v3496 = vsub.f32 %v3234, %v3476
        %v3497 = vsub.f32 %v3235, %v3476
        %v3498 = vsub.f32 %v3236, %v3476
        %v3499 = vsub.f32 %v3237, %v3476
        %v3500 = vsub.f32 %v3238, %v3476
        %v3501 = vsub.f32 %v3239, %v3476
        %v3502 = vsub.f32 %v3240, %v3476
        %v3503 = vsub.f32 %v3241, %v3476
        %v3504 = vsub.f32 %v3242, %v3476
        %v3505 = vsub.f32 %v3243, %v3476
        %v3506 = vsub.f32 %v3244, %v3476
        %v3507 = vsub.f32 %v3245, %v3476
        %v3508 = vsub.f32 %v3246, %v3476
        %v3509 = vmul.f32 %v3477, %v3477
        %v3510 = vmul.f32 %v3478, %v3478
        %v3511 = vmul.f32 %v3479, %v3479
        %v3512 = vmul.f32 %v3480, %v3480
        %v3513 = vmul.f32 %v3481, %v3481
        %v3514 = vmul.f32 %v3482, %v3482
        %v3515 = vmul.f32 %v3483, %v3483
        %v3516 = vmul.f32 %v3484, %v3484
        %v3517 = vmul.f32 %v3485, %v3485
        %v3518 = vmul.f32 %v3486, %v3486
        %v3519 = vmul.f32 %v3487, %v3487
        %v3520 = vmul.f32 %v3488, %v3488
        %v3521 = vmul.f32 %v3489, %v3489
        %v3522 = vmul.f32 %v3490, %v3490
        %v3523 = vmul.f32 %v3491, %v3491
        %v3524 = vmul.f32 %v3492, %v3492
        %v3525 = vmul.f32 %v3493, %v3493
        %v3526 = vmul.f32 %v3494, %v3494
        %v3527 = vmul.f32 %v3495, %v3495
        %v3528 = vmul.f32 %v3496, %v3496
        %v3529 = vmul.f32 %v3497, %v3497
        %v3530 = vmul.f32 %v3498, %v3498
        %v3531 = vmul.f32 %v3499, %v3499
        %v3532 = vmul.f32 %v3500, %v3500
        %v3533 = vmul.f32 %v3501, %v3501
        %v3534 = vmul.f32 %v3502, %v3502
        %v3535 = vmul.f32 %v3503, %v3503
        %v3536 = vmul.f32 %v3504, %v3504
        %v3537 = vmul.f32 %v3505, %v3505
        %v3538 = vmul.f32 %v3506, %v3506
        %v3539 = vmul.f32 %v3507, %v3507
        %v3540 = vmul.f32 %v3508, %v3508
        %v3541 = vsel %vm3247, %v3509, 0.0
        %v3542 = vsel %vm3247, %v3510, 0.0
        %v3543 = vadd.f32 %v3541, %v3542
        %v3544 = vsel %vm3247, %v3511, 0.0
        %v3545 = vadd.f32 %v3543, %v3544
        %v3546 = vsel %vm3247, %v3512, 0.0
        %v3547 = vadd.f32 %v3545, %v3546
        %v3548 = vsel %vm3247, %v3513, 0.0
        %v3549 = vadd.f32 %v3547, %v3548
        %v3550 = vsel %vm3247, %v3514, 0.0
        %v3551 = vadd.f32 %v3549, %v3550
        %v3552 = vsel %vm3247, %v3515, 0.0
        %v3553 = vadd.f32 %v3551, %v3552
        %v3554 = vsel %vm3247, %v3516, 0.0
        %v3555 = vadd.f32 %v3553, %v3554
        %v3556 = vsel %vm3247, %v3517, 0.0
        %v3557 = vadd.f32 %v3555, %v3556
        %v3558 = vsel %vm3247, %v3518, 0.0
        %v3559 = vadd.f32 %v3557, %v3558
        %v3560 = vsel %vm3247, %v3519, 0.0
        %v3561 = vadd.f32 %v3559, %v3560
        %v3562 = vsel %vm3247, %v3520, 0.0
        %v3563 = vadd.f32 %v3561, %v3562
        %v3564 = vsel %vm3247, %v3521, 0.0
        %v3565 = vadd.f32 %v3563, %v3564
        %v3566 = vsel %vm3247, %v3522, 0.0
        %v3567 = vadd.f32 %v3565, %v3566
        %v3568 = vsel %vm3247, %v3523, 0.0
        %v3569 = vadd.f32 %v3567, %v3568
        %v3570 = vsel %vm3247, %v3524, 0.0
        %v3571 = vadd.f32 %v3569, %v3570
        %v3572 = vsel %vm3247, %v3525, 0.0
        %v3573 = vadd.f32 %v3571, %v3572
        %v3574 = vsel %vm3247, %v3526, 0.0
        %v3575 = vadd.f32 %v3573, %v3574
        %v3576 = vsel %vm3247, %v3527, 0.0
        %v3577 = vadd.f32 %v3575, %v3576
        %v3578 = vsel %vm3247, %v3528, 0.0
        %v3579 = vadd.f32 %v3577, %v3578
        %v3580 = vsel %vm3247, %v3529, 0.0
        %v3581 = vadd.f32 %v3579, %v3580
        %v3582 = vsel %vm3247, %v3530, 0.0
        %v3583 = vadd.f32 %v3581, %v3582
        %v3584 = vsel %vm3247, %v3531, 0.0
        %v3585 = vadd.f32 %v3583, %v3584
        %v3586 = vsel %vm3247, %v3532, 0.0
        %v3587 = vadd.f32 %v3585, %v3586
        %v3588 = vsel %vm3247, %v3533, 0.0
        %v3589 = vadd.f32 %v3587, %v3588
        %v3590 = vsel %vm3247, %v3534, 0.0
        %v3591 = vadd.f32 %v3589, %v3590
        %v3592 = vsel %vm3247, %v3535, 0.0
        %v3593 = vadd.f32 %v3591, %v3592
        %v3594 = vsel %vm3247, %v3536, 0.0
        %v3595 = vadd.f32 %v3593, %v3594
        %v3596 = vsel %vm3247, %v3537, 0.0
        %v3597 = vadd.f32 %v3595, %v3596
        %v3598 = vsel %vm3247, %v3538, 0.0
        %v3599 = vadd.f32 %v3597, %v3598
        %v3600 = vsel %vm3247, %v3539, 0.0
        %v3601 = vadd.f32 %v3599, %v3600
        %v3602 = vsel %vm3247, %v3540, 0.0
        %v3603 = vadd.f32 %v3601, %v3602
        %v3604 = vrot.slane %v3603, 4
        %v3605 = vadd.f32 %v3603, %v3604
        %v3606 = vrot.slane %v3605, 2
        %v3607 = vadd.f32 %v3605, %v3606
        %v3608 = vrot.slane %v3607, 1
        %v3609 = vadd.f32 %v3607, %v3608
        %v3611 = vsel %vm3247, %v3609, 0
        %3613 = vmatprep.subr.mxu0 0.0
        %3614 = vmatpush1.msra.mxu0 %v3317
        %3615 = vmatprep.subr.mxu0 0.0
        %3616 = vmatpush1.msra.mxu0 %v3318
        %3617 = vmatprep.subr.mxu0 0.0
        %3618 = vmatpush1.msra.mxu0 %v3319
        %3619 = vmatprep.subr.mxu0 0.0
        %3620 = vmatpush1.msra.mxu0 %v3320
        %3621 = vmatprep.subr.mxu0 0.0
        %3622 = vmatpush1.msra.mxu0 0.0
        %3623 = vmatprep.subr.mxu0 0.0
        %3624 = vmatpush1.msra.mxu0 0.0
        %3625 = vmatprep.subr.mxu0 0.0
        %3626 = vmatpush1.msra.mxu0 0.0
        %3627 = vmatprep.subr.mxu0 0.0
        %3628 = vmatpush1.msra.mxu0 0.0
        %3629 = vmatprep.subr.mxu0 0.0
        %3630 = vmatpush1.msra.mxu0 0.0
        %3631 = vmatprep.subr.mxu0 0.0
        %3632 = vmatpush1.msra.mxu0 0.0
        %3633 = vmatprep.subr.mxu0 0.0
        %3634 = vmatpush1.msra.mxu0 0.0
        %3635 = vmatprep.subr.mxu0 0.0
        %3636 = vmatpush1.msra.mxu0 0.0
        %3637 = vmatprep.subr.mxu0 0.0
        %3638 = vmatpush1.msra.mxu0 0.0
        %3639 = vmatprep.subr.mxu0 0.0
        %3640 = vmatpush1.msra.mxu0 0.0
        %3641 = vmatprep.subr.mxu0 0.0
        %3642 = vmatpush1.msra.mxu0 0.0
        %3643 = vmatprep.subr.mxu0 0.0
        %3644 = vmatpush1.msra.mxu0 0.0
        %3645 = vmatprep.subr.mxu0 0.0
        %3646 = vmatpush1.msra.mxu0 0.0
        %3647 = vmatprep.subr.mxu0 0.0
        %3648 = vmatpush1.msra.mxu0 0.0
        %3649 = vmatprep.subr.mxu0 0.0
        %3650 = vmatpush1.msra.mxu0 0.0
        %3651 = vmatprep.subr.mxu0 0.0
        %3652 = vmatpush1.msra.mxu0 0.0
        %3653 = vmatprep.subr.mxu0 0.0
        %3654 = vmatpush1.msra.mxu0 0.0
        %3655 = vmatprep.subr.mxu0 0.0
        %3656 = vmatpush1.msra.mxu0 0.0
        %3657 = vmatprep.subr.mxu0 0.0
        %3658 = vmatpush1.msra.mxu0 0.0
        %3659 = vmatprep.subr.mxu0 0.0
        %3660 = vmatpush1.msra.mxu0 0.0
        %3661 = vmatprep.subr.mxu0 0.0
        %3662 = vmatpush1.msra.mxu0 0.0
        %3663 = vmatprep.subr.mxu0 0.0
        %3664 = vmatpush1.msra.mxu0 0.0
        %3665 = vmatprep.subr.mxu0 0.0
        %3666 = vmatpush1.msra.mxu0 0.0
        %3667 = vmatprep.subr.mxu0 0.0
        %3668 = vmatpush1.msra.mxu0 0.0
        %3669 = vmatprep.subr.mxu0 0.0
        %3670 = vmatpush1.msra.mxu0 0.0
        %3671 = vmatprep.subr.mxu0 0.0
        %3672 = vmatpush1.msra.mxu0 0.0
        %3673 = vmatprep.subr.mxu0 0.0
        %3674 = vmatpush1.msra.mxu0 0.0
        %3675 = vmatprep.subr.mxu0 0.0
        %3676 = vmatpush1.msra.mxu0 0.0
        %3677 = vmatprep.mubr.f32.mxu0 0.0
        %3678 = vmatmul.mubr.f32.gmra.mrb[0].mxu0 %v3611
        %v3679 = vpop.f32.mrb[0].mxu0
        %v3680 = vadd.f32 0.0, %v3679
        %v3681 = vpop.f32.mrb[0].mxu0
        %3682 = vdwg.mxu0
        %v3683 = vmul.f32 %v3680, %v3394
        %v3684 = vadd.f32 %v3683, 1e-05
        %v3685 = vrsqrt.pop %v3684
        %v3687 = vsel %vm3247, %v3685, 0
        %3689 = vmatprep.subr.mxu0 0.0
        %3690 = vmatpush1.msra.mxu0 %v3396
        %3691 = vmatprep.subr.mxu0 0.0
        %3692 = vmatpush1.msra.mxu0 %v3397
        %3693 = vmatprep.subr.mxu0 0.0
        %3694 = vmatpush1.msra.mxu0 %v3398
        %3695 = vmatprep.subr.mxu0 0.0
        %3696 = vmatpush1.msra.mxu0 %v3399
        %3697 = vmatprep.subr.mxu0 0.0
        %3698 = vmatpush1.msra.mxu0 0.0
        %3699 = vmatprep.subr.mxu0 0.0
        %3700 = vmatpush1.msra.mxu0 0.0
        %3701 = vmatprep.subr.mxu0 0.0
        %3702 = vmatpush1.msra.mxu0 0.0
        %3703 = vmatprep.subr.mxu0 0.0
        %3704 = vmatpush1.msra.mxu0 0.0
        %3705 = vmatprep.subr.mxu0 0.0
        %3706 = vmatpush1.msra.mxu0 0.0
        %3707 = vmatprep.subr.mxu0 0.0
        %3708 = vmatpush1.msra.mxu0 0.0
        %3709 = vmatprep.subr.mxu0 0.0
        %3710 = vmatpush1.msra.mxu0 0.0
        %3711 = vmatprep.subr.mxu0 0.0
        %3712 = vmatpush1.msra.mxu0 0.0
        %3713 = vmatprep.subr.mxu0 0.0
        %3714 = vmatpush1.msra.mxu0 0.0
        %3715 = vmatprep.subr.mxu0 0.0
        %3716 = vmatpush1.msra.mxu0 0.0
        %3717 = vmatprep.subr.mxu0 0.0
        %3718 = vmatpush1.msra.mxu0 0.0
        %3719 = vmatprep.subr.mxu0 0.0
        %3720 = vmatpush1.msra.mxu0 0.0
        %3721 = vmatprep.subr.mxu0 0.0
        %3722 = vmatpush1.msra.mxu0 0.0
        %3723 = vmatprep.subr.mxu0 0.0
        %3724 = vmatpush1.msra.mxu0 0.0
        %3725 = vmatprep.subr.mxu0 0.0
        %3726 = vmatpush1.msra.mxu0 0.0
        %3727 = vmatprep.subr.mxu0 0.0
        %3728 = vmatpush1.msra.mxu0 0.0
        %3729 = vmatprep.subr.mxu0 0.0
        %3730 = vmatpush1.msra.mxu0 0.0
        %3731 = vmatprep.subr.mxu0 0.0
        %3732 = vmatpush1.msra.mxu0 0.0
        %3733 = vmatprep.subr.mxu0 0.0
        %3734 = vmatpush1.msra.mxu0 0.0
        %3735 = vmatprep.subr.mxu0 0.0
        %3736 = vmatpush1.msra.mxu0 0.0
        %3737 = vmatprep.subr.mxu0 0.0
        %3738 = vmatpush1.msra.mxu0 0.0
        %3739 = vmatprep.subr.mxu0 0.0
        %3740 = vmatpush1.msra.mxu0 0.0
        %3741 = vmatprep.subr.mxu0 0.0
        %3742 = vmatpush1.msra.mxu0 0.0
        %3743 = vmatprep.subr.mxu0 0.0
        %3744 = vmatpush1.msra.mxu0 0.0
        %3745 = vmatprep.subr.mxu0 0.0
        %3746 = vmatpush1.msra.mxu0 0.0
        %3747 = vmatprep.subr.mxu0 0.0
        %3748 = vmatpush1.msra.mxu0 0.0
        %3749 = vmatprep.subr.mxu0 0.0
        %3750 = vmatpush1.msra.mxu0 0.0
        %3751 = vmatprep.subr.mxu0 0.0
        %3752 = vmatpush1.msra.mxu0 0.0
        %3753 = vmatprep.mubr.f32.mxu0 0.0
        %3754 = vmatmul.mubr.f32.gmra.mrb[0].mxu0 %v3687
        %v3755 = vpop.f32.mrb[0].mxu0
        %v3756 = vadd.f32 0.0, %v3755
        %v3757 = vpop.f32.mrb[0].mxu0
        %3758 = vdwg.mxu0
        %v3759 = vlaneseq
        %v3760 = vshrl.u32 %v3759, 7
        %v3761 = vsub.s32 0, %v3760
        %v3762 = vrot.slane %v3756, %v3761
        %v3763 = vmul.f32 %v3477, %v3762
        %v3764 = vmul.f32 %v3478, %v3762
        %v3765 = vmul.f32 %v3479, %v3762
        %v3766 = vmul.f32 %v3480, %v3762
        %v3767 = vmul.f32 %v3481, %v3762
        %v3768 = vmul.f32 %v3482, %v3762
        %v3769 = vmul.f32 %v3483, %v3762
        %v3770 = vmul.f32 %v3484, %v3762
        %v3771 = vmul.f32 %v3485, %v3762
        %v3772 = vmul.f32 %v3486, %v3762
        %v3773 = vmul.f32 %v3487, %v3762
        %v3774 = vmul.f32 %v3488, %v3762
        %v3775 = vmul.f32 %v3489, %v3762
        %v3776 = vmul.f32 %v3490, %v3762
        %v3777 = vmul.f32 %v3491, %v3762
        %v3778 = vmul.f32 %v3492, %v3762
        %v3779 = vmul.f32 %v3493, %v3762
        %v3780 = vmul.f32 %v3494, %v3762
        %v3781 = vmul.f32 %v3495, %v3762
        %v3782 = vmul.f32 %v3496, %v3762
        %v3783 = vmul.f32 %v3497, %v3762
        %v3784 = vmul.f32 %v3498, %v3762
        %v3785 = vmul.f32 %v3499, %v3762
        %v3786 = vmul.f32 %v3500, %v3762
        %v3787 = vmul.f32 %v3501, %v3762
        %v3788 = vmul.f32 %v3502, %v3762
        %v3789 = vmul.f32 %v3503, %v3762
        %v3790 = vmul.f32 %v3504, %v3762
        %v3791 = vmul.f32 %v3505, %v3762
        %v3792 = vmul.f32 %v3506, %v3762
        %v3793 = vmul.f32 %v3507, %v3762
        %v3794 = vmul.f32 %v3508, %v3762
        %v3795 = vld [vmem:[%s2] sm:$0x1]
        %v3797 = vlaneseq
        %v3798 = vshrl.u32 %v3797, 7
        %v3799 = vsub.s32 0, %v3798
        %v3800 = vrot.slane %v3795, %v3799
        %v3802 = vmul.f32 %v3763, %v3800
        %v3803 = vmul.f32 %v3764, %v3800
        %v3804 = vmul.f32 %v3765, %v3800
        %v3805 = vmul.f32 %v3766, %v3800
        %v3806 = vmul.f32 %v3767, %v3800
        %v3807 = vmul.f32 %v3768, %v3800
        %v3808 = vmul.f32 %v3769, %v3800
        %v3809 = vmul.f32 %v3770, %v3800
        %v3810 = vmul.f32 %v3771, %v3800
        %v3811 = vmul.f32 %v3772, %v3800
        %v3812 = vmul.f32 %v3773, %v3800
        %v3813 = vmul.f32 %v3774, %v3800
        %v3814 = vmul.f32 %v3775, %v3800
        %v3815 = vmul.f32 %v3776, %v3800
        %v3816 = vmul.f32 %v3777, %v3800
        %v3817 = vmul.f32 %v3778, %v3800
        %v3818 = vmul.f32 %v3779, %v3800
        %v3819 = vmul.f32 %v3780, %v3800
        %v3820 = vmul.f32 %v3781, %v3800
        %v3821 = vmul.f32 %v3782, %v3800
        %v3822 = vmul.f32 %v3783, %v3800
        %v3823 = vmul.f32 %v3784, %v3800
        %v3824 = vmul.f32 %v3785, %v3800
        %v3825 = vmul.f32 %v3786, %v3800
        %v3826 = vmul.f32 %v3787, %v3800
        %v3827 = vmul.f32 %v3788, %v3800
        %v3828 = vmul.f32 %v3789, %v3800
        %v3829 = vmul.f32 %v3790, %v3800
        %v3830 = vmul.f32 %v3791, %v3800
        %v3831 = vmul.f32 %v3792, %v3800
        %v3832 = vmul.f32 %v3793, %v3800
        %v3833 = vmul.f32 %v3794, %v3800
        %v3834 = vld [vmem:[%s3] sm:$0x1]
        %v3836 = vlaneseq
        %v3837 = vshrl.u32 %v3836, 7
        %v3838 = vsub.s32 0, %v3837
        %v3839 = vrot.slane %v3834, %v3838
        %v3841 = vadd.f32 %v3802, %v3839
        %v3842 = vadd.f32 %v3803, %v3839
        %v3843 = vadd.f32 %v3804, %v3839
        %v3844 = vadd.f32 %v3805, %v3839
        %v3845 = vadd.f32 %v3806, %v3839
        %v3846 = vadd.f32 %v3807, %v3839
        %v3847 = vadd.f32 %v3808, %v3839
        %v3848 = vadd.f32 %v3809, %v3839
        %v3849 = vadd.f32 %v3810, %v3839
        %v3850 = vadd.f32 %v3811, %v3839
        %v3851 = vadd.f32 %v3812, %v3839
        %v3852 = vadd.f32 %v3813, %v3839
        %v3853 = vadd.f32 %v3814, %v3839
        %v3854 = vadd.f32 %v3815, %v3839
        %v3855 = vadd.f32 %v3816, %v3839
        %v3856 = vadd.f32 %v3817, %v3839
        %v3857 = vadd.f32 %v3818, %v3839
        %v3858 = vadd.f32 %v3819, %v3839
        %v3859 = vadd.f32 %v3820, %v3839
        %v3860 = vadd.f32 %v3821, %v3839
        %v3861 = vadd.f32 %v3822, %v3839
        %v3862 = vadd.f32 %v3823, %v3839
        %v3863 = vadd.f32 %v3824, %v3839
        %v3864 = vadd.f32 %v3825, %v3839
        %v3865 = vadd.f32 %v3826, %v3839
        %v3866 = vadd.f32 %v3827, %v3839
        %v3867 = vadd.f32 %v3828, %v3839
        %v3868 = vadd.f32 %v3829, %v3839
        %v3869 = vadd.f32 %v3830, %v3839
        %v3870 = vadd.f32 %v3831, %v3839
        %v3871 = vadd.f32 %v3832, %v3839
        %v3872 = vadd.f32 %v3833, %v3839
        %v3873 = vmax.f32 %v3841, 0.0
        %v3874 = vmax.f32 %v3842, 0.0
        %v3875 = vmax.f32 %v3843, 0.0
        %v3876 = vmax.f32 %v3844, 0.0
        %v3877 = vmax.f32 %v3845, 0.0
        %v3878 = vmax.f32 %v3846, 0.0
        %v3879 = vmax.f32 %v3847, 0.0
        %v3880 = vmax.f32 %v3848, 0.0
        %v3881 = vmax.f32 %v3849, 0.0
        %v3882 = vmax.f32 %v3850, 0.0
        %v3883 = vmax.f32 %v3851, 0.0
        %v3884 = vmax.f32 %v3852, 0.0
        %v3885 = vmax.f32 %v3853, 0.0
        %v3886 = vmax.f32 %v3854, 0.0
        %v3887 = vmax.f32 %v3855, 0.0
        %v3888 = vmax.f32 %v3856, 0.0
        %v3889 = vmax.f32 %v3857, 0.0
        %v3890 = vmax.f32 %v3858, 0.0
        %v3891 = vmax.f32 %v3859, 0.0
        %v3892 = vmax.f32 %v3860, 0.0
        %v3893 = vmax.f32 %v3861, 0.0
        %v3894 = vmax.f32 %v3862, 0.0
        %v3895 = vmax.f32 %v3863, 0.0
        %v3896 = vmax.f32 %v3864, 0.0
        %v3897 = vmax.f32 %v3865, 0.0
        %v3898 = vmax.f32 %v3866, 0.0
        %v3899 = vmax.f32 %v3867, 0.0
        %v3900 = vmax.f32 %v3868, 0.0
        %v3901 = vmax.f32 %v3869, 0.0
        %v3902 = vmax.f32 %v3870, 0.0
        %v3903 = vmax.f32 %v3871, 0.0
        %v3904 = vmax.f32 %v3872, 0.0
        %v3905 = vpack.c.bf16 %v3874, %v3873
        %v3906 = vpack.c.bf16 %v3876, %v3875
        %v3907 = vpack.c.bf16 %v3878, %v3877
        %v3908 = vpack.c.bf16 %v3880, %v3879
        %v3909 = vpack.c.bf16 %v3882, %v3881
        %v3910 = vpack.c.bf16 %v3884, %v3883
        %v3911 = vpack.c.bf16 %v3886, %v3885
        %v3912 = vpack.c.bf16 %v3888, %v3887
        %v3913 = vpack.c.bf16 %v3890, %v3889
        %v3914 = vpack.c.bf16 %v3892, %v3891
        %v3915 = vpack.c.bf16 %v3894, %v3893
        %v3916 = vpack.c.bf16 %v3896, %v3895
        %v3917 = vpack.c.bf16 %v3898, %v3897
        %v3918 = vpack.c.bf16 %v3900, %v3899
        %v3919 = vpack.c.bf16 %v3902, %v3901
        %v3920 = vpack.c.bf16 %v3904, %v3903
        %v3937 = vunpack.c.l.b16 %v3905
        %v3938 = vunpack.c.h.b16 %v3905
        %v3939 = vunpack.c.l.b16 %v3906
        %v3940 = vunpack.c.h.b16 %v3906
        %v3941 = vunpack.c.l.b16 %v3907
        %v3942 = vunpack.c.h.b16 %v3907
        %v3943 = vunpack.c.l.b16 %v3908
        %v3944 = vunpack.c.h.b16 %v3908
        %v3945 = vunpack.c.l.b16 %v3909
        %v3946 = vunpack.c.h.b16 %v3909
        %v3947 = vunpack.c.l.b16 %v3910
        %v3948 = vunpack.c.h.b16 %v3910
        %v3949 = vunpack.c.l.b16 %v3911
        %v3950 = vunpack.c.h.b16 %v3911
        %v3951 = vunpack.c.l.b16 %v3912
        %v3952 = vunpack.c.h.b16 %v3912
        %v3953 = vunpack.c.l.b16 %v3913
        %v3954 = vunpack.c.h.b16 %v3913
        %v3955 = vunpack.c.l.b16 %v3914
        %v3956 = vunpack.c.h.b16 %v3914
        %v3957 = vunpack.c.l.b16 %v3915
        %v3958 = vunpack.c.h.b16 %v3915
        %v3959 = vunpack.c.l.b16 %v3916
        %v3960 = vunpack.c.h.b16 %v3916
        %v3961 = vunpack.c.l.b16 %v3917
        %v3962 = vunpack.c.h.b16 %v3917
        %v3963 = vunpack.c.l.b16 %v3918
        %v3964 = vunpack.c.h.b16 %v3918
        %v3965 = vunpack.c.l.b16 %v3919
        %v3966 = vunpack.c.h.b16 %v3919
        %v3967 = vunpack.c.l.b16 %v3920
        %v3968 = vunpack.c.h.b16 %v3920
        %v3969 = vpack.c.b16 %v3937, %v3937
        %v3970 = vpack.c.b16 %v3938, %v3938
        %v3971 = vpack.c.b16 %v3939, %v3939
        %v3972 = vpack.c.b16 %v3940, %v3940
        %v3973 = vpack.c.b16 %v3941, %v3941
        %v3974 = vpack.c.b16 %v3942, %v3942
        %v3975 = vpack.c.b16 %v3943, %v3943
        %v3976 = vpack.c.b16 %v3944, %v3944
        %v3977 = vpack.c.b16 %v3945, %v3945
        %v3978 = vpack.c.b16 %v3946, %v3946
        %v3979 = vpack.c.b16 %v3947, %v3947
        %v3980 = vpack.c.b16 %v3948, %v3948
        %v3981 = vpack.c.b16 %v3949, %v3949
        %v3982 = vpack.c.b16 %v3950, %v3950
        %v3983 = vpack.c.b16 %v3951, %v3951
        %v3984 = vpack.c.b16 %v3952, %v3952
        %v3985 = vpack.c.b16 %v3953, %v3953
        %v3986 = vpack.c.b16 %v3954, %v3954
        %v3987 = vpack.c.b16 %v3955, %v3955
        %v3988 = vpack.c.b16 %v3956, %v3956
        %v3989 = vpack.c.b16 %v3957, %v3957
        %v3990 = vpack.c.b16 %v3958, %v3958
        %v3991 = vpack.c.b16 %v3959, %v3959
        %v3992 = vpack.c.b16 %v3960, %v3960
        %v3993 = vpack.c.b16 %v3961, %v3961
        %v3994 = vpack.c.b16 %v3962, %v3962
        %v3995 = vpack.c.b16 %v3963, %v3963
        %v3996 = vpack.c.b16 %v3964, %v3964
        %v3997 = vpack.c.b16 %v3965, %v3965
        %v3998 = vpack.c.b16 %v3966, %v3966
        %v3999 = vpack.c.b16 %v3967, %v3967
        %v4000 = vpack.c.b16 %v3968, %v3968
        %vm4033 = vcmask 257024
        %4034 = vst.msk [vmem:[%s244] sm:$0xf] %vm4033, %v3969
        %4035 = vst.msk [vmem:[%s244 + $0x4] sm:$0xf] %vm4033, %v3970
        %4036 = vst.msk [vmem:[%s244 + $0x8] sm:$0xf] %vm4033, %v3971
        %4037 = vst.msk [vmem:[%s244 + $0xc] sm:$0xf] %vm4033, %v3972
        %4038 = vst.msk [vmem:[%s244 + $0x10] sm:$0xf] %vm4033, %v3973
        %4039 = vst.msk [vmem:[%s244 + $0x14] sm:$0xf] %vm4033, %v3974
        %4040 = vst.msk [vmem:[%s244 + $0x18] sm:$0xf] %vm4033, %v3975
        %4041 = vst.msk [vmem:[%s244 + $0x1c] sm:$0xf] %vm4033, %v3976
        %4042 = vst.msk [vmem:[%s244 + $0x20] sm:$0xf] %vm4033, %v3977
        %4043 = vst.msk [vmem:[%s244 + $0x24] sm:$0xf] %vm4033, %v3978
        %4044 = vst.msk [vmem:[%s244 + $0x28] sm:$0xf] %vm4033, %v3979
        %4045 = vst.msk [vmem:[%s244 + $0x2c] sm:$0xf] %vm4033, %v3980
        %4046 = vst.msk [vmem:[%s244 + $0x30] sm:$0xf] %vm4033, %v3981
        %4047 = vst.msk [vmem:[%s244 + $0x34] sm:$0xf] %vm4033, %v3982
        %4048 = vst.msk [vmem:[%s244 + $0x38] sm:$0xf] %vm4033, %v3983
        %4049 = vst.msk [vmem:[%s244 + $0x3c] sm:$0xf] %vm4033, %v3984
        %4050 = vst.msk [vmem:[%s244 + $0x40] sm:$0xf] %vm4033, %v3985
        %4051 = vst.msk [vmem:[%s244 + $0x44] sm:$0xf] %vm4033, %v3986
        %4052 = vst.msk [vmem:[%s244 + $0x48] sm:$0xf] %vm4033, %v3987
        %4053 = vst.msk [vmem:[%s244 + $0x4c] sm:$0xf] %vm4033, %v3988
        %4054 = vst.msk [vmem:[%s244 + $0x50] sm:$0xf] %vm4033, %v3989
        %4055 = vst.msk [vmem:[%s244 + $0x54] sm:$0xf] %vm4033, %v3990
        %4056 = vst.msk [vmem:[%s244 + $0x58] sm:$0xf] %vm4033, %v3991
        %4057 = vst.msk [vmem:[%s244 + $0x5c] sm:$0xf] %vm4033, %v3992
        %4058 = vst.msk [vmem:[%s244 + $0x60] sm:$0xf] %vm4033, %v3993
        %4059 = vst.msk [vmem:[%s244 + $0x64] sm:$0xf] %vm4033, %v3994
        %4060 = vst.msk [vmem:[%s244 + $0x68] sm:$0xf] %vm4033, %v3995
        %4061 = vst.msk [vmem:[%s244 + $0x6c] sm:$0xf] %vm4033, %v3996
        %4062 = vst.msk [vmem:[%s244 + $0x70] sm:$0xf] %vm4033, %v3997
        %4063 = vst.msk [vmem:[%s244 + $0x74] sm:$0xf] %vm4033, %v3998
        %4064 = vst.msk [vmem:[%s244 + $0x78] sm:$0xf] %vm4033, %v3999
        %4065 = vst.msk [vmem:[%s244 + $0x7c] sm:$0xf] %vm4033, %v4000
        %s4066 = sand.u32 %s159, 1
        %s4067 = scalar_lea.sflag [#allocation4], %s4066
        %s4068 = sand.u32 %s159, 1
        %s4069 = smul.addr %s4068, 128
        %s4070 = scalar_lea.vmem [#allocation3], %s4069
        // Predicated region
        $region45: #{tpu_custom_call.1} parent=43 // pred_check
          %p4071 = pneg %p169
        $region46: #{tpu_custom_call.1} parent=43 // pred_check_branch
          %4073 = sbr.rel (%p4071) target = $region48
        $region47: #{tpu_custom_call.1} parent=43 // pred_region
          %s4075 = ssub.s32 2048, 2048
          %4076 = vsyncadd %s4067, %s4075
          %s4077 = smul.addr %s20, 32
          %s4078 = smul.addr %s4077, 64
          %s4079 = scalar_lea.hbm %s6, %s4078
          %s4080 = sshll.u32 %s4070, 4
          %s4081 = int_to_ptr.vmem [resolvable:$true] %s4080
          %4086 = dma.vmem_to_hbm [thread:$0]  %s4081, 2048, %s4079, %s4067, 64, 64, 4
        $region48: #{tpu_custom_call.1} parent=43 // pred_fallthru
          _
      $region44: #{tpu_custom_call.1} parent=5 // pred_fallthru
        _
      %p4087 = scmp.le.s32.totalorder 2, %s15
      // Predicated region
      $region49: #{tpu_custom_call.1} parent=5 // pred_check
        %p4088 = pneg %p4087
      $region50: #{tpu_custom_call.1} parent=5 // pred_check_branch
        %4090 = sbr.rel (%p4088) target = $region52
      $region51: #{tpu_custom_call.1} parent=5 // pred_region
        %s4091 = ssub.s32 %s15, 2
        // Predicated region
        $region53: #{tpu_custom_call.1} parent=51 // pred_check
          %p4092 = pneg %p175
        $region54: #{tpu_custom_call.1} parent=51 // pred_check_branch
          %4094 = sbr.rel (%p4092) target = $region56
        $region55: #{tpu_custom_call.1} parent=51 // pred_region
          %s4095 = sand.u32 %s160, 1
          %s4096 = scalar_lea.sflag [#allocation4], %s4095
          %s4097 = sand.u32 %s160, 1
          %s4098 = smul.addr %s4097, 128
          %s4099 = scalar_lea.vmem [#allocation3], %s4098
          %4100 = dma.done %s4096, 2048
        $region56: #{tpu_custom_call.1} parent=51 // pred_fallthru
          _
      $region52: #{tpu_custom_call.1} parent=5 // pred_fallthru
        _
    $region6: #{tpu_custom_call.1} parent=1 // loop_footer
      %s19 = sadd.s32 1, %s15
    $region7: #{tpu_custom_call.1} parent=1 // loop_footer_branch
      %14 = sbr.rel target = $region3
    $region8: #{tpu_custom_call.1} parent=1 // loop_exit
      _
    %4101 = vsyncpa [#allocation4], 1
    %s4102 = scalar_lea.sflag [#allocation4], 1
    %4103 = vsyncpa %s4102, 1

</llo_original>
